<compile_context>
chip_gen: v7x
topology: tpu7x:2x2x1
jax: 0.10.0
libtpu: 0.0.40
codegen_flags: <defaults>
</compile_context>

<pallas_src>
import functools

import jax
import jax.numpy as jnp
from jax.experimental import pallas as pl
from jax.experimental.pallas import tpu as pltpu


# ---------------------------------------------------------------------------
# Pallas kernel: one bidirectional GRU layer (recurrent part only).
# ---------------------------------------------------------------------------
def _bigru_chunk_kernel(lens_ref, gi_f_ref, gi_b_ref, w_hh_ref, b_hh_ref,
                        out_f_ref, out_b_ref, h_ref, *, tc, seq_len):
    """Runs `tc` recurrence steps of both directions per grid step.

    lens_ref : (B, 1) int32, VMEM-resident (no per-step mask DMA)
    gi_f_ref : (tc, B, 3H) f32 block, forward chunk c
    gi_b_ref : (tc, B, 3H) f32 block, chunk (n_chunks-1-c) (backward stream)
    w_hh_ref : (2, H, 3H) bf16, full array, single VMEM copy
    b_hh_ref : (2, 1, 3H) f32,  full array, single VMEM copy
    out_*    : (tc, B, H) f32 blocks
    h_ref    : (2, B, H) f32 scratch; hidden state carried across grid steps
    """
    c = pl.program_id(0)
    hidden = h_ref.shape[-1]

    @pl.when(c == 0)
    def _():
        h_ref[...] = jnp.zeros_like(h_ref)

    lens = lens_ref[...]                        # (B, 1) int32
    w_f, w_b = w_hh_ref[0], w_hh_ref[1]         # (H, 3H) bf16
    bh_f, bh_b = b_hh_ref[0], b_hh_ref[1]       # (1, 3H) f32

    def gru_cell(gi, h, w, bh, t):
        # One fused (H, 3H) hidden matmul; slice r/z/n from the 3H gate axis.
        gh = jnp.dot(h.astype(w.dtype), w,
                     preferred_element_type=jnp.float32) + bh        # (B, 3H)
        r = jax.nn.sigmoid(gi[:, :hidden] + gh[:, :hidden])
        z = jax.nn.sigmoid(gi[:, hidden:2 * hidden] + gh[:, hidden:2 * hidden])
        n = jnp.tanh(gi[:, 2 * hidden:] + r * gh[:, 2 * hidden:])
        h_new = (1.0 - z) * n + z * h
        m = (t < lens).astype(jnp.float32)                            # (B, 1)
        h_upd = m * h_new + (1.0 - m) * h      # hold hidden on padded steps
        return h_upd, h_upd * m                # padded positions -> exactly 0

    def step(i, carry):
        del carry
        t_f = c * tc + i                       # forward global time index
        j = tc - 1 - i                         # backward local row in its chunk
        t_b = seq_len - 1 - t_f                # backward global time index

        h_f, o_f = gru_cell(gi_f_ref[i], h_ref[0], w_f, bh_f, t_f)
        h_b, o_b = gru_cell(gi_b_ref[j], h_ref[1], w_b, bh_b, t_b)

        h_ref[0] = h_f
        h_ref[1] = h_b
        out_f_ref[i] = o_f.astype(out_f_ref.dtype)
        out_b_ref[j] = o_b.astype(out_b_ref.dtype)
        return 0

    jax.lax.fori_loop(0, tc, step, 0, unroll=True)


def _pick_time_chunk(seq_len, max_chunk=16):
    """Largest divisor of seq_len that is <= max_chunk."""
    for cand in range(min(seq_len, max_chunk), 0, -1):
        if seq_len % cand == 0:
            return cand
    return 1


def bigru_layer(lengths_col, gi_fwd, gi_bwd, w_hh, b_hh, *, tc):
    """Run one bidirectional GRU layer given precomputed input projections.

    gi_fwd / gi_bwd: (T, B, 3H) f32 (x @ W_ih + b_ih) per direction.
    Returns (out_fwd, out_bwd), each (T, B, H) f32 in natural time order,
    zeros at padded positions.
    """
    T, B, G = gi_fwd.shape
    H = G // 3
    n_chunks = T // tc

    kernel = functools.partial(_bigru_chunk_kernel, tc=tc, seq_len=T)

    out_f, out_b = pl.pallas_call(
        kernel,
        out_shape=(
            jax.ShapeDtypeStruct((T, B, H), jnp.float32),
            jax.ShapeDtypeStruct((T, B, H), jnp.float32),
        ),
        grid_spec=pltpu.PrefetchScalarGridSpec(
            num_scalar_prefetch=0,
            grid=(n_chunks,),
            in_specs=[
                # lengths: tiny, whole array resident in VMEM (single copy)
                pl.BlockSpec(memory_space=pltpu.MemorySpace.VMEM),
                # precomputed input projections, pipelined by time chunk
                pl.BlockSpec((tc, B, G), lambda c: (c, 0, 0)),
                pl.BlockSpec((tc, B, G), lambda c: (n_chunks - 1 - c, 0, 0)),
                # loop-invariant recurrent weights/biases: single VMEM copy
                pl.BlockSpec(memory_space=pltpu.MemorySpace.VMEM),
                pl.BlockSpec(memory_space=pltpu.MemorySpace.VMEM),
            ],
            out_specs=[
                pl.BlockSpec((tc, B, H), lambda c: (c, 0, 0)),
                pl.BlockSpec((tc, B, H), lambda c: (n_chunks - 1 - c, 0, 0)),
            ],
            scratch_shapes=[pltpu.VMEM((2, B, H), jnp.float32)],
        ),
        compiler_params=pltpu.CompilerParams(
            dimension_semantics=("arbitrary",),    # recurrent over time chunks
        ),
    )(lengths_col, gi_fwd, gi_bwd, w_hh, b_hh)
    return out_f, out_b


# ---------------------------------------------------------------------------
# Parameters (PyTorch-style init, gate order r|z|n along the 3H axis)
# ---------------------------------------------------------------------------
def init_gru_direction_params(key, input_dim, hidden):
    k = 1.0 / float(hidden) ** 0.5
    k0, k1, k2, k3 = jax.random.split(key, 4)
    return dict(
        w_ih=jax.random.uniform(k0, (input_dim, 3 * hidden), jnp.float32, -k, k),
        w_hh=jax.random.uniform(k1, (hidden, 3 * hidden), jnp.float32, -k, k),
        b_ih=jax.random.uniform(k2, (3 * hidden,), jnp.float32, -k, k),
        b_hh=jax.random.uniform(k3, (3 * hidden,), jnp.float32, -k, k),
    )


def init_encoder_params(key, input_size, hidden_size):
    keys = jax.random.split(key, 4)
    return dict(
        l0_fwd=init_gru_direction_params(keys[0], input_size, hidden_size),
        l0_bwd=init_gru_direction_params(keys[1], input_size, hidden_size),
        l1_fwd=init_gru_direction_params(keys[2], 2 * hidden_size, hidden_size),
        l1_bwd=init_gru_direction_params(keys[3], 2 * hidden_size, hidden_size),
    )


# ---------------------------------------------------------------------------
# Forward pass
# ---------------------------------------------------------------------------
def _input_projection(x_parts, w_ih, b_ih):
    """gi = concat(x_parts, -1) @ w_ih + b_ih without materializing the concat."""
    off = 0
    acc = None
    for xp in x_parts:
        k = xp.shape[-1]
        term = jnp.einsum("tbk,kg->tbg", xp, w_ih[off:off + k],
                          preferred_element_type=jnp.float32)
        acc = term if acc is None else acc + term
        off += k
    return acc + b_ih[None, None, :]


def _stack_direction_weights(p_fwd, p_bwd):
    w_hh = jnp.stack([p_fwd["w_hh"], p_bwd["w_hh"]]).astype(jnp.bfloat16)
    b_hh = jnp.stack([p_fwd["b_hh"], p_bwd["b_hh"]])[:, None, :]  # (2, 1, 3H) f32
    return w_hh, b_hh


@jax.jit
def encoder_forward(params, sequence_batch, sequence_lengths):
    """sequence_batch: (B, T, input_size) batch-first; sequence_lengths: (B,).

    Returns (B, T, 2*hidden). pad_packed_sequence would trim T to
    max(sequence_lengths); padded positions are exactly zero either way.
    """
    B, T, D = sequence_batch.shape
    x = jnp.transpose(sequence_batch, (1, 0, 2)).astype(jnp.float32)  # (T, B, D)
    lens = sequence_lengths.astype(jnp.int32).reshape(B, 1)
    tc = _pick_time_chunk(T)

    # Layer 0 (bidirectional): big hoisted input GEMMs + Pallas recurrence
    p0f, p0b = params["l0_fwd"], params["l0_bwd"]
    gi0_f = _input_projection([x], p0f["w_ih"], p0f["b_ih"])
    gi0_b = _input_projection([x], p0b["w_ih"], p0b["b_ih"])
    w_hh0, b_hh0 = _stack_direction_weights(p0f, p0b)
    f0, b0 = bigru_layer(lens, gi0_f, gi0_b, w_hh0, b_hh0, tc=tc)

    # Layer 1 (bidirectional). Inter-layer concat is avoided by splitting W_ih.
    # Dropout between layers is a no-op in eval/inference mode.
    p1f, p1b = params["l1_fwd"], params["l1_bwd"]
    gi1_f = _input_projection([f0, b0], p1f["w_ih"], p1f["b_ih"])
    gi1_b = _input_projection([f0, b0], p1b["w_ih"], p1b["b_ih"])
    w_hh1, b_hh1 = _stack_direction_weights(p1f, p1b)
    f1, b1 = bigru_layer(lens, gi1_f, gi1_b, w_hh1, b_hh1, tc=tc)

    out = jnp.concatenate([f1, b1], axis=-1)                          # (T, B, 2H)
    return jnp.transpose(out, (1, 0, 2))                              # (B, T, 2H)


# ---------------------------------------------------------------------------
# Pure-JAX reference (same numerics: bf16 recurrent matmul, f32 state)
# ---------------------------------------------------------------------------
def _ref_gru_direction(gi, w_hh_bf16, b_hh, mask, *, reverse):
    T, B, G = gi.shape
    H = G // 3

    def step(h, inp):
        g, m = inp
        gh = jnp.dot(h.astype(w_hh_bf16.dtype), w_hh_bf16,
                     preferred_element_type=jnp.float32) + b_hh
        r = jax.nn.sigmoid(g[:, :H] + gh[:, :H])
        z = jax.nn.sigmoid(g[:, H:2 * H] + gh[:, H:2 * H])
        n = jnp.tanh(g[:, 2 * H:] + r * gh[:, 2 * H:])
        h_new = (1.0 - z) * n + z * h
        h_upd = m * h_new + (1.0 - m) * h
        return h_upd, h_upd * m

    h0 = jnp.zeros((B, H), jnp.float32)
    _, ys = jax.lax.scan(step, h0, (gi, mask), reverse=reverse)
    return ys


def reference_forward(params, sequence_batch, sequence_lengths):
    B, T, D = sequence_batch.shape
    x = jnp.transpose(sequence_batch, (1, 0, 2)).astype(jnp.float32)
    mask = (jnp.arange(T)[:, None] < sequence_lengths[None, :]).astype(jnp.float32)
    mask = mask[:, :, None]                                           # (T, B, 1)

    def layer(x_parts, pf, pb):
        gi_f = _input_projection(x_parts, pf["w_ih"], pf["b_ih"])
        gi_b = _input_projection(x_parts, pb["w_ih"], pb["b_ih"])
        w_hh, b_hh = _stack_direction_weights(pf, pb)
        f = _ref_gru_direction(gi_f, w_hh[0], b_hh[0], mask, reverse=False)
        b = _ref_gru_direction(gi_b, w_hh[1], b_hh[1], mask, reverse=True)
        return f, b

    f0, b0 = layer([x], params["l0_fwd"], params["l0_bwd"])
    f1, b1 = layer([f0, b0], params["l1_fwd"], params["l1_bwd"])
    out = jnp.concatenate([f1, b1], axis=-1)
    return jnp.transpose(out, (1, 0, 2))


if __name__ == "__main__":
    input_size = 16
    hidden_size = 32
    batch = 4
    seq = 8

    key = jax.random.PRNGKey(0)
    pkey, xkey = jax.random.split(key)

    params = init_encoder_params(pkey, input_size, hidden_size)
    x = jax.random.normal(xkey, (batch, seq, input_size), dtype=jnp.float32)
    lengths = jnp.array([8, 6, 4, 2], dtype=jnp.int32)  # max == seq, no trim needed

    out = jax.block_until_ready(encoder_forward(params, x, lengths))
    assert out.shape == (batch, seq, 2 * hidden_size)
    # pack/pad semantics: padded positions must be exactly zero
    assert float(jnp.abs(out[3, 2:]).max()) == 0.0

    ref = jax.block_until_ready(reference_forward(params, x, lengths))
    err = float(jnp.max(jnp.abs(out - ref)))
    assert err < 2e-3, f"max abs error vs reference: {err}"

    print("KERNEL_OK")
</pallas_src>

<mosaic_0001>
module attributes {stable_mosaic.version = 11 : i64} {
  func.func @_bigru_chunk_kernel(%arg0: i32, %arg1: memref<4x1xi32, #tpu.memory_space<vmem>>, %arg2: memref<8x4x96xf32, #tpu.memory_space<vmem>>, %arg3: memref<8x4x96xf32, #tpu.memory_space<vmem>>, %arg4: memref<2x32x96xbf16, #tpu.memory_space<vmem>>, %arg5: memref<2x1x96xf32, #tpu.memory_space<vmem>>, %arg6: memref<8x4x32xf32, #tpu.memory_space<vmem>>, %arg7: memref<8x4x32xf32, #tpu.memory_space<vmem>>, %arg8: memref<2x4x32xf32, #tpu.memory_space<vmem>>) attributes {dimension_semantics = [#tpu.dimension_semantics<arbitrary>], iteration_bounds = array<i64: 1>, scalar_prefetch = 0 : i64, scratch_operands = 1 : i64, tpu.core_type = #tpu.core_type<tc>, window_params = [{pipeline_mode = #tpu.pipeline_mode<synchronous>, transform_indices = @transform_0, window_bounds = array<i64: 4, 1>}, {transform_indices = @transform_1, window_bounds = array<i64: 8, 4, 96>}, {transform_indices = @transform_2, window_bounds = array<i64: 8, 4, 96>}, {pipeline_mode = #tpu.pipeline_mode<synchronous>, transform_indices = @transform_3, window_bounds = array<i64: 2, 32, 96>}, {pipeline_mode = #tpu.pipeline_mode<synchronous>, transform_indices = @transform_4, window_bounds = array<i64: 2, 1, 96>}, {transform_indices = @transform_5, window_bounds = array<i64: 8, 4, 32>}, {transform_indices = @transform_6, window_bounds = array<i64: 8, 4, 32>}]} {
    %c0_i32 = arith.constant 0 : i32
    %0 = arith.cmpi eq, %arg0, %c0_i32 : i32
    %1 = arith.extui %0 : i1 to i32
    %c0_i32_0 = arith.constant 0 : i32
    %2 = arith.cmpi ne, %1, %c0_i32_0 : i32
    scf.if %2 {
      %cst_277 = arith.constant 0.000000e+00 : f32
      %924 = vector.broadcast %cst_277 : f32 to vector<2x4x32xf32>
      %c0_278 = arith.constant 0 : index
      %c0_279 = arith.constant 0 : index
      %c0_280 = arith.constant 0 : index
      %925 = vector.load %arg8[%c0_278, %c0_279, %c0_280] : memref<2x4x32xf32, #tpu.memory_space<vmem>>, vector<2x4x32xf32>
      tpu.vector_store %arg8[%c0_278, %c0_279, %c0_280], %924 {strides = array<i32>} : memref<2x4x32xf32, #tpu.memory_space<vmem>>, vector<2x4x32xf32>,
    } else {
    }
    %c0 = arith.constant 0 : index
    %c0_1 = arith.constant 0 : index
    %3 = vector.load %arg1[%c0, %c0_1] : memref<4x1xi32, #tpu.memory_space<vmem>>, vector<4x1xi32>
    %c0_2 = arith.constant 0 : index
    %c0_3 = arith.constant 0 : index
    %c0_4 = arith.constant 0 : index
    %4 = vector.load %arg4[%c0_2, %c0_3, %c0_4] : memref<2x32x96xbf16, #tpu.memory_space<vmem>>, vector<1x32x96xbf16>
    %5 = vector.shape_cast %4 : vector<1x32x96xbf16> to vector<32x96xbf16>
    %c1 = arith.constant 1 : index
    %c0_5 = arith.constant 0 : index
    %c0_6 = arith.constant 0 : index
    %6 = vector.load %arg4[%c1, %c0_5, %c0_6] : memref<2x32x96xbf16, #tpu.memory_space<vmem>>, vector<1x32x96xbf16>
    %7 = vector.shape_cast %6 : vector<1x32x96xbf16> to vector<32x96xbf16>
    %c0_7 = arith.constant 0 : index
    %c0_8 = arith.constant 0 : index
    %c0_9 = arith.constant 0 : index
    %8 = vector.load %arg5[%c0_7, %c0_8, %c0_9] : memref<2x1x96xf32, #tpu.memory_space<vmem>>, vector<1x1x96xf32>
    %9 = vector.shape_cast %8 : vector<1x1x96xf32> to vector<1x96xf32>
    %c1_10 = arith.constant 1 : index
    %c0_11 = arith.constant 0 : index
    %c0_12 = arith.constant 0 : index
    %10 = vector.load %arg5[%c1_10, %c0_11, %c0_12] : memref<2x1x96xf32, #tpu.memory_space<vmem>>, vector<1x1x96xf32>
    %11 = vector.shape_cast %10 : vector<1x1x96xf32> to vector<1x96xf32>
    %c0_i32_13 = arith.constant 0 : i32
    %c8_i32 = arith.constant 8 : i32
    %12 = arith.muli %arg0, %c8_i32 : i32
    %13 = arith.addi %12, %c0_i32_13 : i32
    %c7_i32 = arith.constant 7 : i32
    %14 = arith.subi %c7_i32, %c0_i32_13 : i32
    %c7_i32_14 = arith.constant 7 : i32
    %15 = arith.subi %c7_i32_14, %13 : i32
    %16 = arith.index_cast %c0_i32_13 : i32 to index
    %c0_15 = arith.constant 0 : index
    %c0_16 = arith.constant 0 : index
    %17 = vector.load %arg2[%16, %c0_15, %c0_16] : memref<8x4x96xf32, #tpu.memory_space<vmem>>, vector<1x4x96xf32>
    %18 = vector.shape_cast %17 : vector<1x4x96xf32> to vector<4x96xf32>
    %c0_17 = arith.constant 0 : index
    %c0_18 = arith.constant 0 : index
    %c0_19 = arith.constant 0 : index
    %19 = vector.load %arg8[%c0_17, %c0_18, %c0_19] : memref<2x4x32xf32, #tpu.memory_space<vmem>>, vector<1x4x32xf32>
    %20 = vector.shape_cast %19 : vector<1x4x32xf32> to vector<4x32xf32>
    %21 = arith.truncf %20 : vector<4x32xf32> to vector<4x32xbf16>
    %cst = arith.constant dense<0.000000e+00> : vector<4x96xf32>
    %22 = tpu.matmul %21, %5, %cst {dimension_numbers = #tpu.dot_dimension_numbers<[1], [0], [0], [1], [0, 0, 1, 1], [], []>} : vector<4x32xbf16>, vector<32x96xbf16>, vector<4x96xf32> -> vector<4x96xf32>
    %23 = vector.broadcast %9 : vector<1x96xf32> to vector<4x96xf32>
    %24 = arith.addf %22, %23 : vector<4x96xf32>
    %25 = vector.extract_strided_slice %18 {offsets = [0, 0], sizes = [4, 32], strides = [1, 1]} : vector<4x96xf32> to vector<4x32xf32>
    %26 = vector.extract_strided_slice %24 {offsets = [0, 0], sizes = [4, 32], strides = [1, 1]} : vector<4x96xf32> to vector<4x32xf32>
    %27 = arith.addf %25, %26 : vector<4x32xf32>
    %28 = arith.negf %27 : vector<4x32xf32>
    %29 = math.exp %28 : vector<4x32xf32>
    %cst_20 = arith.constant 1.000000e+00 : f32
    %30 = vector.broadcast %cst_20 : f32 to vector<4x32xf32>
    %31 = arith.addf %30, %29 : vector<4x32xf32>
    %32 = arith.divf %30, %31 : vector<4x32xf32>
    %33 = vector.extract_strided_slice %18 {offsets = [0, 32], sizes = [4, 32], strides = [1, 1]} : vector<4x96xf32> to vector<4x32xf32>
    %34 = vector.extract_strided_slice %24 {offsets = [0, 32], sizes = [4, 32], strides = [1, 1]} : vector<4x96xf32> to vector<4x32xf32>
    %35 = arith.addf %33, %34 : vector<4x32xf32>
    %36 = arith.negf %35 : vector<4x32xf32>
    %37 = math.exp %36 : vector<4x32xf32>
    %cst_21 = arith.constant 1.000000e+00 : f32
    %38 = vector.broadcast %cst_21 : f32 to vector<4x32xf32>
    %39 = arith.addf %38, %37 : vector<4x32xf32>
    %40 = arith.divf %38, %39 : vector<4x32xf32>
    %41 = vector.extract_strided_slice %18 {offsets = [0, 64], sizes = [4, 32], strides = [1, 1]} : vector<4x96xf32> to vector<4x32xf32>
    %42 = vector.extract_strided_slice %24 {offsets = [0, 64], sizes = [4, 32], strides = [1, 1]} : vector<4x96xf32> to vector<4x32xf32>
    %43 = arith.mulf %32, %42 : vector<4x32xf32>
    %44 = arith.addf %41, %43 : vector<4x32xf32>
    %45 = math.tanh %44 : vector<4x32xf32>
    %cst_22 = arith.constant 1.000000e+00 : f32
    %46 = vector.broadcast %cst_22 : f32 to vector<4x32xf32>
    %47 = arith.subf %46, %40 : vector<4x32xf32>
    %48 = arith.mulf %47, %45 : vector<4x32xf32>
    %49 = arith.mulf %40, %20 : vector<4x32xf32>
    %50 = arith.addf %48, %49 : vector<4x32xf32>
    %51 = vector.broadcast %13 : i32 to vector<4x1xi32>
    %52 = arith.cmpi slt, %51, %3 : vector<4x1xi32>
    %53 = arith.extui %52 : vector<4x1xi1> to vector<4x1xi32>
    %54 = arith.sitofp %53 : vector<4x1xi32> to vector<4x1xf32>
    %55 = vector.broadcast %54 : vector<4x1xf32> to vector<4x32xf32>
    %56 = arith.mulf %55, %50 : vector<4x32xf32>
    %cst_23 = arith.constant 1.000000e+00 : f32
    %57 = vector.broadcast %cst_23 : f32 to vector<4x1xf32>
    %58 = arith.subf %57, %54 : vector<4x1xf32>
    %59 = vector.broadcast %58 : vector<4x1xf32> to vector<4x32xf32>
    %60 = arith.mulf %59, %20 : vector<4x32xf32>
    %61 = arith.addf %56, %60 : vector<4x32xf32>
    %62 = vector.broadcast %54 : vector<4x1xf32> to vector<4x32xf32>
    %63 = arith.mulf %61, %62 : vector<4x32xf32>
    %64 = arith.index_cast %14 : i32 to index
    %c0_24 = arith.constant 0 : index
    %c0_25 = arith.constant 0 : index
    %65 = vector.load %arg3[%64, %c0_24, %c0_25] : memref<8x4x96xf32, #tpu.memory_space<vmem>>, vector<1x4x96xf32>
    %66 = vector.shape_cast %65 : vector<1x4x96xf32> to vector<4x96xf32>
    %c1_26 = arith.constant 1 : index
    %c0_27 = arith.constant 0 : index
    %c0_28 = arith.constant 0 : index
    %67 = vector.load %arg8[%c1_26, %c0_27, %c0_28] : memref<2x4x32xf32, #tpu.memory_space<vmem>>, vector<1x4x32xf32>
    %68 = vector.shape_cast %67 : vector<1x4x32xf32> to vector<4x32xf32>
    %69 = arith.truncf %68 : vector<4x32xf32> to vector<4x32xbf16>
    %cst_29 = arith.constant dense<0.000000e+00> : vector<4x96xf32>
    %70 = tpu.matmul %69, %7, %cst_29 {dimension_numbers = #tpu.dot_dimension_numbers<[1], [0], [0], [1], [0, 0, 1, 1], [], []>} : vector<4x32xbf16>, vector<32x96xbf16>, vector<4x96xf32> -> vector<4x96xf32>
    %71 = vector.broadcast %11 : vector<1x96xf32> to vector<4x96xf32>
    %72 = arith.addf %70, %71 : vector<4x96xf32>
    %73 = vector.extract_strided_slice %66 {offsets = [0, 0], sizes = [4, 32], strides = [1, 1]} : vector<4x96xf32> to vector<4x32xf32>
    %74 = vector.extract_strided_slice %72 {offsets = [0, 0], sizes = [4, 32], strides = [1, 1]} : vector<4x96xf32> to vector<4x32xf32>
    %75 = arith.addf %73, %74 : vector<4x32xf32>
    %76 = arith.negf %75 : vector<4x32xf32>
    %77 = math.exp %76 : vector<4x32xf32>
    %cst_30 = arith.constant 1.000000e+00 : f32
    %78 = vector.broadcast %cst_30 : f32 to vector<4x32xf32>
    %79 = arith.addf %78, %77 : vector<4x32xf32>
    %80 = arith.divf %78, %79 : vector<4x32xf32>
    %81 = vector.extract_strided_slice %66 {offsets = [0, 32], sizes = [4, 32], strides = [1, 1]} : vector<4x96xf32> to vector<4x32xf32>
    %82 = vector.extract_strided_slice %72 {offsets = [0, 32], sizes = [4, 32], strides = [1, 1]} : vector<4x96xf32> to vector<4x32xf32>
    %83 = arith.addf %81, %82 : vector<4x32xf32>
    %84 = arith.negf %83 : vector<4x32xf32>
    %85 = math.exp %84 : vector<4x32xf32>
    %cst_31 = arith.constant 1.000000e+00 : f32
    %86 = vector.broadcast %cst_31 : f32 to vector<4x32xf32>
    %87 = arith.addf %86, %85 : vector<4x32xf32>
    %88 = arith.divf %86, %87 : vector<4x32xf32>
    %89 = vector.extract_strided_slice %66 {offsets = [0, 64], sizes = [4, 32], strides = [1, 1]} : vector<4x96xf32> to vector<4x32xf32>
    %90 = vector.extract_strided_slice %72 {offsets = [0, 64], sizes = [4, 32], strides = [1, 1]} : vector<4x96xf32> to vector<4x32xf32>
    %91 = arith.mulf %80, %90 : vector<4x32xf32>
    %92 = arith.addf %89, %91 : vector<4x32xf32>
    %93 = math.tanh %92 : vector<4x32xf32>
    %cst_32 = arith.constant 1.000000e+00 : f32
    %94 = vector.broadcast %cst_32 : f32 to vector<4x32xf32>
    %95 = arith.subf %94, %88 : vector<4x32xf32>
    %96 = arith.mulf %95, %93 : vector<4x32xf32>
    %97 = arith.mulf %88, %68 : vector<4x32xf32>
    %98 = arith.addf %96, %97 : vector<4x32xf32>
    %99 = vector.broadcast %15 : i32 to vector<4x1xi32>
    %100 = arith.cmpi slt, %99, %3 : vector<4x1xi32>
    %101 = arith.extui %100 : vector<4x1xi1> to vector<4x1xi32>
    %102 = arith.sitofp %101 : vector<4x1xi32> to vector<4x1xf32>
    %103 = vector.broadcast %102 : vector<4x1xf32> to vector<4x32xf32>
    %104 = arith.mulf %103, %98 : vector<4x32xf32>
    %cst_33 = arith.constant 1.000000e+00 : f32
    %105 = vector.broadcast %cst_33 : f32 to vector<4x1xf32>
    %106 = arith.subf %105, %102 : vector<4x1xf32>
    %107 = vector.broadcast %106 : vector<4x1xf32> to vector<4x32xf32>
    %108 = arith.mulf %107, %68 : vector<4x32xf32>
    %109 = arith.addf %104, %108 : vector<4x32xf32>
    %110 = vector.broadcast %102 : vector<4x1xf32> to vector<4x32xf32>
    %111 = arith.mulf %109, %110 : vector<4x32xf32>
    %c0_34 = arith.constant 0 : index
    %c0_35 = arith.constant 0 : index
    %c0_36 = arith.constant 0 : index
    %112 = vector.load %arg8[%c0_34, %c0_35, %c0_36] : memref<2x4x32xf32, #tpu.memory_space<vmem>>, vector<1x4x32xf32>
    %113 = vector.shape_cast %112 : vector<1x4x32xf32> to vector<4x32xf32>
    %114 = vector.shape_cast %61 : vector<4x32xf32> to vector<1x4x32xf32>
    tpu.vector_store %arg8[%c0_34, %c0_35, %c0_36], %114 {strides = array<i32>} : memref<2x4x32xf32, #tpu.memory_space<vmem>>, vector<1x4x32xf32>,
    %c1_37 = arith.constant 1 : index
    %c0_38 = arith.constant 0 : index
    %c0_39 = arith.constant 0 : index
    %115 = vector.load %arg8[%c1_37, %c0_38, %c0_39] : memref<2x4x32xf32, #tpu.memory_space<vmem>>, vector<1x4x32xf32>
    %116 = vector.shape_cast %115 : vector<1x4x32xf32> to vector<4x32xf32>
    %117 = vector.shape_cast %109 : vector<4x32xf32> to vector<1x4x32xf32>
    tpu.vector_store %arg8[%c1_37, %c0_38, %c0_39], %117 {strides = array<i32>} : memref<2x4x32xf32, #tpu.memory_space<vmem>>, vector<1x4x32xf32>,
    %118 = arith.index_cast %c0_i32_13 : i32 to index
    %c0_40 = arith.constant 0 : index
    %c0_41 = arith.constant 0 : index
    %119 = vector.load %arg6[%118, %c0_40, %c0_41] : memref<8x4x32xf32, #tpu.memory_space<vmem>>, vector<1x4x32xf32>
    %120 = vector.shape_cast %119 : vector<1x4x32xf32> to vector<4x32xf32>
    %121 = vector.shape_cast %63 : vector<4x32xf32> to vector<1x4x32xf32>
    tpu.vector_store %arg6[%118, %c0_40, %c0_41], %121 {strides = array<i32>} : memref<8x4x32xf32, #tpu.memory_space<vmem>>, vector<1x4x32xf32>,
    %122 = arith.index_cast %14 : i32 to index
    %c0_42 = arith.constant 0 : index
    %c0_43 = arith.constant 0 : index
    %123 = vector.load %arg7[%122, %c0_42, %c0_43] : memref<8x4x32xf32, #tpu.memory_space<vmem>>, vector<1x4x32xf32>
    %124 = vector.shape_cast %123 : vector<1x4x32xf32> to vector<4x32xf32>
    %125 = vector.shape_cast %111 : vector<4x32xf32> to vector<1x4x32xf32>
    tpu.vector_store %arg7[%122, %c0_42, %c0_43], %125 {strides = array<i32>} : memref<8x4x32xf32, #tpu.memory_space<vmem>>, vector<1x4x32xf32>,
    %c1_i32 = arith.constant 1 : i32
    %c8_i32_44 = arith.constant 8 : i32
    %126 = arith.muli %arg0, %c8_i32_44 : i32
    %127 = arith.addi %126, %c1_i32 : i32
    %c7_i32_45 = arith.constant 7 : i32
    %128 = arith.subi %c7_i32_45, %c1_i32 : i32
    %c7_i32_46 = arith.constant 7 : i32
    %129 = arith.subi %c7_i32_46, %127 : i32
    %130 = arith.index_cast %c1_i32 : i32 to index
    %c0_47 = arith.constant 0 : index
    %c0_48 = arith.constant 0 : index
    %131 = vector.load %arg2[%130, %c0_47, %c0_48] : memref<8x4x96xf32, #tpu.memory_space<vmem>>, vector<1x4x96xf32>
    %132 = vector.shape_cast %131 : vector<1x4x96xf32> to vector<4x96xf32>
    %c0_49 = arith.constant 0 : index
    %c0_50 = arith.constant 0 : index
    %c0_51 = arith.constant 0 : index
    %133 = vector.load %arg8[%c0_49, %c0_50, %c0_51] : memref<2x4x32xf32, #tpu.memory_space<vmem>>, vector<1x4x32xf32>
    %134 = vector.shape_cast %133 : vector<1x4x32xf32> to vector<4x32xf32>
    %135 = arith.truncf %134 : vector<4x32xf32> to vector<4x32xbf16>
    %cst_52 = arith.constant dense<0.000000e+00> : vector<4x96xf32>
    %136 = tpu.matmul %135, %5, %cst_52 {dimension_numbers = #tpu.dot_dimension_numbers<[1], [0], [0], [1], [0, 0, 1, 1], [], []>} : vector<4x32xbf16>, vector<32x96xbf16>, vector<4x96xf32> -> vector<4x96xf32>
    %137 = vector.broadcast %9 : vector<1x96xf32> to vector<4x96xf32>
    %138 = arith.addf %136, %137 : vector<4x96xf32>
    %139 = vector.extract_strided_slice %132 {offsets = [0, 0], sizes = [4, 32], strides = [1, 1]} : vector<4x96xf32> to vector<4x32xf32>
    %140 = vector.extract_strided_slice %138 {offsets = [0, 0], sizes = [4, 32], strides = [1, 1]} : vector<4x96xf32> to vector<4x32xf32>
    %141 = arith.addf %139, %140 : vector<4x32xf32>
    %142 = arith.negf %141 : vector<4x32xf32>
    %143 = math.exp %142 : vector<4x32xf32>
    %cst_53 = arith.constant 1.000000e+00 : f32
    %144 = vector.broadcast %cst_53 : f32 to vector<4x32xf32>
    %145 = arith.addf %144, %143 : vector<4x32xf32>
    %146 = arith.divf %144, %145 : vector<4x32xf32>
    %147 = vector.extract_strided_slice %132 {offsets = [0, 32], sizes = [4, 32], strides = [1, 1]} : vector<4x96xf32> to vector<4x32xf32>
    %148 = vector.extract_strided_slice %138 {offsets = [0, 32], sizes = [4, 32], strides = [1, 1]} : vector<4x96xf32> to vector<4x32xf32>
    %149 = arith.addf %147, %148 : vector<4x32xf32>
    %150 = arith.negf %149 : vector<4x32xf32>
    %151 = math.exp %150 : vector<4x32xf32>
    %cst_54 = arith.constant 1.000000e+00 : f32
    %152 = vector.broadcast %cst_54 : f32 to vector<4x32xf32>
    %153 = arith.addf %152, %151 : vector<4x32xf32>
    %154 = arith.divf %152, %153 : vector<4x32xf32>
    %155 = vector.extract_strided_slice %132 {offsets = [0, 64], sizes = [4, 32], strides = [1, 1]} : vector<4x96xf32> to vector<4x32xf32>
    %156 = vector.extract_strided_slice %138 {offsets = [0, 64], sizes = [4, 32], strides = [1, 1]} : vector<4x96xf32> to vector<4x32xf32>
    %157 = arith.mulf %146, %156 : vector<4x32xf32>
    %158 = arith.addf %155, %157 : vector<4x32xf32>
    %159 = math.tanh %158 : vector<4x32xf32>
    %cst_55 = arith.constant 1.000000e+00 : f32
    %160 = vector.broadcast %cst_55 : f32 to vector<4x32xf32>
    %161 = arith.subf %160, %154 : vector<4x32xf32>
    %162 = arith.mulf %161, %159 : vector<4x32xf32>
    %163 = arith.mulf %154, %134 : vector<4x32xf32>
    %164 = arith.addf %162, %163 : vector<4x32xf32>
    %165 = vector.broadcast %127 : i32 to vector<4x1xi32>
    %166 = arith.cmpi slt, %165, %3 : vector<4x1xi32>
    %167 = arith.extui %166 : vector<4x1xi1> to vector<4x1xi32>
    %168 = arith.sitofp %167 : vector<4x1xi32> to vector<4x1xf32>
    %169 = vector.broadcast %168 : vector<4x1xf32> to vector<4x32xf32>
    %170 = arith.mulf %169, %164 : vector<4x32xf32>
    %cst_56 = arith.constant 1.000000e+00 : f32
    %171 = vector.broadcast %cst_56 : f32 to vector<4x1xf32>
    %172 = arith.subf %171, %168 : vector<4x1xf32>
    %173 = vector.broadcast %172 : vector<4x1xf32> to vector<4x32xf32>
    %174 = arith.mulf %173, %134 : vector<4x32xf32>
    %175 = arith.addf %170, %174 : vector<4x32xf32>
    %176 = vector.broadcast %168 : vector<4x1xf32> to vector<4x32xf32>
    %177 = arith.mulf %175, %176 : vector<4x32xf32>
    %178 = arith.index_cast %128 : i32 to index
    %c0_57 = arith.constant 0 : index
    %c0_58 = arith.constant 0 : index
    %179 = vector.load %arg3[%178, %c0_57, %c0_58] : memref<8x4x96xf32, #tpu.memory_space<vmem>>, vector<1x4x96xf32>
    %180 = vector.shape_cast %179 : vector<1x4x96xf32> to vector<4x96xf32>
    %c1_59 = arith.constant 1 : index
    %c0_60 = arith.constant 0 : index
    %c0_61 = arith.constant 0 : index
    %181 = vector.load %arg8[%c1_59, %c0_60, %c0_61] : memref<2x4x32xf32, #tpu.memory_space<vmem>>, vector<1x4x32xf32>
    %182 = vector.shape_cast %181 : vector<1x4x32xf32> to vector<4x32xf32>
    %183 = arith.truncf %182 : vector<4x32xf32> to vector<4x32xbf16>
    %cst_62 = arith.constant dense<0.000000e+00> : vector<4x96xf32>
    %184 = tpu.matmul %183, %7, %cst_62 {dimension_numbers = #tpu.dot_dimension_numbers<[1], [0], [0], [1], [0, 0, 1, 1], [], []>} : vector<4x32xbf16>, vector<32x96xbf16>, vector<4x96xf32> -> vector<4x96xf32>
    %185 = vector.broadcast %11 : vector<1x96xf32> to vector<4x96xf32>
    %186 = arith.addf %184, %185 : vector<4x96xf32>
    %187 = vector.extract_strided_slice %180 {offsets = [0, 0], sizes = [4, 32], strides = [1, 1]} : vector<4x96xf32> to vector<4x32xf32>
    %188 = vector.extract_strided_slice %186 {offsets = [0, 0], sizes = [4, 32], strides = [1, 1]} : vector<4x96xf32> to vector<4x32xf32>
    %189 = arith.addf %187, %188 : vector<4x32xf32>
    %190 = arith.negf %189 : vector<4x32xf32>
    %191 = math.exp %190 : vector<4x32xf32>
    %cst_63 = arith.constant 1.000000e+00 : f32
    %192 = vector.broadcast %cst_63 : f32 to vector<4x32xf32>
    %193 = arith.addf %192, %191 : vector<4x32xf32>
    %194 = arith.divf %192, %193 : vector<4x32xf32>
    %195 = vector.extract_strided_slice %180 {offsets = [0, 32], sizes = [4, 32], strides = [1, 1]} : vector<4x96xf32> to vector<4x32xf32>
    %196 = vector.extract_strided_slice %186 {offsets = [0, 32], sizes = [4, 32], strides = [1, 1]} : vector<4x96xf32> to vector<4x32xf32>
    %197 = arith.addf %195, %196 : vector<4x32xf32>
    %198 = arith.negf %197 : vector<4x32xf32>
    %199 = math.exp %198 : vector<4x32xf32>
    %cst_64 = arith.constant 1.000000e+00 : f32
    %200 = vector.broadcast %cst_64 : f32 to vector<4x32xf32>
    %201 = arith.addf %200, %199 : vector<4x32xf32>
    %202 = arith.divf %200, %201 : vector<4x32xf32>
    %203 = vector.extract_strided_slice %180 {offsets = [0, 64], sizes = [4, 32], strides = [1, 1]} : vector<4x96xf32> to vector<4x32xf32>
    %204 = vector.extract_strided_slice %186 {offsets = [0, 64], sizes = [4, 32], strides = [1, 1]} : vector<4x96xf32> to vector<4x32xf32>
    %205 = arith.mulf %194, %204 : vector<4x32xf32>
    %206 = arith.addf %203, %205 : vector<4x32xf32>
    %207 = math.tanh %206 : vector<4x32xf32>
    %cst_65 = arith.constant 1.000000e+00 : f32
    %208 = vector.broadcast %cst_65 : f32 to vector<4x32xf32>
    %209 = arith.subf %208, %202 : vector<4x32xf32>
    %210 = arith.mulf %209, %207 : vector<4x32xf32>
    %211 = arith.mulf %202, %182 : vector<4x32xf32>
    %212 = arith.addf %210, %211 : vector<4x32xf32>
    %213 = vector.broadcast %129 : i32 to vector<4x1xi32>
    %214 = arith.cmpi slt, %213, %3 : vector<4x1xi32>
    %215 = arith.extui %214 : vector<4x1xi1> to vector<4x1xi32>
    %216 = arith.sitofp %215 : vector<4x1xi32> to vector<4x1xf32>
    %217 = vector.broadcast %216 : vector<4x1xf32> to vector<4x32xf32>
    %218 = arith.mulf %217, %212 : vector<4x32xf32>
    %cst_66 = arith.constant 1.000000e+00 : f32
    %219 = vector.broadcast %cst_66 : f32 to vector<4x1xf32>
    %220 = arith.subf %219, %216 : vector<4x1xf32>
    %221 = vector.broadcast %220 : vector<4x1xf32> to vector<4x32xf32>
    %222 = arith.mulf %221, %182 : vector<4x32xf32>
    %223 = arith.addf %218, %222 : vector<4x32xf32>
    %224 = vector.broadcast %216 : vector<4x1xf32> to vector<4x32xf32>
    %225 = arith.mulf %223, %224 : vector<4x32xf32>
    %c0_67 = arith.constant 0 : index
    %c0_68 = arith.constant 0 : index
    %c0_69 = arith.constant 0 : index
    %226 = vector.load %arg8[%c0_67, %c0_68, %c0_69] : memref<2x4x32xf32, #tpu.memory_space<vmem>>, vector<1x4x32xf32>
    %227 = vector.shape_cast %226 : vector<1x4x32xf32> to vector<4x32xf32>
    %228 = vector.shape_cast %175 : vector<4x32xf32> to vector<1x4x32xf32>
    tpu.vector_store %arg8[%c0_67, %c0_68, %c0_69], %228 {strides = array<i32>} : memref<2x4x32xf32, #tpu.memory_space<vmem>>, vector<1x4x32xf32>,
    %c1_70 = arith.constant 1 : index
    %c0_71 = arith.constant 0 : index
    %c0_72 = arith.constant 0 : index
    %229 = vector.load %arg8[%c1_70, %c0_71, %c0_72] : memref<2x4x32xf32, #tpu.memory_space<vmem>>, vector<1x4x32xf32>
    %230 = vector.shape_cast %229 : vector<1x4x32xf32> to vector<4x32xf32>
    %231 = vector.shape_cast %223 : vector<4x32xf32> to vector<1x4x32xf32>
    tpu.vector_store %arg8[%c1_70, %c0_71, %c0_72], %231 {strides = array<i32>} : memref<2x4x32xf32, #tpu.memory_space<vmem>>, vector<1x4x32xf32>,
    %232 = arith.index_cast %c1_i32 : i32 to index
    %c0_73 = arith.constant 0 : index
    %c0_74 = arith.constant 0 : index
    %233 = vector.load %arg6[%232, %c0_73, %c0_74] : memref<8x4x32xf32, #tpu.memory_space<vmem>>, vector<1x4x32xf32>
    %234 = vector.shape_cast %233 : vector<1x4x32xf32> to vector<4x32xf32>
    %235 = vector.shape_cast %177 : vector<4x32xf32> to vector<1x4x32xf32>
    tpu.vector_store %arg6[%232, %c0_73, %c0_74], %235 {strides = array<i32>} : memref<8x4x32xf32, #tpu.memory_space<vmem>>, vector<1x4x32xf32>,
    %236 = arith.index_cast %128 : i32 to index
    %c0_75 = arith.constant 0 : index
    %c0_76 = arith.constant 0 : index
    %237 = vector.load %arg7[%236, %c0_75, %c0_76] : memref<8x4x32xf32, #tpu.memory_space<vmem>>, vector<1x4x32xf32>
    %238 = vector.shape_cast %237 : vector<1x4x32xf32> to vector<4x32xf32>
    %239 = vector.shape_cast %225 : vector<4x32xf32> to vector<1x4x32xf32>
    tpu.vector_store %arg7[%236, %c0_75, %c0_76], %239 {strides = array<i32>} : memref<8x4x32xf32, #tpu.memory_space<vmem>>, vector<1x4x32xf32>,
    %c2_i32 = arith.constant 2 : i32
    %c8_i32_77 = arith.constant 8 : i32
    %240 = arith.muli %arg0, %c8_i32_77 : i32
    %241 = arith.addi %240, %c2_i32 : i32
    %c7_i32_78 = arith.constant 7 : i32
    %242 = arith.subi %c7_i32_78, %c2_i32 : i32
    %c7_i32_79 = arith.constant 7 : i32
    %243 = arith.subi %c7_i32_79, %241 : i32
    %244 = arith.index_cast %c2_i32 : i32 to index
    %c0_80 = arith.constant 0 : index
    %c0_81 = arith.constant 0 : index
    %245 = vector.load %arg2[%244, %c0_80, %c0_81] : memref<8x4x96xf32, #tpu.memory_space<vmem>>, vector<1x4x96xf32>
    %246 = vector.shape_cast %245 : vector<1x4x96xf32> to vector<4x96xf32>
    %c0_82 = arith.constant 0 : index
    %c0_83 = arith.constant 0 : index
    %c0_84 = arith.constant 0 : index
    %247 = vector.load %arg8[%c0_82, %c0_83, %c0_84] : memref<2x4x32xf32, #tpu.memory_space<vmem>>, vector<1x4x32xf32>
    %248 = vector.shape_cast %247 : vector<1x4x32xf32> to vector<4x32xf32>
    %249 = arith.truncf %248 : vector<4x32xf32> to vector<4x32xbf16>
    %cst_85 = arith.constant dense<0.000000e+00> : vector<4x96xf32>
    %250 = tpu.matmul %249, %5, %cst_85 {dimension_numbers = #tpu.dot_dimension_numbers<[1], [0], [0], [1], [0, 0, 1, 1], [], []>} : vector<4x32xbf16>, vector<32x96xbf16>, vector<4x96xf32> -> vector<4x96xf32>
    %251 = vector.broadcast %9 : vector<1x96xf32> to vector<4x96xf32>
    %252 = arith.addf %250, %251 : vector<4x96xf32>
    %253 = vector.extract_strided_slice %246 {offsets = [0, 0], sizes = [4, 32], strides = [1, 1]} : vector<4x96xf32> to vector<4x32xf32>
    %254 = vector.extract_strided_slice %252 {offsets = [0, 0], sizes = [4, 32], strides = [1, 1]} : vector<4x96xf32> to vector<4x32xf32>
    %255 = arith.addf %253, %254 : vector<4x32xf32>
    %256 = arith.negf %255 : vector<4x32xf32>
    %257 = math.exp %256 : vector<4x32xf32>
    %cst_86 = arith.constant 1.000000e+00 : f32
    %258 = vector.broadcast %cst_86 : f32 to vector<4x32xf32>
    %259 = arith.addf %258, %257 : vector<4x32xf32>
    %260 = arith.divf %258, %259 : vector<4x32xf32>
    %261 = vector.extract_strided_slice %246 {offsets = [0, 32], sizes = [4, 32], strides = [1, 1]} : vector<4x96xf32> to vector<4x32xf32>
    %262 = vector.extract_strided_slice %252 {offsets = [0, 32], sizes = [4, 32], strides = [1, 1]} : vector<4x96xf32> to vector<4x32xf32>
    %263 = arith.addf %261, %262 : vector<4x32xf32>
    %264 = arith.negf %263 : vector<4x32xf32>
    %265 = math.exp %264 : vector<4x32xf32>
    %cst_87 = arith.constant 1.000000e+00 : f32
    %266 = vector.broadcast %cst_87 : f32 to vector<4x32xf32>
    %267 = arith.addf %266, %265 : vector<4x32xf32>
    %268 = arith.divf %266, %267 : vector<4x32xf32>
    %269 = vector.extract_strided_slice %246 {offsets = [0, 64], sizes = [4, 32], strides = [1, 1]} : vector<4x96xf32> to vector<4x32xf32>
    %270 = vector.extract_strided_slice %252 {offsets = [0, 64], sizes = [4, 32], strides = [1, 1]} : vector<4x96xf32> to vector<4x32xf32>
    %271 = arith.mulf %260, %270 : vector<4x32xf32>
    %272 = arith.addf %269, %271 : vector<4x32xf32>
    %273 = math.tanh %272 : vector<4x32xf32>
    %cst_88 = arith.constant 1.000000e+00 : f32
    %274 = vector.broadcast %cst_88 : f32 to vector<4x32xf32>
    %275 = arith.subf %274, %268 : vector<4x32xf32>
    %276 = arith.mulf %275, %273 : vector<4x32xf32>
    %277 = arith.mulf %268, %248 : vector<4x32xf32>
    %278 = arith.addf %276, %277 : vector<4x32xf32>
    %279 = vector.broadcast %241 : i32 to vector<4x1xi32>
    %280 = arith.cmpi slt, %279, %3 : vector<4x1xi32>
    %281 = arith.extui %280 : vector<4x1xi1> to vector<4x1xi32>
    %282 = arith.sitofp %281 : vector<4x1xi32> to vector<4x1xf32>
    %283 = vector.broadcast %282 : vector<4x1xf32> to vector<4x32xf32>
    %284 = arith.mulf %283, %278 : vector<4x32xf32>
    %cst_89 = arith.constant 1.000000e+00 : f32
    %285 = vector.broadcast %cst_89 : f32 to vector<4x1xf32>
    %286 = arith.subf %285, %282 : vector<4x1xf32>
    %287 = vector.broadcast %286 : vector<4x1xf32> to vector<4x32xf32>
    %288 = arith.mulf %287, %248 : vector<4x32xf32>
    %289 = arith.addf %284, %288 : vector<4x32xf32>
    %290 = vector.broadcast %282 : vector<4x1xf32> to vector<4x32xf32>
    %291 = arith.mulf %289, %290 : vector<4x32xf32>
    %292 = arith.index_cast %242 : i32 to index
    %c0_90 = arith.constant 0 : index
    %c0_91 = arith.constant 0 : index
    %293 = vector.load %arg3[%292, %c0_90, %c0_91] : memref<8x4x96xf32, #tpu.memory_space<vmem>>, vector<1x4x96xf32>
    %294 = vector.shape_cast %293 : vector<1x4x96xf32> to vector<4x96xf32>
    %c1_92 = arith.constant 1 : index
    %c0_93 = arith.constant 0 : index
    %c0_94 = arith.constant 0 : index
    %295 = vector.load %arg8[%c1_92, %c0_93, %c0_94] : memref<2x4x32xf32, #tpu.memory_space<vmem>>, vector<1x4x32xf32>
    %296 = vector.shape_cast %295 : vector<1x4x32xf32> to vector<4x32xf32>
    %297 = arith.truncf %296 : vector<4x32xf32> to vector<4x32xbf16>
    %cst_95 = arith.constant dense<0.000000e+00> : vector<4x96xf32>
    %298 = tpu.matmul %297, %7, %cst_95 {dimension_numbers = #tpu.dot_dimension_numbers<[1], [0], [0], [1], [0, 0, 1, 1], [], []>} : vector<4x32xbf16>, vector<32x96xbf16>, vector<4x96xf32> -> vector<4x96xf32>
    %299 = vector.broadcast %11 : vector<1x96xf32> to vector<4x96xf32>
    %300 = arith.addf %298, %299 : vector<4x96xf32>
    %301 = vector.extract_strided_slice %294 {offsets = [0, 0], sizes = [4, 32], strides = [1, 1]} : vector<4x96xf32> to vector<4x32xf32>
    %302 = vector.extract_strided_slice %300 {offsets = [0, 0], sizes = [4, 32], strides = [1, 1]} : vector<4x96xf32> to vector<4x32xf32>
    %303 = arith.addf %301, %302 : vector<4x32xf32>
    %304 = arith.negf %303 : vector<4x32xf32>
    %305 = math.exp %304 : vector<4x32xf32>
    %cst_96 = arith.constant 1.000000e+00 : f32
    %306 = vector.broadcast %cst_96 : f32 to vector<4x32xf32>
    %307 = arith.addf %306, %305 : vector<4x32xf32>
    %308 = arith.divf %306, %307 : vector<4x32xf32>
    %309 = vector.extract_strided_slice %294 {offsets = [0, 32], sizes = [4, 32], strides = [1, 1]} : vector<4x96xf32> to vector<4x32xf32>
    %310 = vector.extract_strided_slice %300 {offsets = [0, 32], sizes = [4, 32], strides = [1, 1]} : vector<4x96xf32> to vector<4x32xf32>
    %311 = arith.addf %309, %310 : vector<4x32xf32>
    %312 = arith.negf %311 : vector<4x32xf32>
    %313 = math.exp %312 : vector<4x32xf32>
    %cst_97 = arith.constant 1.000000e+00 : f32
    %314 = vector.broadcast %cst_97 : f32 to vector<4x32xf32>
    %315 = arith.addf %314, %313 : vector<4x32xf32>
    %316 = arith.divf %314, %315 : vector<4x32xf32>
    %317 = vector.extract_strided_slice %294 {offsets = [0, 64], sizes = [4, 32], strides = [1, 1]} : vector<4x96xf32> to vector<4x32xf32>
    %318 = vector.extract_strided_slice %300 {offsets = [0, 64], sizes = [4, 32], strides = [1, 1]} : vector<4x96xf32> to vector<4x32xf32>
    %319 = arith.mulf %308, %318 : vector<4x32xf32>
    %320 = arith.addf %317, %319 : vector<4x32xf32>
    %321 = math.tanh %320 : vector<4x32xf32>
    %cst_98 = arith.constant 1.000000e+00 : f32
    %322 = vector.broadcast %cst_98 : f32 to vector<4x32xf32>
    %323 = arith.subf %322, %316 : vector<4x32xf32>
    %324 = arith.mulf %323, %321 : vector<4x32xf32>
    %325 = arith.mulf %316, %296 : vector<4x32xf32>
    %326 = arith.addf %324, %325 : vector<4x32xf32>
    %327 = vector.broadcast %243 : i32 to vector<4x1xi32>
    %328 = arith.cmpi slt, %327, %3 : vector<4x1xi32>
    %329 = arith.extui %328 : vector<4x1xi1> to vector<4x1xi32>
    %330 = arith.sitofp %329 : vector<4x1xi32> to vector<4x1xf32>
    %331 = vector.broadcast %330 : vector<4x1xf32> to vector<4x32xf32>
    %332 = arith.mulf %331, %326 : vector<4x32xf32>
    %cst_99 = arith.constant 1.000000e+00 : f32
    %333 = vector.broadcast %cst_99 : f32 to vector<4x1xf32>
    %334 = arith.subf %333, %330 : vector<4x1xf32>
    %335 = vector.broadcast %334 : vector<4x1xf32> to vector<4x32xf32>
    %336 = arith.mulf %335, %296 : vector<4x32xf32>
    %337 = arith.addf %332, %336 : vector<4x32xf32>
    %338 = vector.broadcast %330 : vector<4x1xf32> to vector<4x32xf32>
    %339 = arith.mulf %337, %338 : vector<4x32xf32>
    %c0_100 = arith.constant 0 : index
    %c0_101 = arith.constant 0 : index
    %c0_102 = arith.constant 0 : index
    %340 = vector.load %arg8[%c0_100, %c0_101, %c0_102] : memref<2x4x32xf32, #tpu.memory_space<vmem>>, vector<1x4x32xf32>
    %341 = vector.shape_cast %340 : vector<1x4x32xf32> to vector<4x32xf32>
    %342 = vector.shape_cast %289 : vector<4x32xf32> to vector<1x4x32xf32>
    tpu.vector_store %arg8[%c0_100, %c0_101, %c0_102], %342 {strides = array<i32>} : memref<2x4x32xf32, #tpu.memory_space<vmem>>, vector<1x4x32xf32>,
    %c1_103 = arith.constant 1 : index
    %c0_104 = arith.constant 0 : index
    %c0_105 = arith.constant 0 : index
    %343 = vector.load %arg8[%c1_103, %c0_104, %c0_105] : memref<2x4x32xf32, #tpu.memory_space<vmem>>, vector<1x4x32xf32>
    %344 = vector.shape_cast %343 : vector<1x4x32xf32> to vector<4x32xf32>
    %345 = vector.shape_cast %337 : vector<4x32xf32> to vector<1x4x32xf32>
    tpu.vector_store %arg8[%c1_103, %c0_104, %c0_105], %345 {strides = array<i32>} : memref<2x4x32xf32, #tpu.memory_space<vmem>>, vector<1x4x32xf32>,
    %346 = arith.index_cast %c2_i32 : i32 to index
    %c0_106 = arith.constant 0 : index
    %c0_107 = arith.constant 0 : index
    %347 = vector.load %arg6[%346, %c0_106, %c0_107] : memref<8x4x32xf32, #tpu.memory_space<vmem>>, vector<1x4x32xf32>
    %348 = vector.shape_cast %347 : vector<1x4x32xf32> to vector<4x32xf32>
    %349 = vector.shape_cast %291 : vector<4x32xf32> to vector<1x4x32xf32>
    tpu.vector_store %arg6[%346, %c0_106, %c0_107], %349 {strides = array<i32>} : memref<8x4x32xf32, #tpu.memory_space<vmem>>, vector<1x4x32xf32>,
    %350 = arith.index_cast %242 : i32 to index
    %c0_108 = arith.constant 0 : index
    %c0_109 = arith.constant 0 : index
    %351 = vector.load %arg7[%350, %c0_108, %c0_109] : memref<8x4x32xf32, #tpu.memory_space<vmem>>, vector<1x4x32xf32>
    %352 = vector.shape_cast %351 : vector<1x4x32xf32> to vector<4x32xf32>
    %353 = vector.shape_cast %339 : vector<4x32xf32> to vector<1x4x32xf32>
    tpu.vector_store %arg7[%350, %c0_108, %c0_109], %353 {strides = array<i32>} : memref<8x4x32xf32, #tpu.memory_space<vmem>>, vector<1x4x32xf32>,
    %c3_i32 = arith.constant 3 : i32
    %c8_i32_110 = arith.constant 8 : i32
    %354 = arith.muli %arg0, %c8_i32_110 : i32
    %355 = arith.addi %354, %c3_i32 : i32
    %c7_i32_111 = arith.constant 7 : i32
    %356 = arith.subi %c7_i32_111, %c3_i32 : i32
    %c7_i32_112 = arith.constant 7 : i32
    %357 = arith.subi %c7_i32_112, %355 : i32
    %358 = arith.index_cast %c3_i32 : i32 to index
    %c0_113 = arith.constant 0 : index
    %c0_114 = arith.constant 0 : index
    %359 = vector.load %arg2[%358, %c0_113, %c0_114] : memref<8x4x96xf32, #tpu.memory_space<vmem>>, vector<1x4x96xf32>
    %360 = vector.shape_cast %359 : vector<1x4x96xf32> to vector<4x96xf32>
    %c0_115 = arith.constant 0 : index
    %c0_116 = arith.constant 0 : index
    %c0_117 = arith.constant 0 : index
    %361 = vector.load %arg8[%c0_115, %c0_116, %c0_117] : memref<2x4x32xf32, #tpu.memory_space<vmem>>, vector<1x4x32xf32>
    %362 = vector.shape_cast %361 : vector<1x4x32xf32> to vector<4x32xf32>
    %363 = arith.truncf %362 : vector<4x32xf32> to vector<4x32xbf16>
    %cst_118 = arith.constant dense<0.000000e+00> : vector<4x96xf32>
    %364 = tpu.matmul %363, %5, %cst_118 {dimension_numbers = #tpu.dot_dimension_numbers<[1], [0], [0], [1], [0, 0, 1, 1], [], []>} : vector<4x32xbf16>, vector<32x96xbf16>, vector<4x96xf32> -> vector<4x96xf32>
    %365 = vector.broadcast %9 : vector<1x96xf32> to vector<4x96xf32>
    %366 = arith.addf %364, %365 : vector<4x96xf32>
    %367 = vector.extract_strided_slice %360 {offsets = [0, 0], sizes = [4, 32], strides = [1, 1]} : vector<4x96xf32> to vector<4x32xf32>
    %368 = vector.extract_strided_slice %366 {offsets = [0, 0], sizes = [4, 32], strides = [1, 1]} : vector<4x96xf32> to vector<4x32xf32>
    %369 = arith.addf %367, %368 : vector<4x32xf32>
    %370 = arith.negf %369 : vector<4x32xf32>
    %371 = math.exp %370 : vector<4x32xf32>
    %cst_119 = arith.constant 1.000000e+00 : f32
    %372 = vector.broadcast %cst_119 : f32 to vector<4x32xf32>
    %373 = arith.addf %372, %371 : vector<4x32xf32>
    %374 = arith.divf %372, %373 : vector<4x32xf32>
    %375 = vector.extract_strided_slice %360 {offsets = [0, 32], sizes = [4, 32], strides = [1, 1]} : vector<4x96xf32> to vector<4x32xf32>
    %376 = vector.extract_strided_slice %366 {offsets = [0, 32], sizes = [4, 32], strides = [1, 1]} : vector<4x96xf32> to vector<4x32xf32>
    %377 = arith.addf %375, %376 : vector<4x32xf32>
    %378 = arith.negf %377 : vector<4x32xf32>
    %379 = math.exp %378 : vector<4x32xf32>
    %cst_120 = arith.constant 1.000000e+00 : f32
    %380 = vector.broadcast %cst_120 : f32 to vector<4x32xf32>
    %381 = arith.addf %380, %379 : vector<4x32xf32>
    %382 = arith.divf %380, %381 : vector<4x32xf32>
    %383 = vector.extract_strided_slice %360 {offsets = [0, 64], sizes = [4, 32], strides = [1, 1]} : vector<4x96xf32> to vector<4x32xf32>
    %384 = vector.extract_strided_slice %366 {offsets = [0, 64], sizes = [4, 32], strides = [1, 1]} : vector<4x96xf32> to vector<4x32xf32>
    %385 = arith.mulf %374, %384 : vector<4x32xf32>
    %386 = arith.addf %383, %385 : vector<4x32xf32>
    %387 = math.tanh %386 : vector<4x32xf32>
    %cst_121 = arith.constant 1.000000e+00 : f32
    %388 = vector.broadcast %cst_121 : f32 to vector<4x32xf32>
    %389 = arith.subf %388, %382 : vector<4x32xf32>
    %390 = arith.mulf %389, %387 : vector<4x32xf32>
    %391 = arith.mulf %382, %362 : vector<4x32xf32>
    %392 = arith.addf %390, %391 : vector<4x32xf32>
    %393 = vector.broadcast %355 : i32 to vector<4x1xi32>
    %394 = arith.cmpi slt, %393, %3 : vector<4x1xi32>
    %395 = arith.extui %394 : vector<4x1xi1> to vector<4x1xi32>
    %396 = arith.sitofp %395 : vector<4x1xi32> to vector<4x1xf32>
    %397 = vector.broadcast %396 : vector<4x1xf32> to vector<4x32xf32>
    %398 = arith.mulf %397, %392 : vector<4x32xf32>
    %cst_122 = arith.constant 1.000000e+00 : f32
    %399 = vector.broadcast %cst_122 : f32 to vector<4x1xf32>
    %400 = arith.subf %399, %396 : vector<4x1xf32>
    %401 = vector.broadcast %400 : vector<4x1xf32> to vector<4x32xf32>
    %402 = arith.mulf %401, %362 : vector<4x32xf32>
    %403 = arith.addf %398, %402 : vector<4x32xf32>
    %404 = vector.broadcast %396 : vector<4x1xf32> to vector<4x32xf32>
    %405 = arith.mulf %403, %404 : vector<4x32xf32>
    %406 = arith.index_cast %356 : i32 to index
    %c0_123 = arith.constant 0 : index
    %c0_124 = arith.constant 0 : index
    %407 = vector.load %arg3[%406, %c0_123, %c0_124] : memref<8x4x96xf32, #tpu.memory_space<vmem>>, vector<1x4x96xf32>
    %408 = vector.shape_cast %407 : vector<1x4x96xf32> to vector<4x96xf32>
    %c1_125 = arith.constant 1 : index
    %c0_126 = arith.constant 0 : index
    %c0_127 = arith.constant 0 : index
    %409 = vector.load %arg8[%c1_125, %c0_126, %c0_127] : memref<2x4x32xf32, #tpu.memory_space<vmem>>, vector<1x4x32xf32>
    %410 = vector.shape_cast %409 : vector<1x4x32xf32> to vector<4x32xf32>
    %411 = arith.truncf %410 : vector<4x32xf32> to vector<4x32xbf16>
    %cst_128 = arith.constant dense<0.000000e+00> : vector<4x96xf32>
    %412 = tpu.matmul %411, %7, %cst_128 {dimension_numbers = #tpu.dot_dimension_numbers<[1], [0], [0], [1], [0, 0, 1, 1], [], []>} : vector<4x32xbf16>, vector<32x96xbf16>, vector<4x96xf32> -> vector<4x96xf32>
    %413 = vector.broadcast %11 : vector<1x96xf32> to vector<4x96xf32>
    %414 = arith.addf %412, %413 : vector<4x96xf32>
    %415 = vector.extract_strided_slice %408 {offsets = [0, 0], sizes = [4, 32], strides = [1, 1]} : vector<4x96xf32> to vector<4x32xf32>
    %416 = vector.extract_strided_slice %414 {offsets = [0, 0], sizes = [4, 32], strides = [1, 1]} : vector<4x96xf32> to vector<4x32xf32>
    %417 = arith.addf %415, %416 : vector<4x32xf32>
    %418 = arith.negf %417 : vector<4x32xf32>
    %419 = math.exp %418 : vector<4x32xf32>
    %cst_129 = arith.constant 1.000000e+00 : f32
    %420 = vector.broadcast %cst_129 : f32 to vector<4x32xf32>
    %421 = arith.addf %420, %419 : vector<4x32xf32>
    %422 = arith.divf %420, %421 : vector<4x32xf32>
    %423 = vector.extract_strided_slice %408 {offsets = [0, 32], sizes = [4, 32], strides = [1, 1]} : vector<4x96xf32> to vector<4x32xf32>
    %424 = vector.extract_strided_slice %414 {offsets = [0, 32], sizes = [4, 32], strides = [1, 1]} : vector<4x96xf32> to vector<4x32xf32>
    %425 = arith.addf %423, %424 : vector<4x32xf32>
    %426 = arith.negf %425 : vector<4x32xf32>
    %427 = math.exp %426 : vector<4x32xf32>
    %cst_130 = arith.constant 1.000000e+00 : f32
    %428 = vector.broadcast %cst_130 : f32 to vector<4x32xf32>
    %429 = arith.addf %428, %427 : vector<4x32xf32>
    %430 = arith.divf %428, %429 : vector<4x32xf32>
    %431 = vector.extract_strided_slice %408 {offsets = [0, 64], sizes = [4, 32], strides = [1, 1]} : vector<4x96xf32> to vector<4x32xf32>
    %432 = vector.extract_strided_slice %414 {offsets = [0, 64], sizes = [4, 32], strides = [1, 1]} : vector<4x96xf32> to vector<4x32xf32>
    %433 = arith.mulf %422, %432 : vector<4x32xf32>
    %434 = arith.addf %431, %433 : vector<4x32xf32>
    %435 = math.tanh %434 : vector<4x32xf32>
    %cst_131 = arith.constant 1.000000e+00 : f32
    %436 = vector.broadcast %cst_131 : f32 to vector<4x32xf32>
    %437 = arith.subf %436, %430 : vector<4x32xf32>
    %438 = arith.mulf %437, %435 : vector<4x32xf32>
    %439 = arith.mulf %430, %410 : vector<4x32xf32>
    %440 = arith.addf %438, %439 : vector<4x32xf32>
    %441 = vector.broadcast %357 : i32 to vector<4x1xi32>
    %442 = arith.cmpi slt, %441, %3 : vector<4x1xi32>
    %443 = arith.extui %442 : vector<4x1xi1> to vector<4x1xi32>
    %444 = arith.sitofp %443 : vector<4x1xi32> to vector<4x1xf32>
    %445 = vector.broadcast %444 : vector<4x1xf32> to vector<4x32xf32>
    %446 = arith.mulf %445, %440 : vector<4x32xf32>
    %cst_132 = arith.constant 1.000000e+00 : f32
    %447 = vector.broadcast %cst_132 : f32 to vector<4x1xf32>
    %448 = arith.subf %447, %444 : vector<4x1xf32>
    %449 = vector.broadcast %448 : vector<4x1xf32> to vector<4x32xf32>
    %450 = arith.mulf %449, %410 : vector<4x32xf32>
    %451 = arith.addf %446, %450 : vector<4x32xf32>
    %452 = vector.broadcast %444 : vector<4x1xf32> to vector<4x32xf32>
    %453 = arith.mulf %451, %452 : vector<4x32xf32>
    %c0_133 = arith.constant 0 : index
    %c0_134 = arith.constant 0 : index
    %c0_135 = arith.constant 0 : index
    %454 = vector.load %arg8[%c0_133, %c0_134, %c0_135] : memref<2x4x32xf32, #tpu.memory_space<vmem>>, vector<1x4x32xf32>
    %455 = vector.shape_cast %454 : vector<1x4x32xf32> to vector<4x32xf32>
    %456 = vector.shape_cast %403 : vector<4x32xf32> to vector<1x4x32xf32>
    tpu.vector_store %arg8[%c0_133, %c0_134, %c0_135], %456 {strides = array<i32>} : memref<2x4x32xf32, #tpu.memory_space<vmem>>, vector<1x4x32xf32>,
    %c1_136 = arith.constant 1 : index
    %c0_137 = arith.constant 0 : index
    %c0_138 = arith.constant 0 : index
    %457 = vector.load %arg8[%c1_136, %c0_137, %c0_138] : memref<2x4x32xf32, #tpu.memory_space<vmem>>, vector<1x4x32xf32>
    %458 = vector.shape_cast %457 : vector<1x4x32xf32> to vector<4x32xf32>
    %459 = vector.shape_cast %451 : vector<4x32xf32> to vector<1x4x32xf32>
    tpu.vector_store %arg8[%c1_136, %c0_137, %c0_138], %459 {strides = array<i32>} : memref<2x4x32xf32, #tpu.memory_space<vmem>>, vector<1x4x32xf32>,
    %460 = arith.index_cast %c3_i32 : i32 to index
    %c0_139 = arith.constant 0 : index
    %c0_140 = arith.constant 0 : index
    %461 = vector.load %arg6[%460, %c0_139, %c0_140] : memref<8x4x32xf32, #tpu.memory_space<vmem>>, vector<1x4x32xf32>
    %462 = vector.shape_cast %461 : vector<1x4x32xf32> to vector<4x32xf32>
    %463 = vector.shape_cast %405 : vector<4x32xf32> to vector<1x4x32xf32>
    tpu.vector_store %arg6[%460, %c0_139, %c0_140], %463 {strides = array<i32>} : memref<8x4x32xf32, #tpu.memory_space<vmem>>, vector<1x4x32xf32>,
    %464 = arith.index_cast %356 : i32 to index
    %c0_141 = arith.constant 0 : index
    %c0_142 = arith.constant 0 : index
    %465 = vector.load %arg7[%464, %c0_141, %c0_142] : memref<8x4x32xf32, #tpu.memory_space<vmem>>, vector<1x4x32xf32>
    %466 = vector.shape_cast %465 : vector<1x4x32xf32> to vector<4x32xf32>
    %467 = vector.shape_cast %453 : vector<4x32xf32> to vector<1x4x32xf32>
    tpu.vector_store %arg7[%464, %c0_141, %c0_142], %467 {strides = array<i32>} : memref<8x4x32xf32, #tpu.memory_space<vmem>>, vector<1x4x32xf32>,
    %c4_i32 = arith.constant 4 : i32
    %c8_i32_143 = arith.constant 8 : i32
    %468 = arith.muli %arg0, %c8_i32_143 : i32
    %469 = arith.addi %468, %c4_i32 : i32
    %c7_i32_144 = arith.constant 7 : i32
    %470 = arith.subi %c7_i32_144, %c4_i32 : i32
    %c7_i32_145 = arith.constant 7 : i32
    %471 = arith.subi %c7_i32_145, %469 : i32
    %472 = arith.index_cast %c4_i32 : i32 to index
    %c0_146 = arith.constant 0 : index
    %c0_147 = arith.constant 0 : index
    %473 = vector.load %arg2[%472, %c0_146, %c0_147] : memref<8x4x96xf32, #tpu.memory_space<vmem>>, vector<1x4x96xf32>
    %474 = vector.shape_cast %473 : vector<1x4x96xf32> to vector<4x96xf32>
    %c0_148 = arith.constant 0 : index
    %c0_149 = arith.constant 0 : index
    %c0_150 = arith.constant 0 : index
    %475 = vector.load %arg8[%c0_148, %c0_149, %c0_150] : memref<2x4x32xf32, #tpu.memory_space<vmem>>, vector<1x4x32xf32>
    %476 = vector.shape_cast %475 : vector<1x4x32xf32> to vector<4x32xf32>
    %477 = arith.truncf %476 : vector<4x32xf32> to vector<4x32xbf16>
    %cst_151 = arith.constant dense<0.000000e+00> : vector<4x96xf32>
    %478 = tpu.matmul %477, %5, %cst_151 {dimension_numbers = #tpu.dot_dimension_numbers<[1], [0], [0], [1], [0, 0, 1, 1], [], []>} : vector<4x32xbf16>, vector<32x96xbf16>, vector<4x96xf32> -> vector<4x96xf32>
    %479 = vector.broadcast %9 : vector<1x96xf32> to vector<4x96xf32>
    %480 = arith.addf %478, %479 : vector<4x96xf32>
    %481 = vector.extract_strided_slice %474 {offsets = [0, 0], sizes = [4, 32], strides = [1, 1]} : vector<4x96xf32> to vector<4x32xf32>
    %482 = vector.extract_strided_slice %480 {offsets = [0, 0], sizes = [4, 32], strides = [1, 1]} : vector<4x96xf32> to vector<4x32xf32>
    %483 = arith.addf %481, %482 : vector<4x32xf32>
    %484 = arith.negf %483 : vector<4x32xf32>
    %485 = math.exp %484 : vector<4x32xf32>
    %cst_152 = arith.constant 1.000000e+00 : f32
    %486 = vector.broadcast %cst_152 : f32 to vector<4x32xf32>
    %487 = arith.addf %486, %485 : vector<4x32xf32>
    %488 = arith.divf %486, %487 : vector<4x32xf32>
    %489 = vector.extract_strided_slice %474 {offsets = [0, 32], sizes = [4, 32], strides = [1, 1]} : vector<4x96xf32> to vector<4x32xf32>
    %490 = vector.extract_strided_slice %480 {offsets = [0, 32], sizes = [4, 32], strides = [1, 1]} : vector<4x96xf32> to vector<4x32xf32>
    %491 = arith.addf %489, %490 : vector<4x32xf32>
    %492 = arith.negf %491 : vector<4x32xf32>
    %493 = math.exp %492 : vector<4x32xf32>
    %cst_153 = arith.constant 1.000000e+00 : f32
    %494 = vector.broadcast %cst_153 : f32 to vector<4x32xf32>
    %495 = arith.addf %494, %493 : vector<4x32xf32>
    %496 = arith.divf %494, %495 : vector<4x32xf32>
    %497 = vector.extract_strided_slice %474 {offsets = [0, 64], sizes = [4, 32], strides = [1, 1]} : vector<4x96xf32> to vector<4x32xf32>
    %498 = vector.extract_strided_slice %480 {offsets = [0, 64], sizes = [4, 32], strides = [1, 1]} : vector<4x96xf32> to vector<4x32xf32>
    %499 = arith.mulf %488, %498 : vector<4x32xf32>
    %500 = arith.addf %497, %499 : vector<4x32xf32>
    %501 = math.tanh %500 : vector<4x32xf32>
    %cst_154 = arith.constant 1.000000e+00 : f32
    %502 = vector.broadcast %cst_154 : f32 to vector<4x32xf32>
    %503 = arith.subf %502, %496 : vector<4x32xf32>
    %504 = arith.mulf %503, %501 : vector<4x32xf32>
    %505 = arith.mulf %496, %476 : vector<4x32xf32>
    %506 = arith.addf %504, %505 : vector<4x32xf32>
    %507 = vector.broadcast %469 : i32 to vector<4x1xi32>
    %508 = arith.cmpi slt, %507, %3 : vector<4x1xi32>
    %509 = arith.extui %508 : vector<4x1xi1> to vector<4x1xi32>
    %510 = arith.sitofp %509 : vector<4x1xi32> to vector<4x1xf32>
    %511 = vector.broadcast %510 : vector<4x1xf32> to vector<4x32xf32>
    %512 = arith.mulf %511, %506 : vector<4x32xf32>
    %cst_155 = arith.constant 1.000000e+00 : f32
    %513 = vector.broadcast %cst_155 : f32 to vector<4x1xf32>
    %514 = arith.subf %513, %510 : vector<4x1xf32>
    %515 = vector.broadcast %514 : vector<4x1xf32> to vector<4x32xf32>
    %516 = arith.mulf %515, %476 : vector<4x32xf32>
    %517 = arith.addf %512, %516 : vector<4x32xf32>
    %518 = vector.broadcast %510 : vector<4x1xf32> to vector<4x32xf32>
    %519 = arith.mulf %517, %518 : vector<4x32xf32>
    %520 = arith.index_cast %470 : i32 to index
    %c0_156 = arith.constant 0 : index
    %c0_157 = arith.constant 0 : index
    %521 = vector.load %arg3[%520, %c0_156, %c0_157] : memref<8x4x96xf32, #tpu.memory_space<vmem>>, vector<1x4x96xf32>
    %522 = vector.shape_cast %521 : vector<1x4x96xf32> to vector<4x96xf32>
    %c1_158 = arith.constant 1 : index
    %c0_159 = arith.constant 0 : index
    %c0_160 = arith.constant 0 : index
    %523 = vector.load %arg8[%c1_158, %c0_159, %c0_160] : memref<2x4x32xf32, #tpu.memory_space<vmem>>, vector<1x4x32xf32>
    %524 = vector.shape_cast %523 : vector<1x4x32xf32> to vector<4x32xf32>
    %525 = arith.truncf %524 : vector<4x32xf32> to vector<4x32xbf16>
    %cst_161 = arith.constant dense<0.000000e+00> : vector<4x96xf32>
    %526 = tpu.matmul %525, %7, %cst_161 {dimension_numbers = #tpu.dot_dimension_numbers<[1], [0], [0], [1], [0, 0, 1, 1], [], []>} : vector<4x32xbf16>, vector<32x96xbf16>, vector<4x96xf32> -> vector<4x96xf32>
    %527 = vector.broadcast %11 : vector<1x96xf32> to vector<4x96xf32>
    %528 = arith.addf %526, %527 : vector<4x96xf32>
    %529 = vector.extract_strided_slice %522 {offsets = [0, 0], sizes = [4, 32], strides = [1, 1]} : vector<4x96xf32> to vector<4x32xf32>
    %530 = vector.extract_strided_slice %528 {offsets = [0, 0], sizes = [4, 32], strides = [1, 1]} : vector<4x96xf32> to vector<4x32xf32>
    %531 = arith.addf %529, %530 : vector<4x32xf32>
    %532 = arith.negf %531 : vector<4x32xf32>
    %533 = math.exp %532 : vector<4x32xf32>
    %cst_162 = arith.constant 1.000000e+00 : f32
    %534 = vector.broadcast %cst_162 : f32 to vector<4x32xf32>
    %535 = arith.addf %534, %533 : vector<4x32xf32>
    %536 = arith.divf %534, %535 : vector<4x32xf32>
    %537 = vector.extract_strided_slice %522 {offsets = [0, 32], sizes = [4, 32], strides = [1, 1]} : vector<4x96xf32> to vector<4x32xf32>
    %538 = vector.extract_strided_slice %528 {offsets = [0, 32], sizes = [4, 32], strides = [1, 1]} : vector<4x96xf32> to vector<4x32xf32>
    %539 = arith.addf %537, %538 : vector<4x32xf32>
    %540 = arith.negf %539 : vector<4x32xf32>
    %541 = math.exp %540 : vector<4x32xf32>
    %cst_163 = arith.constant 1.000000e+00 : f32
    %542 = vector.broadcast %cst_163 : f32 to vector<4x32xf32>
    %543 = arith.addf %542, %541 : vector<4x32xf32>
    %544 = arith.divf %542, %543 : vector<4x32xf32>
    %545 = vector.extract_strided_slice %522 {offsets = [0, 64], sizes = [4, 32], strides = [1, 1]} : vector<4x96xf32> to vector<4x32xf32>
    %546 = vector.extract_strided_slice %528 {offsets = [0, 64], sizes = [4, 32], strides = [1, 1]} : vector<4x96xf32> to vector<4x32xf32>
    %547 = arith.mulf %536, %546 : vector<4x32xf32>
    %548 = arith.addf %545, %547 : vector<4x32xf32>
    %549 = math.tanh %548 : vector<4x32xf32>
    %cst_164 = arith.constant 1.000000e+00 : f32
    %550 = vector.broadcast %cst_164 : f32 to vector<4x32xf32>
    %551 = arith.subf %550, %544 : vector<4x32xf32>
    %552 = arith.mulf %551, %549 : vector<4x32xf32>
    %553 = arith.mulf %544, %524 : vector<4x32xf32>
    %554 = arith.addf %552, %553 : vector<4x32xf32>
    %555 = vector.broadcast %471 : i32 to vector<4x1xi32>
    %556 = arith.cmpi slt, %555, %3 : vector<4x1xi32>
    %557 = arith.extui %556 : vector<4x1xi1> to vector<4x1xi32>
    %558 = arith.sitofp %557 : vector<4x1xi32> to vector<4x1xf32>
    %559 = vector.broadcast %558 : vector<4x1xf32> to vector<4x32xf32>
    %560 = arith.mulf %559, %554 : vector<4x32xf32>
    %cst_165 = arith.constant 1.000000e+00 : f32
    %561 = vector.broadcast %cst_165 : f32 to vector<4x1xf32>
    %562 = arith.subf %561, %558 : vector<4x1xf32>
    %563 = vector.broadcast %562 : vector<4x1xf32> to vector<4x32xf32>
    %564 = arith.mulf %563, %524 : vector<4x32xf32>
    %565 = arith.addf %560, %564 : vector<4x32xf32>
    %566 = vector.broadcast %558 : vector<4x1xf32> to vector<4x32xf32>
    %567 = arith.mulf %565, %566 : vector<4x32xf32>
    %c0_166 = arith.constant 0 : index
    %c0_167 = arith.constant 0 : index
    %c0_168 = arith.constant 0 : index
    %568 = vector.load %arg8[%c0_166, %c0_167, %c0_168] : memref<2x4x32xf32, #tpu.memory_space<vmem>>, vector<1x4x32xf32>
    %569 = vector.shape_cast %568 : vector<1x4x32xf32> to vector<4x32xf32>
    %570 = vector.shape_cast %517 : vector<4x32xf32> to vector<1x4x32xf32>
    tpu.vector_store %arg8[%c0_166, %c0_167, %c0_168], %570 {strides = array<i32>} : memref<2x4x32xf32, #tpu.memory_space<vmem>>, vector<1x4x32xf32>,
    %c1_169 = arith.constant 1 : index
    %c0_170 = arith.constant 0 : index
    %c0_171 = arith.constant 0 : index
    %571 = vector.load %arg8[%c1_169, %c0_170, %c0_171] : memref<2x4x32xf32, #tpu.memory_space<vmem>>, vector<1x4x32xf32>
    %572 = vector.shape_cast %571 : vector<1x4x32xf32> to vector<4x32xf32>
    %573 = vector.shape_cast %565 : vector<4x32xf32> to vector<1x4x32xf32>
    tpu.vector_store %arg8[%c1_169, %c0_170, %c0_171], %573 {strides = array<i32>} : memref<2x4x32xf32, #tpu.memory_space<vmem>>, vector<1x4x32xf32>,
    %574 = arith.index_cast %c4_i32 : i32 to index
    %c0_172 = arith.constant 0 : index
    %c0_173 = arith.constant 0 : index
    %575 = vector.load %arg6[%574, %c0_172, %c0_173] : memref<8x4x32xf32, #tpu.memory_space<vmem>>, vector<1x4x32xf32>
    %576 = vector.shape_cast %575 : vector<1x4x32xf32> to vector<4x32xf32>
    %577 = vector.shape_cast %519 : vector<4x32xf32> to vector<1x4x32xf32>
    tpu.vector_store %arg6[%574, %c0_172, %c0_173], %577 {strides = array<i32>} : memref<8x4x32xf32, #tpu.memory_space<vmem>>, vector<1x4x32xf32>,
    %578 = arith.index_cast %470 : i32 to index
    %c0_174 = arith.constant 0 : index
    %c0_175 = arith.constant 0 : index
    %579 = vector.load %arg7[%578, %c0_174, %c0_175] : memref<8x4x32xf32, #tpu.memory_space<vmem>>, vector<1x4x32xf32>
    %580 = vector.shape_cast %579 : vector<1x4x32xf32> to vector<4x32xf32>
    %581 = vector.shape_cast %567 : vector<4x32xf32> to vector<1x4x32xf32>
    tpu.vector_store %arg7[%578, %c0_174, %c0_175], %581 {strides = array<i32>} : memref<8x4x32xf32, #tpu.memory_space<vmem>>, vector<1x4x32xf32>,
    %c5_i32 = arith.constant 5 : i32
    %c8_i32_176 = arith.constant 8 : i32
    %582 = arith.muli %arg0, %c8_i32_176 : i32
    %583 = arith.addi %582, %c5_i32 : i32
    %c7_i32_177 = arith.constant 7 : i32
    %584 = arith.subi %c7_i32_177, %c5_i32 : i32
    %c7_i32_178 = arith.constant 7 : i32
    %585 = arith.subi %c7_i32_178, %583 : i32
    %586 = arith.index_cast %c5_i32 : i32 to index
    %c0_179 = arith.constant 0 : index
    %c0_180 = arith.constant 0 : index
    %587 = vector.load %arg2[%586, %c0_179, %c0_180] : memref<8x4x96xf32, #tpu.memory_space<vmem>>, vector<1x4x96xf32>
    %588 = vector.shape_cast %587 : vector<1x4x96xf32> to vector<4x96xf32>
    %c0_181 = arith.constant 0 : index
    %c0_182 = arith.constant 0 : index
    %c0_183 = arith.constant 0 : index
    %589 = vector.load %arg8[%c0_181, %c0_182, %c0_183] : memref<2x4x32xf32, #tpu.memory_space<vmem>>, vector<1x4x32xf32>
    %590 = vector.shape_cast %589 : vector<1x4x32xf32> to vector<4x32xf32>
    %591 = arith.truncf %590 : vector<4x32xf32> to vector<4x32xbf16>
    %cst_184 = arith.constant dense<0.000000e+00> : vector<4x96xf32>
    %592 = tpu.matmul %591, %5, %cst_184 {dimension_numbers = #tpu.dot_dimension_numbers<[1], [0], [0], [1], [0, 0, 1, 1], [], []>} : vector<4x32xbf16>, vector<32x96xbf16>, vector<4x96xf32> -> vector<4x96xf32>
    %593 = vector.broadcast %9 : vector<1x96xf32> to vector<4x96xf32>
    %594 = arith.addf %592, %593 : vector<4x96xf32>
    %595 = vector.extract_strided_slice %588 {offsets = [0, 0], sizes = [4, 32], strides = [1, 1]} : vector<4x96xf32> to vector<4x32xf32>
    %596 = vector.extract_strided_slice %594 {offsets = [0, 0], sizes = [4, 32], strides = [1, 1]} : vector<4x96xf32> to vector<4x32xf32>
    %597 = arith.addf %595, %596 : vector<4x32xf32>
    %598 = arith.negf %597 : vector<4x32xf32>
    %599 = math.exp %598 : vector<4x32xf32>
    %cst_185 = arith.constant 1.000000e+00 : f32
    %600 = vector.broadcast %cst_185 : f32 to vector<4x32xf32>
    %601 = arith.addf %600, %599 : vector<4x32xf32>
    %602 = arith.divf %600, %601 : vector<4x32xf32>
    %603 = vector.extract_strided_slice %588 {offsets = [0, 32], sizes = [4, 32], strides = [1, 1]} : vector<4x96xf32> to vector<4x32xf32>
    %604 = vector.extract_strided_slice %594 {offsets = [0, 32], sizes = [4, 32], strides = [1, 1]} : vector<4x96xf32> to vector<4x32xf32>
    %605 = arith.addf %603, %604 : vector<4x32xf32>
    %606 = arith.negf %605 : vector<4x32xf32>
    %607 = math.exp %606 : vector<4x32xf32>
    %cst_186 = arith.constant 1.000000e+00 : f32
    %608 = vector.broadcast %cst_186 : f32 to vector<4x32xf32>
    %609 = arith.addf %608, %607 : vector<4x32xf32>
    %610 = arith.divf %608, %609 : vector<4x32xf32>
    %611 = vector.extract_strided_slice %588 {offsets = [0, 64], sizes = [4, 32], strides = [1, 1]} : vector<4x96xf32> to vector<4x32xf32>
    %612 = vector.extract_strided_slice %594 {offsets = [0, 64], sizes = [4, 32], strides = [1, 1]} : vector<4x96xf32> to vector<4x32xf32>
    %613 = arith.mulf %602, %612 : vector<4x32xf32>
    %614 = arith.addf %611, %613 : vector<4x32xf32>
    %615 = math.tanh %614 : vector<4x32xf32>
    %cst_187 = arith.constant 1.000000e+00 : f32
    %616 = vector.broadcast %cst_187 : f32 to vector<4x32xf32>
    %617 = arith.subf %616, %610 : vector<4x32xf32>
    %618 = arith.mulf %617, %615 : vector<4x32xf32>
    %619 = arith.mulf %610, %590 : vector<4x32xf32>
    %620 = arith.addf %618, %619 : vector<4x32xf32>
    %621 = vector.broadcast %583 : i32 to vector<4x1xi32>
    %622 = arith.cmpi slt, %621, %3 : vector<4x1xi32>
    %623 = arith.extui %622 : vector<4x1xi1> to vector<4x1xi32>
    %624 = arith.sitofp %623 : vector<4x1xi32> to vector<4x1xf32>
    %625 = vector.broadcast %624 : vector<4x1xf32> to vector<4x32xf32>
    %626 = arith.mulf %625, %620 : vector<4x32xf32>
    %cst_188 = arith.constant 1.000000e+00 : f32
    %627 = vector.broadcast %cst_188 : f32 to vector<4x1xf32>
    %628 = arith.subf %627, %624 : vector<4x1xf32>
    %629 = vector.broadcast %628 : vector<4x1xf32> to vector<4x32xf32>
    %630 = arith.mulf %629, %590 : vector<4x32xf32>
    %631 = arith.addf %626, %630 : vector<4x32xf32>
    %632 = vector.broadcast %624 : vector<4x1xf32> to vector<4x32xf32>
    %633 = arith.mulf %631, %632 : vector<4x32xf32>
    %634 = arith.index_cast %584 : i32 to index
    %c0_189 = arith.constant 0 : index
    %c0_190 = arith.constant 0 : index
    %635 = vector.load %arg3[%634, %c0_189, %c0_190] : memref<8x4x96xf32, #tpu.memory_space<vmem>>, vector<1x4x96xf32>
    %636 = vector.shape_cast %635 : vector<1x4x96xf32> to vector<4x96xf32>
    %c1_191 = arith.constant 1 : index
    %c0_192 = arith.constant 0 : index
    %c0_193 = arith.constant 0 : index
    %637 = vector.load %arg8[%c1_191, %c0_192, %c0_193] : memref<2x4x32xf32, #tpu.memory_space<vmem>>, vector<1x4x32xf32>
    %638 = vector.shape_cast %637 : vector<1x4x32xf32> to vector<4x32xf32>
    %639 = arith.truncf %638 : vector<4x32xf32> to vector<4x32xbf16>
    %cst_194 = arith.constant dense<0.000000e+00> : vector<4x96xf32>
    %640 = tpu.matmul %639, %7, %cst_194 {dimension_numbers = #tpu.dot_dimension_numbers<[1], [0], [0], [1], [0, 0, 1, 1], [], []>} : vector<4x32xbf16>, vector<32x96xbf16>, vector<4x96xf32> -> vector<4x96xf32>
    %641 = vector.broadcast %11 : vector<1x96xf32> to vector<4x96xf32>
    %642 = arith.addf %640, %641 : vector<4x96xf32>
    %643 = vector.extract_strided_slice %636 {offsets = [0, 0], sizes = [4, 32], strides = [1, 1]} : vector<4x96xf32> to vector<4x32xf32>
    %644 = vector.extract_strided_slice %642 {offsets = [0, 0], sizes = [4, 32], strides = [1, 1]} : vector<4x96xf32> to vector<4x32xf32>
    %645 = arith.addf %643, %644 : vector<4x32xf32>
    %646 = arith.negf %645 : vector<4x32xf32>
    %647 = math.exp %646 : vector<4x32xf32>
    %cst_195 = arith.constant 1.000000e+00 : f32
    %648 = vector.broadcast %cst_195 : f32 to vector<4x32xf32>
    %649 = arith.addf %648, %647 : vector<4x32xf32>
    %650 = arith.divf %648, %649 : vector<4x32xf32>
    %651 = vector.extract_strided_slice %636 {offsets = [0, 32], sizes = [4, 32], strides = [1, 1]} : vector<4x96xf32> to vector<4x32xf32>
    %652 = vector.extract_strided_slice %642 {offsets = [0, 32], sizes = [4, 32], strides = [1, 1]} : vector<4x96xf32> to vector<4x32xf32>
    %653 = arith.addf %651, %652 : vector<4x32xf32>
    %654 = arith.negf %653 : vector<4x32xf32>
    %655 = math.exp %654 : vector<4x32xf32>
    %cst_196 = arith.constant 1.000000e+00 : f32
    %656 = vector.broadcast %cst_196 : f32 to vector<4x32xf32>
    %657 = arith.addf %656, %655 : vector<4x32xf32>
    %658 = arith.divf %656, %657 : vector<4x32xf32>
    %659 = vector.extract_strided_slice %636 {offsets = [0, 64], sizes = [4, 32], strides = [1, 1]} : vector<4x96xf32> to vector<4x32xf32>
    %660 = vector.extract_strided_slice %642 {offsets = [0, 64], sizes = [4, 32], strides = [1, 1]} : vector<4x96xf32> to vector<4x32xf32>
    %661 = arith.mulf %650, %660 : vector<4x32xf32>
    %662 = arith.addf %659, %661 : vector<4x32xf32>
    %663 = math.tanh %662 : vector<4x32xf32>
    %cst_197 = arith.constant 1.000000e+00 : f32
    %664 = vector.broadcast %cst_197 : f32 to vector<4x32xf32>
    %665 = arith.subf %664, %658 : vector<4x32xf32>
    %666 = arith.mulf %665, %663 : vector<4x32xf32>
    %667 = arith.mulf %658, %638 : vector<4x32xf32>
    %668 = arith.addf %666, %667 : vector<4x32xf32>
    %669 = vector.broadcast %585 : i32 to vector<4x1xi32>
    %670 = arith.cmpi slt, %669, %3 : vector<4x1xi32>
    %671 = arith.extui %670 : vector<4x1xi1> to vector<4x1xi32>
    %672 = arith.sitofp %671 : vector<4x1xi32> to vector<4x1xf32>
    %673 = vector.broadcast %672 : vector<4x1xf32> to vector<4x32xf32>
    %674 = arith.mulf %673, %668 : vector<4x32xf32>
    %cst_198 = arith.constant 1.000000e+00 : f32
    %675 = vector.broadcast %cst_198 : f32 to vector<4x1xf32>
    %676 = arith.subf %675, %672 : vector<4x1xf32>
    %677 = vector.broadcast %676 : vector<4x1xf32> to vector<4x32xf32>
    %678 = arith.mulf %677, %638 : vector<4x32xf32>
    %679 = arith.addf %674, %678 : vector<4x32xf32>
    %680 = vector.broadcast %672 : vector<4x1xf32> to vector<4x32xf32>
    %681 = arith.mulf %679, %680 : vector<4x32xf32>
    %c0_199 = arith.constant 0 : index
    %c0_200 = arith.constant 0 : index
    %c0_201 = arith.constant 0 : index
    %682 = vector.load %arg8[%c0_199, %c0_200, %c0_201] : memref<2x4x32xf32, #tpu.memory_space<vmem>>, vector<1x4x32xf32>
    %683 = vector.shape_cast %682 : vector<1x4x32xf32> to vector<4x32xf32>
    %684 = vector.shape_cast %631 : vector<4x32xf32> to vector<1x4x32xf32>
    tpu.vector_store %arg8[%c0_199, %c0_200, %c0_201], %684 {strides = array<i32>} : memref<2x4x32xf32, #tpu.memory_space<vmem>>, vector<1x4x32xf32>,
    %c1_202 = arith.constant 1 : index
    %c0_203 = arith.constant 0 : index
    %c0_204 = arith.constant 0 : index
    %685 = vector.load %arg8[%c1_202, %c0_203, %c0_204] : memref<2x4x32xf32, #tpu.memory_space<vmem>>, vector<1x4x32xf32>
    %686 = vector.shape_cast %685 : vector<1x4x32xf32> to vector<4x32xf32>
    %687 = vector.shape_cast %679 : vector<4x32xf32> to vector<1x4x32xf32>
    tpu.vector_store %arg8[%c1_202, %c0_203, %c0_204], %687 {strides = array<i32>} : memref<2x4x32xf32, #tpu.memory_space<vmem>>, vector<1x4x32xf32>,
    %688 = arith.index_cast %c5_i32 : i32 to index
    %c0_205 = arith.constant 0 : index
    %c0_206 = arith.constant 0 : index
    %689 = vector.load %arg6[%688, %c0_205, %c0_206] : memref<8x4x32xf32, #tpu.memory_space<vmem>>, vector<1x4x32xf32>
    %690 = vector.shape_cast %689 : vector<1x4x32xf32> to vector<4x32xf32>
    %691 = vector.shape_cast %633 : vector<4x32xf32> to vector<1x4x32xf32>
    tpu.vector_store %arg6[%688, %c0_205, %c0_206], %691 {strides = array<i32>} : memref<8x4x32xf32, #tpu.memory_space<vmem>>, vector<1x4x32xf32>,
    %692 = arith.index_cast %584 : i32 to index
    %c0_207 = arith.constant 0 : index
    %c0_208 = arith.constant 0 : index
    %693 = vector.load %arg7[%692, %c0_207, %c0_208] : memref<8x4x32xf32, #tpu.memory_space<vmem>>, vector<1x4x32xf32>
    %694 = vector.shape_cast %693 : vector<1x4x32xf32> to vector<4x32xf32>
    %695 = vector.shape_cast %681 : vector<4x32xf32> to vector<1x4x32xf32>
    tpu.vector_store %arg7[%692, %c0_207, %c0_208], %695 {strides = array<i32>} : memref<8x4x32xf32, #tpu.memory_space<vmem>>, vector<1x4x32xf32>,
    %c6_i32 = arith.constant 6 : i32
    %c8_i32_209 = arith.constant 8 : i32
    %696 = arith.muli %arg0, %c8_i32_209 : i32
    %697 = arith.addi %696, %c6_i32 : i32
    %c7_i32_210 = arith.constant 7 : i32
    %698 = arith.subi %c7_i32_210, %c6_i32 : i32
    %c7_i32_211 = arith.constant 7 : i32
    %699 = arith.subi %c7_i32_211, %697 : i32
    %700 = arith.index_cast %c6_i32 : i32 to index
    %c0_212 = arith.constant 0 : index
    %c0_213 = arith.constant 0 : index
    %701 = vector.load %arg2[%700, %c0_212, %c0_213] : memref<8x4x96xf32, #tpu.memory_space<vmem>>, vector<1x4x96xf32>
    %702 = vector.shape_cast %701 : vector<1x4x96xf32> to vector<4x96xf32>
    %c0_214 = arith.constant 0 : index
    %c0_215 = arith.constant 0 : index
    %c0_216 = arith.constant 0 : index
    %703 = vector.load %arg8[%c0_214, %c0_215, %c0_216] : memref<2x4x32xf32, #tpu.memory_space<vmem>>, vector<1x4x32xf32>
    %704 = vector.shape_cast %703 : vector<1x4x32xf32> to vector<4x32xf32>
    %705 = arith.truncf %704 : vector<4x32xf32> to vector<4x32xbf16>
    %cst_217 = arith.constant dense<0.000000e+00> : vector<4x96xf32>
    %706 = tpu.matmul %705, %5, %cst_217 {dimension_numbers = #tpu.dot_dimension_numbers<[1], [0], [0], [1], [0, 0, 1, 1], [], []>} : vector<4x32xbf16>, vector<32x96xbf16>, vector<4x96xf32> -> vector<4x96xf32>
    %707 = vector.broadcast %9 : vector<1x96xf32> to vector<4x96xf32>
    %708 = arith.addf %706, %707 : vector<4x96xf32>
    %709 = vector.extract_strided_slice %702 {offsets = [0, 0], sizes = [4, 32], strides = [1, 1]} : vector<4x96xf32> to vector<4x32xf32>
    %710 = vector.extract_strided_slice %708 {offsets = [0, 0], sizes = [4, 32], strides = [1, 1]} : vector<4x96xf32> to vector<4x32xf32>
    %711 = arith.addf %709, %710 : vector<4x32xf32>
    %712 = arith.negf %711 : vector<4x32xf32>
    %713 = math.exp %712 : vector<4x32xf32>
    %cst_218 = arith.constant 1.000000e+00 : f32
    %714 = vector.broadcast %cst_218 : f32 to vector<4x32xf32>
    %715 = arith.addf %714, %713 : vector<4x32xf32>
    %716 = arith.divf %714, %715 : vector<4x32xf32>
    %717 = vector.extract_strided_slice %702 {offsets = [0, 32], sizes = [4, 32], strides = [1, 1]} : vector<4x96xf32> to vector<4x32xf32>
    %718 = vector.extract_strided_slice %708 {offsets = [0, 32], sizes = [4, 32], strides = [1, 1]} : vector<4x96xf32> to vector<4x32xf32>
    %719 = arith.addf %717, %718 : vector<4x32xf32>
    %720 = arith.negf %719 : vector<4x32xf32>
    %721 = math.exp %720 : vector<4x32xf32>
    %cst_219 = arith.constant 1.000000e+00 : f32
    %722 = vector.broadcast %cst_219 : f32 to vector<4x32xf32>
    %723 = arith.addf %722, %721 : vector<4x32xf32>
    %724 = arith.divf %722, %723 : vector<4x32xf32>
    %725 = vector.extract_strided_slice %702 {offsets = [0, 64], sizes = [4, 32], strides = [1, 1]} : vector<4x96xf32> to vector<4x32xf32>
    %726 = vector.extract_strided_slice %708 {offsets = [0, 64], sizes = [4, 32], strides = [1, 1]} : vector<4x96xf32> to vector<4x32xf32>
    %727 = arith.mulf %716, %726 : vector<4x32xf32>
    %728 = arith.addf %725, %727 : vector<4x32xf32>
    %729 = math.tanh %728 : vector<4x32xf32>
    %cst_220 = arith.constant 1.000000e+00 : f32
    %730 = vector.broadcast %cst_220 : f32 to vector<4x32xf32>
    %731 = arith.subf %730, %724 : vector<4x32xf32>
    %732 = arith.mulf %731, %729 : vector<4x32xf32>
    %733 = arith.mulf %724, %704 : vector<4x32xf32>
    %734 = arith.addf %732, %733 : vector<4x32xf32>
    %735 = vector.broadcast %697 : i32 to vector<4x1xi32>
    %736 = arith.cmpi slt, %735, %3 : vector<4x1xi32>
    %737 = arith.extui %736 : vector<4x1xi1> to vector<4x1xi32>
    %738 = arith.sitofp %737 : vector<4x1xi32> to vector<4x1xf32>
    %739 = vector.broadcast %738 : vector<4x1xf32> to vector<4x32xf32>
    %740 = arith.mulf %739, %734 : vector<4x32xf32>
    %cst_221 = arith.constant 1.000000e+00 : f32
    %741 = vector.broadcast %cst_221 : f32 to vector<4x1xf32>
    %742 = arith.subf %741, %738 : vector<4x1xf32>
    %743 = vector.broadcast %742 : vector<4x1xf32> to vector<4x32xf32>
    %744 = arith.mulf %743, %704 : vector<4x32xf32>
    %745 = arith.addf %740, %744 : vector<4x32xf32>
    %746 = vector.broadcast %738 : vector<4x1xf32> to vector<4x32xf32>
    %747 = arith.mulf %745, %746 : vector<4x32xf32>
    %748 = arith.index_cast %698 : i32 to index
    %c0_222 = arith.constant 0 : index
    %c0_223 = arith.constant 0 : index
    %749 = vector.load %arg3[%748, %c0_222, %c0_223] : memref<8x4x96xf32, #tpu.memory_space<vmem>>, vector<1x4x96xf32>
    %750 = vector.shape_cast %749 : vector<1x4x96xf32> to vector<4x96xf32>
    %c1_224 = arith.constant 1 : index
    %c0_225 = arith.constant 0 : index
    %c0_226 = arith.constant 0 : index
    %751 = vector.load %arg8[%c1_224, %c0_225, %c0_226] : memref<2x4x32xf32, #tpu.memory_space<vmem>>, vector<1x4x32xf32>
    %752 = vector.shape_cast %751 : vector<1x4x32xf32> to vector<4x32xf32>
    %753 = arith.truncf %752 : vector<4x32xf32> to vector<4x32xbf16>
    %cst_227 = arith.constant dense<0.000000e+00> : vector<4x96xf32>
    %754 = tpu.matmul %753, %7, %cst_227 {dimension_numbers = #tpu.dot_dimension_numbers<[1], [0], [0], [1], [0, 0, 1, 1], [], []>} : vector<4x32xbf16>, vector<32x96xbf16>, vector<4x96xf32> -> vector<4x96xf32>
    %755 = vector.broadcast %11 : vector<1x96xf32> to vector<4x96xf32>
    %756 = arith.addf %754, %755 : vector<4x96xf32>
    %757 = vector.extract_strided_slice %750 {offsets = [0, 0], sizes = [4, 32], strides = [1, 1]} : vector<4x96xf32> to vector<4x32xf32>
    %758 = vector.extract_strided_slice %756 {offsets = [0, 0], sizes = [4, 32], strides = [1, 1]} : vector<4x96xf32> to vector<4x32xf32>
    %759 = arith.addf %757, %758 : vector<4x32xf32>
    %760 = arith.negf %759 : vector<4x32xf32>
    %761 = math.exp %760 : vector<4x32xf32>
    %cst_228 = arith.constant 1.000000e+00 : f32
    %762 = vector.broadcast %cst_228 : f32 to vector<4x32xf32>
    %763 = arith.addf %762, %761 : vector<4x32xf32>
    %764 = arith.divf %762, %763 : vector<4x32xf32>
    %765 = vector.extract_strided_slice %750 {offsets = [0, 32], sizes = [4, 32], strides = [1, 1]} : vector<4x96xf32> to vector<4x32xf32>
    %766 = vector.extract_strided_slice %756 {offsets = [0, 32], sizes = [4, 32], strides = [1, 1]} : vector<4x96xf32> to vector<4x32xf32>
    %767 = arith.addf %765, %766 : vector<4x32xf32>
    %768 = arith.negf %767 : vector<4x32xf32>
    %769 = math.exp %768 : vector<4x32xf32>
    %cst_229 = arith.constant 1.000000e+00 : f32
    %770 = vector.broadcast %cst_229 : f32 to vector<4x32xf32>
    %771 = arith.addf %770, %769 : vector<4x32xf32>
    %772 = arith.divf %770, %771 : vector<4x32xf32>
    %773 = vector.extract_strided_slice %750 {offsets = [0, 64], sizes = [4, 32], strides = [1, 1]} : vector<4x96xf32> to vector<4x32xf32>
    %774 = vector.extract_strided_slice %756 {offsets = [0, 64], sizes = [4, 32], strides = [1, 1]} : vector<4x96xf32> to vector<4x32xf32>
    %775 = arith.mulf %764, %774 : vector<4x32xf32>
    %776 = arith.addf %773, %775 : vector<4x32xf32>
    %777 = math.tanh %776 : vector<4x32xf32>
    %cst_230 = arith.constant 1.000000e+00 : f32
    %778 = vector.broadcast %cst_230 : f32 to vector<4x32xf32>
    %779 = arith.subf %778, %772 : vector<4x32xf32>
    %780 = arith.mulf %779, %777 : vector<4x32xf32>
    %781 = arith.mulf %772, %752 : vector<4x32xf32>
    %782 = arith.addf %780, %781 : vector<4x32xf32>
    %783 = vector.broadcast %699 : i32 to vector<4x1xi32>
    %784 = arith.cmpi slt, %783, %3 : vector<4x1xi32>
    %785 = arith.extui %784 : vector<4x1xi1> to vector<4x1xi32>
    %786 = arith.sitofp %785 : vector<4x1xi32> to vector<4x1xf32>
    %787 = vector.broadcast %786 : vector<4x1xf32> to vector<4x32xf32>
    %788 = arith.mulf %787, %782 : vector<4x32xf32>
    %cst_231 = arith.constant 1.000000e+00 : f32
    %789 = vector.broadcast %cst_231 : f32 to vector<4x1xf32>
    %790 = arith.subf %789, %786 : vector<4x1xf32>
    %791 = vector.broadcast %790 : vector<4x1xf32> to vector<4x32xf32>
    %792 = arith.mulf %791, %752 : vector<4x32xf32>
    %793 = arith.addf %788, %792 : vector<4x32xf32>
    %794 = vector.broadcast %786 : vector<4x1xf32> to vector<4x32xf32>
    %795 = arith.mulf %793, %794 : vector<4x32xf32>
    %c0_232 = arith.constant 0 : index
    %c0_233 = arith.constant 0 : index
    %c0_234 = arith.constant 0 : index
    %796 = vector.load %arg8[%c0_232, %c0_233, %c0_234] : memref<2x4x32xf32, #tpu.memory_space<vmem>>, vector<1x4x32xf32>
    %797 = vector.shape_cast %796 : vector<1x4x32xf32> to vector<4x32xf32>
    %798 = vector.shape_cast %745 : vector<4x32xf32> to vector<1x4x32xf32>
    tpu.vector_store %arg8[%c0_232, %c0_233, %c0_234], %798 {strides = array<i32>} : memref<2x4x32xf32, #tpu.memory_space<vmem>>, vector<1x4x32xf32>,
    %c1_235 = arith.constant 1 : index
    %c0_236 = arith.constant 0 : index
    %c0_237 = arith.constant 0 : index
    %799 = vector.load %arg8[%c1_235, %c0_236, %c0_237] : memref<2x4x32xf32, #tpu.memory_space<vmem>>, vector<1x4x32xf32>
    %800 = vector.shape_cast %799 : vector<1x4x32xf32> to vector<4x32xf32>
    %801 = vector.shape_cast %793 : vector<4x32xf32> to vector<1x4x32xf32>
    tpu.vector_store %arg8[%c1_235, %c0_236, %c0_237], %801 {strides = array<i32>} : memref<2x4x32xf32, #tpu.memory_space<vmem>>, vector<1x4x32xf32>,
    %802 = arith.index_cast %c6_i32 : i32 to index
    %c0_238 = arith.constant 0 : index
    %c0_239 = arith.constant 0 : index
    %803 = vector.load %arg6[%802, %c0_238, %c0_239] : memref<8x4x32xf32, #tpu.memory_space<vmem>>, vector<1x4x32xf32>
    %804 = vector.shape_cast %803 : vector<1x4x32xf32> to vector<4x32xf32>
    %805 = vector.shape_cast %747 : vector<4x32xf32> to vector<1x4x32xf32>
    tpu.vector_store %arg6[%802, %c0_238, %c0_239], %805 {strides = array<i32>} : memref<8x4x32xf32, #tpu.memory_space<vmem>>, vector<1x4x32xf32>,
    %806 = arith.index_cast %698 : i32 to index
    %c0_240 = arith.constant 0 : index
    %c0_241 = arith.constant 0 : index
    %807 = vector.load %arg7[%806, %c0_240, %c0_241] : memref<8x4x32xf32, #tpu.memory_space<vmem>>, vector<1x4x32xf32>
    %808 = vector.shape_cast %807 : vector<1x4x32xf32> to vector<4x32xf32>
    %809 = vector.shape_cast %795 : vector<4x32xf32> to vector<1x4x32xf32>
    tpu.vector_store %arg7[%806, %c0_240, %c0_241], %809 {strides = array<i32>} : memref<8x4x32xf32, #tpu.memory_space<vmem>>, vector<1x4x32xf32>,
    %c7_i32_242 = arith.constant 7 : i32
    %c8_i32_243 = arith.constant 8 : i32
    %810 = arith.muli %arg0, %c8_i32_243 : i32
    %811 = arith.addi %810, %c7_i32_242 : i32
    %c7_i32_244 = arith.constant 7 : i32
    %812 = arith.subi %c7_i32_244, %c7_i32_242 : i32
    %c7_i32_245 = arith.constant 7 : i32
    %813 = arith.subi %c7_i32_245, %811 : i32
    %814 = arith.index_cast %c7_i32_242 : i32 to index
    %c0_246 = arith.constant 0 : index
    %c0_247 = arith.constant 0 : index
    %815 = vector.load %arg2[%814, %c0_246, %c0_247] : memref<8x4x96xf32, #tpu.memory_space<vmem>>, vector<1x4x96xf32>
    %816 = vector.shape_cast %815 : vector<1x4x96xf32> to vector<4x96xf32>
    %c0_248 = arith.constant 0 : index
    %c0_249 = arith.constant 0 : index
    %c0_250 = arith.constant 0 : index
    %817 = vector.load %arg8[%c0_248, %c0_249, %c0_250] : memref<2x4x32xf32, #tpu.memory_space<vmem>>, vector<1x4x32xf32>
    %818 = vector.shape_cast %817 : vector<1x4x32xf32> to vector<4x32xf32>
    %819 = arith.truncf %818 : vector<4x32xf32> to vector<4x32xbf16>
    %cst_251 = arith.constant dense<0.000000e+00> : vector<4x96xf32>
    %820 = tpu.matmul %819, %5, %cst_251 {dimension_numbers = #tpu.dot_dimension_numbers<[1], [0], [0], [1], [0, 0, 1, 1], [], []>} : vector<4x32xbf16>, vector<32x96xbf16>, vector<4x96xf32> -> vector<4x96xf32>
    %821 = vector.broadcast %9 : vector<1x96xf32> to vector<4x96xf32>
    %822 = arith.addf %820, %821 : vector<4x96xf32>
    %823 = vector.extract_strided_slice %816 {offsets = [0, 0], sizes = [4, 32], strides = [1, 1]} : vector<4x96xf32> to vector<4x32xf32>
    %824 = vector.extract_strided_slice %822 {offsets = [0, 0], sizes = [4, 32], strides = [1, 1]} : vector<4x96xf32> to vector<4x32xf32>
    %825 = arith.addf %823, %824 : vector<4x32xf32>
    %826 = arith.negf %825 : vector<4x32xf32>
    %827 = math.exp %826 : vector<4x32xf32>
    %cst_252 = arith.constant 1.000000e+00 : f32
    %828 = vector.broadcast %cst_252 : f32 to vector<4x32xf32>
    %829 = arith.addf %828, %827 : vector<4x32xf32>
    %830 = arith.divf %828, %829 : vector<4x32xf32>
    %831 = vector.extract_strided_slice %816 {offsets = [0, 32], sizes = [4, 32], strides = [1, 1]} : vector<4x96xf32> to vector<4x32xf32>
    %832 = vector.extract_strided_slice %822 {offsets = [0, 32], sizes = [4, 32], strides = [1, 1]} : vector<4x96xf32> to vector<4x32xf32>
    %833 = arith.addf %831, %832 : vector<4x32xf32>
    %834 = arith.negf %833 : vector<4x32xf32>
    %835 = math.exp %834 : vector<4x32xf32>
    %cst_253 = arith.constant 1.000000e+00 : f32
    %836 = vector.broadcast %cst_253 : f32 to vector<4x32xf32>
    %837 = arith.addf %836, %835 : vector<4x32xf32>
    %838 = arith.divf %836, %837 : vector<4x32xf32>
    %839 = vector.extract_strided_slice %816 {offsets = [0, 64], sizes = [4, 32], strides = [1, 1]} : vector<4x96xf32> to vector<4x32xf32>
    %840 = vector.extract_strided_slice %822 {offsets = [0, 64], sizes = [4, 32], strides = [1, 1]} : vector<4x96xf32> to vector<4x32xf32>
    %841 = arith.mulf %830, %840 : vector<4x32xf32>
    %842 = arith.addf %839, %841 : vector<4x32xf32>
    %843 = math.tanh %842 : vector<4x32xf32>
    %cst_254 = arith.constant 1.000000e+00 : f32
    %844 = vector.broadcast %cst_254 : f32 to vector<4x32xf32>
    %845 = arith.subf %844, %838 : vector<4x32xf32>
    %846 = arith.mulf %845, %843 : vector<4x32xf32>
    %847 = arith.mulf %838, %818 : vector<4x32xf32>
    %848 = arith.addf %846, %847 : vector<4x32xf32>
    %849 = vector.broadcast %811 : i32 to vector<4x1xi32>
    %850 = arith.cmpi slt, %849, %3 : vector<4x1xi32>
    %851 = arith.extui %850 : vector<4x1xi1> to vector<4x1xi32>
    %852 = arith.sitofp %851 : vector<4x1xi32> to vector<4x1xf32>
    %853 = vector.broadcast %852 : vector<4x1xf32> to vector<4x32xf32>
    %854 = arith.mulf %853, %848 : vector<4x32xf32>
    %cst_255 = arith.constant 1.000000e+00 : f32
    %855 = vector.broadcast %cst_255 : f32 to vector<4x1xf32>
    %856 = arith.subf %855, %852 : vector<4x1xf32>
    %857 = vector.broadcast %856 : vector<4x1xf32> to vector<4x32xf32>
    %858 = arith.mulf %857, %818 : vector<4x32xf32>
    %859 = arith.addf %854, %858 : vector<4x32xf32>
    %860 = vector.broadcast %852 : vector<4x1xf32> to vector<4x32xf32>
    %861 = arith.mulf %859, %860 : vector<4x32xf32>
    %862 = arith.index_cast %812 : i32 to index
    %c0_256 = arith.constant 0 : index
    %c0_257 = arith.constant 0 : index
    %863 = vector.load %arg3[%862, %c0_256, %c0_257] : memref<8x4x96xf32, #tpu.memory_space<vmem>>, vector<1x4x96xf32>
    %864 = vector.shape_cast %863 : vector<1x4x96xf32> to vector<4x96xf32>
    %c1_258 = arith.constant 1 : index
    %c0_259 = arith.constant 0 : index
    %c0_260 = arith.constant 0 : index
    %865 = vector.load %arg8[%c1_258, %c0_259, %c0_260] : memref<2x4x32xf32, #tpu.memory_space<vmem>>, vector<1x4x32xf32>
    %866 = vector.shape_cast %865 : vector<1x4x32xf32> to vector<4x32xf32>
    %867 = arith.truncf %866 : vector<4x32xf32> to vector<4x32xbf16>
    %cst_261 = arith.constant dense<0.000000e+00> : vector<4x96xf32>
    %868 = tpu.matmul %867, %7, %cst_261 {dimension_numbers = #tpu.dot_dimension_numbers<[1], [0], [0], [1], [0, 0, 1, 1], [], []>} : vector<4x32xbf16>, vector<32x96xbf16>, vector<4x96xf32> -> vector<4x96xf32>
    %869 = vector.broadcast %11 : vector<1x96xf32> to vector<4x96xf32>
    %870 = arith.addf %868, %869 : vector<4x96xf32>
    %871 = vector.extract_strided_slice %864 {offsets = [0, 0], sizes = [4, 32], strides = [1, 1]} : vector<4x96xf32> to vector<4x32xf32>
    %872 = vector.extract_strided_slice %870 {offsets = [0, 0], sizes = [4, 32], strides = [1, 1]} : vector<4x96xf32> to vector<4x32xf32>
    %873 = arith.addf %871, %872 : vector<4x32xf32>
    %874 = arith.negf %873 : vector<4x32xf32>
    %875 = math.exp %874 : vector<4x32xf32>
    %cst_262 = arith.constant 1.000000e+00 : f32
    %876 = vector.broadcast %cst_262 : f32 to vector<4x32xf32>
    %877 = arith.addf %876, %875 : vector<4x32xf32>
    %878 = arith.divf %876, %877 : vector<4x32xf32>
    %879 = vector.extract_strided_slice %864 {offsets = [0, 32], sizes = [4, 32], strides = [1, 1]} : vector<4x96xf32> to vector<4x32xf32>
    %880 = vector.extract_strided_slice %870 {offsets = [0, 32], sizes = [4, 32], strides = [1, 1]} : vector<4x96xf32> to vector<4x32xf32>
    %881 = arith.addf %879, %880 : vector<4x32xf32>
    %882 = arith.negf %881 : vector<4x32xf32>
    %883 = math.exp %882 : vector<4x32xf32>
    %cst_263 = arith.constant 1.000000e+00 : f32
    %884 = vector.broadcast %cst_263 : f32 to vector<4x32xf32>
    %885 = arith.addf %884, %883 : vector<4x32xf32>
    %886 = arith.divf %884, %885 : vector<4x32xf32>
    %887 = vector.extract_strided_slice %864 {offsets = [0, 64], sizes = [4, 32], strides = [1, 1]} : vector<4x96xf32> to vector<4x32xf32>
    %888 = vector.extract_strided_slice %870 {offsets = [0, 64], sizes = [4, 32], strides = [1, 1]} : vector<4x96xf32> to vector<4x32xf32>
    %889 = arith.mulf %878, %888 : vector<4x32xf32>
    %890 = arith.addf %887, %889 : vector<4x32xf32>
    %891 = math.tanh %890 : vector<4x32xf32>
    %cst_264 = arith.constant 1.000000e+00 : f32
    %892 = vector.broadcast %cst_264 : f32 to vector<4x32xf32>
    %893 = arith.subf %892, %886 : vector<4x32xf32>
    %894 = arith.mulf %893, %891 : vector<4x32xf32>
    %895 = arith.mulf %886, %866 : vector<4x32xf32>
    %896 = arith.addf %894, %895 : vector<4x32xf32>
    %897 = vector.broadcast %813 : i32 to vector<4x1xi32>
    %898 = arith.cmpi slt, %897, %3 : vector<4x1xi32>
    %899 = arith.extui %898 : vector<4x1xi1> to vector<4x1xi32>
    %900 = arith.sitofp %899 : vector<4x1xi32> to vector<4x1xf32>
    %901 = vector.broadcast %900 : vector<4x1xf32> to vector<4x32xf32>
    %902 = arith.mulf %901, %896 : vector<4x32xf32>
    %cst_265 = arith.constant 1.000000e+00 : f32
    %903 = vector.broadcast %cst_265 : f32 to vector<4x1xf32>
    %904 = arith.subf %903, %900 : vector<4x1xf32>
    %905 = vector.broadcast %904 : vector<4x1xf32> to vector<4x32xf32>
    %906 = arith.mulf %905, %866 : vector<4x32xf32>
    %907 = arith.addf %902, %906 : vector<4x32xf32>
    %908 = vector.broadcast %900 : vector<4x1xf32> to vector<4x32xf32>
    %909 = arith.mulf %907, %908 : vector<4x32xf32>
    %c0_266 = arith.constant 0 : index
    %c0_267 = arith.constant 0 : index
    %c0_268 = arith.constant 0 : index
    %910 = vector.load %arg8[%c0_266, %c0_267, %c0_268] : memref<2x4x32xf32, #tpu.memory_space<vmem>>, vector<1x4x32xf32>
    %911 = vector.shape_cast %910 : vector<1x4x32xf32> to vector<4x32xf32>
    %912 = vector.shape_cast %859 : vector<4x32xf32> to vector<1x4x32xf32>
    tpu.vector_store %arg8[%c0_266, %c0_267, %c0_268], %912 {strides = array<i32>} : memref<2x4x32xf32, #tpu.memory_space<vmem>>, vector<1x4x32xf32>,
    %c1_269 = arith.constant 1 : index
    %c0_270 = arith.constant 0 : index
    %c0_271 = arith.constant 0 : index
    %913 = vector.load %arg8[%c1_269, %c0_270, %c0_271] : memref<2x4x32xf32, #tpu.memory_space<vmem>>, vector<1x4x32xf32>
    %914 = vector.shape_cast %913 : vector<1x4x32xf32> to vector<4x32xf32>
    %915 = vector.shape_cast %907 : vector<4x32xf32> to vector<1x4x32xf32>
    tpu.vector_store %arg8[%c1_269, %c0_270, %c0_271], %915 {strides = array<i32>} : memref<2x4x32xf32, #tpu.memory_space<vmem>>, vector<1x4x32xf32>,
    %916 = arith.index_cast %c7_i32_242 : i32 to index
    %c0_272 = arith.constant 0 : index
    %c0_273 = arith.constant 0 : index
    %917 = vector.load %arg6[%916, %c0_272, %c0_273] : memref<8x4x32xf32, #tpu.memory_space<vmem>>, vector<1x4x32xf32>
    %918 = vector.shape_cast %917 : vector<1x4x32xf32> to vector<4x32xf32>
    %919 = vector.shape_cast %861 : vector<4x32xf32> to vector<1x4x32xf32>
    tpu.vector_store %arg6[%916, %c0_272, %c0_273], %919 {strides = array<i32>} : memref<8x4x32xf32, #tpu.memory_space<vmem>>, vector<1x4x32xf32>,
    %920 = arith.index_cast %812 : i32 to index
    %c0_274 = arith.constant 0 : index
    %c0_275 = arith.constant 0 : index
    %921 = vector.load %arg7[%920, %c0_274, %c0_275] : memref<8x4x32xf32, #tpu.memory_space<vmem>>, vector<1x4x32xf32>
    %922 = vector.shape_cast %921 : vector<1x4x32xf32> to vector<4x32xf32>
    %923 = vector.shape_cast %909 : vector<4x32xf32> to vector<1x4x32xf32>
    tpu.vector_store %arg7[%920, %c0_274, %c0_275], %923 {strides = array<i32>} : memref<8x4x32xf32, #tpu.memory_space<vmem>>, vector<1x4x32xf32>,
    %c8_i32_276 = arith.constant 8 : i32
    return
  }
  func.func @transform_0(%arg0: i32) -> (i32, i32) {
    %c0_i32 = arith.constant 0 : i32
    %c0_i32_0 = arith.constant 0 : i32
    %c0_i32_1 = arith.constant 0 : i32
    return %c0_i32, %c0_i32_0 : i32, i32
  }
  func.func @transform_1(%arg0: i32) -> (i32, i32, i32) {
    %c0_i32 = arith.constant 0 : i32
    %c0_i32_0 = arith.constant 0 : i32
    %c0_i32_1 = arith.constant 0 : i32
    return %arg0, %c0_i32, %c0_i32_0 : i32, i32, i32
  }
  func.func @transform_2(%arg0: i32) -> (i32, i32, i32) {
    %c0_i32 = arith.constant 0 : i32
    %0 = arith.subi %c0_i32, %arg0 : i32
    %c0_i32_0 = arith.constant 0 : i32
    %c0_i32_1 = arith.constant 0 : i32
    %c0_i32_2 = arith.constant 0 : i32
    return %0, %c0_i32_0, %c0_i32_1 : i32, i32, i32
  }
  func.func @transform_3(%arg0: i32) -> (i32, i32, i32) {
    %c0_i32 = arith.constant 0 : i32
    %c0_i32_0 = arith.constant 0 : i32
    %c0_i32_1 = arith.constant 0 : i32
    %c0_i32_2 = arith.constant 0 : i32
    return %c0_i32, %c0_i32_0, %c0_i32_1 : i32, i32, i32
  }
  func.func @transform_4(%arg0: i32) -> (i32, i32, i32) {
    %c0_i32 = arith.constant 0 : i32
    %c0_i32_0 = arith.constant 0 : i32
    %c0_i32_1 = arith.constant 0 : i32
    %c0_i32_2 = arith.constant 0 : i32
    return %c0_i32, %c0_i32_0, %c0_i32_1 : i32, i32, i32
  }
  func.func @transform_5(%arg0: i32) -> (i32, i32, i32) {
    %c0_i32 = arith.constant 0 : i32
    %c0_i32_0 = arith.constant 0 : i32
    %c0_i32_1 = arith.constant 0 : i32
    return %arg0, %c0_i32, %c0_i32_0 : i32, i32, i32
  }
  func.func @transform_6(%arg0: i32) -> (i32, i32, i32) {
    %c0_i32 = arith.constant 0 : i32
    %0 = arith.subi %c0_i32, %arg0 : i32
    %c0_i32_0 = arith.constant 0 : i32
    %c0_i32_1 = arith.constant 0 : i32
    %c0_i32_2 = arith.constant 0 : i32
    return %0, %c0_i32_0, %c0_i32_1 : i32, i32, i32
  }
}

</mosaic_0001>

<llo_original>
// kernel: encoder_forward.2
$region0: #{encoder_forward.2}
  #allocation0 [shape = 'u32[]', space=smem, size = 0x4, offset = 0x4, fixed_abs, tag = 'smem constant byte address 0x4 - core index']
  #allocation1 [shape = 'u32[144,128]{1,0:T(1,128)}', space=vmem, size = 0x12000, scoped, tag = 'internal scratch']
  #allocation2 [shape = 'f32[2,4,32]{2,1,0:T(4,128)}', space=vmem, size = 0x1000, scoped, tag = 'scratch operand']
  %s0 = inlined_call_operand.vmem [shape: s32[4,1], index: 0, kind: input, shape index: {}]
  %s1 = inlined_call_operand.vmem [shape: f32[8,4,96], index: 1, kind: input, shape index: {}]
  %s2 = inlined_call_operand.vmem [shape: f32[8,4,96], index: 2, kind: input, shape index: {}]
  %s3 = inlined_call_operand.vmem [shape: bf16[2,32,96], index: 3, kind: input, shape index: {}]
  %s4 = inlined_call_operand.vmem [shape: f32[2,1,96], index: 4, kind: input, shape index: {}]
  %s5 = inlined_call_operand.vmem [shape: f32[8,4,32], index: 5, kind: output, shape index: {0}]
  %s6 = inlined_call_operand.vmem [shape: f32[8,4,32], index: 6, kind: output, shape index: {1}]
  %7 = xla_tuple %s5, %s6
  %s8 = sld [smem:[#allocation0]]
  $region42: #{encoder_forward.2} parent=0
    _
  %s10 = ssub.s32 1, %s8
  %s11 = scalar_select 0, %s10, %s8
  // Predicated region
  $region2: #{encoder_forward.2} parent=0 // pred_check
    _
  $region3: #{encoder_forward.2} parent=0 // pred_check_branch
    %13 = sbr.rel (0) target = $region5
  $region4: #{encoder_forward.2} parent=0 // pred_region
    _
  $region5: #{encoder_forward.2} parent=0 // pred_fallthru
    _
  // Predicated region
  $region6: #{encoder_forward.2} parent=0 // pred_check
    _
  $region7: #{encoder_forward.2} parent=0 // pred_check_branch
    %15 = sbr.rel (0) target = $region9
  $region8: #{encoder_forward.2} parent=0 // pred_region
    _
  $region9: #{encoder_forward.2} parent=0 // pred_fallthru
    _
  // Predicated region
  $region10: #{encoder_forward.2} parent=0 // pred_check
    _
  $region11: #{encoder_forward.2} parent=0 // pred_check_branch
    %17 = sbr.rel (0) target = $region13
  $region12: #{encoder_forward.2} parent=0 // pred_region
    %s18 = ssub.s32 0, 0
    %s19 = smul.u32 8, %s18
    %p20 = scmp.lt.s32.totalorder %s19, 7
    %s21 = scalar_select %p20, %s19, 7
    %s22 = smul.addr %s21, 4
    %s23 = scalar_lea.vmem %s2, %s22
    %s24 = ssub.s32 0, 0
    %s25 = smul.u32 8, %s24
  $region13: #{encoder_forward.2} parent=0 // pred_fallthru
    _
  // Predicated region
  $region14: #{encoder_forward.2} parent=0 // pred_check
    _
  $region15: #{encoder_forward.2} parent=0 // pred_check_branch
    %27 = sbr.rel (0) target = $region17
  $region16: #{encoder_forward.2} parent=0 // pred_region
    _
  $region17: #{encoder_forward.2} parent=0 // pred_fallthru
    _
  // Predicated region
  $region18: #{encoder_forward.2} parent=0 // pred_check
    _
  $region19: #{encoder_forward.2} parent=0 // pred_check_branch
    %29 = sbr.rel (0) target = $region21
  $region20: #{encoder_forward.2} parent=0 // pred_region
    _
  $region21: #{encoder_forward.2} parent=0 // pred_fallthru
    _
  %s30 = ssub.s32 0, 0
  %s31 = smul.u32 8, %s30
  %p32 = scmp.lt.s32.totalorder %s31, 7
  %s33 = scalar_select %p32, %s31, 7
  %s34 = smul.addr %s33, 4
  %s35 = scalar_lea.vmem %s2, %s34
  %s36 = ssub.s32 0, 0
  %s37 = smul.u32 8, %s36
  %p38 = scmp.lt.s32.totalorder %s37, 7
  %s39 = scalar_select %p38, %s37, 7
  %s40 = smul.addr %s39, 4
  %s41 = scalar_lea.vmem %s6, %s40
  %s42 = ssub.s32 0, 0
  %s43 = smul.u32 8, %s42
  %p44 = scmp.lt.s32.totalorder %s43, 7
  %s45 = scalar_select %p44, %s43, 7
  %s46 = smul.addr %s45, 4
  %s47 = scalar_lea.vmem %s2, %s46
  %s48 = ssub.s32 0, 0
  %s49 = smul.u32 8, %s48
  %s50 = ssub.s32 0, 0
  %s51 = smul.u32 8, %s50
  %p52 = scmp.lt.s32.totalorder %s51, 7
  %s53 = scalar_select %p52, %s51, 7
  %s54 = smul.addr %s53, 4
  %s55 = scalar_lea.vmem %s6, %s54
  %s56 = ssub.s32 0, 0
  %s57 = smul.u32 8, %s56
  %p59 = scmp.eq.s32.totalorder 0, 0
  // Predicated region
  $region22: #{encoder_forward.2} parent=0 // pred_check
    %p60 = pneg %p59
  $region23: #{encoder_forward.2} parent=0 // pred_check_branch
    %62 = sbr.rel (%p60) target = $region25
  $region24: #{encoder_forward.2} parent=0 // pred_region
    %vm63 = vcmask 257024
    %64 = vst.msk [vmem:[#allocation2] sm:$0xf] %vm63, 0.0
    %65 = vst.msk [vmem:[#allocation2 + $0x4] sm:$0xf] %vm63, 0.0
  $region25: #{encoder_forward.2} parent=0 // pred_fallthru
    _
  %v66 = vld [vmem:[%s0] sm:$0xf]
  %v67 = vld [vmem:[%s3] sm:$0xf]
  %v68 = vld [vmem:[%s3 + $0x4] sm:$0xf]
  %v69 = vld [vmem:[%s3 + $0x8] sm:$0xf]
  %v70 = vld [vmem:[%s3 + $0xc] sm:$0xf]
  %s71 = scalar_lea.vmem %s3, 16
  %v72 = vld [vmem:[%s71] sm:$0xf]
  %v73 = vld [vmem:[%s71 + $0x4] sm:$0xf]
  %v74 = vld [vmem:[%s71 + $0x8] sm:$0xf]
  %v75 = vld [vmem:[%s71 + $0xc] sm:$0xf]
  %v76 = vld [vmem:[%s4] sm:$0x1]
  %s77 = scalar_lea.vmem %s4, 1
  %v78 = vld [vmem:[%s77] sm:$0x1]
  %s79 = smul.u32 0, 8
  %s80 = ssub.s32 7, %s79
  %v81 = vld [vmem:[%s1] sm:$0xf]
  %v82 = vld [vmem:[#allocation2] sm:$0xf]
  %v83 = vpack.c.bf16 %v82, %v82
  %v85 = vlaneseq
  %v86 = vshrl.u32 %v85, 7
  %v87 = vsub.s32 0, %v86
  %v88 = vrot.slane %v76, %v87
  %v94 = vunpack.c.l.b16 %v67
  %v95 = vunpack.c.l.b16 %v68
  %v96 = vunpack.c.l.b16 %v69
  %v97 = vunpack.c.l.b16 %v70
  %v98 = vpack.c.b16 %v95, %v94
  %v99 = vpack.c.b16 %v97, %v96
  %vm102 = vcmask 261120
  %v104 = vsel %vm102, %v83, 0
  %106 = vmatprep.subr.bf16.mxu0 0
  %107 = vmatpush1.bf16.msra.mxu0 %v98
  %108 = vmatprep.subr.bf16.mxu0 0
  %109 = vmatpush1.bf16.msra.mxu0 %v99
  %110 = vmatprep.subr.bf16.mxu0 0
  %111 = vmatpush1.bf16.msra.mxu0 0
  %112 = vmatprep.subr.bf16.mxu0 0
  %113 = vmatpush1.bf16.msra.mxu0 0
  %114 = vmatprep.subr.bf16.mxu0 0
  %115 = vmatpush1.bf16.msra.mxu0 0
  %116 = vmatprep.subr.bf16.mxu0 0
  %117 = vmatpush1.bf16.msra.mxu0 0
  %118 = vmatprep.subr.bf16.mxu0 0
  %119 = vmatpush1.bf16.msra.mxu0 0
  %120 = vmatprep.subr.bf16.mxu0 0
  %121 = vmatpush1.bf16.msra.mxu0 0
  %122 = vmatprep.subr.bf16.mxu0 0
  %123 = vmatpush1.bf16.msra.mxu0 0
  %124 = vmatprep.subr.bf16.mxu0 0
  %125 = vmatpush1.bf16.msra.mxu0 0
  %126 = vmatprep.subr.bf16.mxu0 0
  %127 = vmatpush1.bf16.msra.mxu0 0
  %128 = vmatprep.subr.bf16.mxu0 0
  %129 = vmatpush1.bf16.msra.mxu0 0
  %130 = vmatprep.subr.bf16.mxu0 0
  %131 = vmatpush1.bf16.msra.mxu0 0
  %132 = vmatprep.subr.bf16.mxu0 0
  %133 = vmatpush1.bf16.msra.mxu0 0
  %134 = vmatprep.subr.bf16.mxu0 0
  %135 = vmatpush1.bf16.msra.mxu0 0
  %136 = vmatprep.subr.bf16.mxu0 0
  %137 = vmatpush1.bf16.msra.mxu0 0
  %138 = vmatprep.mubr.bf16.mxu0 0
  %139 = vmatmul.mubr.bf16.gmra.mrb[0].mxu0 %v104
  %v140 = vpop.f32.mrb[0].mxu0
  %v141 = vadd.f32 %v88, %v140
  %v142 = vpop.f32.mrb[0].mxu0
  %v143 = vpop.f32.mrb[0].mxu0
  %v144 = vpop.f32.mrb[0].mxu0
  %145 = vdwg.mxu0
  %v146 = vadd.f32 %v81, %v141
  %v147 = vxor.u32 %v146, 2147483648
  %v148 = vmul.f32 %v147, 1.442695
  %v149 = vpow.pop %v148
  %v150 = vadd.f32 %v149, 1.0
  %v151 = vrcp.pop %v150
  %v152 = vmul.f32 1.0, %v151
  %154 = vrot.lane.b32.xlu0 %v141, 64
  %v155 = vpop.permute.xlu0 %154
  %v157 = vmul.f32 %v152, %v155
  %159 = vrot.lane.b32.xlu0 %v157, 64
  %v160 = vpop.permute.xlu0 %159
  %v162 = vadd.f32 %v81, %v160
  %v163 = vtanh.pop %v162
  %v164 = vsub.f32 1.0, %v152
  %166 = vrot.lane.b32.xlu0 %v163, 96
  %v167 = vpop.permute.xlu0 %166
  %v169 = vmul.f32 %v164, %v167
  %171 = vrot.lane.b32.xlu0 %v82, 32
  %v172 = vpop.permute.xlu0 %171
  %v174 = vmul.f32 %v152, %v172
  %v175 = vadd.f32 %v169, %v174
  %v176 = vstv %s79
  %vm177 = vcmp.lt.s32.totalorder %v176, %v66
  %v178 = vsel %vm177, 1, 0
  %v179 = vcvt.s32.f32 %v178
  %181 = vset.pattern.permute.xlu0 0
  %182 = vperm.xlu0 %181, %v179
  %v183 = vpop.permute.xlu0 %182
  %v185 = vmul.f32 %v183, %v175
  %v186 = vsub.f32 1.0, %v179
  %188 = vset.pattern.permute.xlu0 0
  %189 = vperm.xlu0 %188, %v186
  %v190 = vpop.permute.xlu0 %189
  %v192 = vmul.f32 %v190, %v82
  %194 = vrot.lane.b32.xlu0 %v192, 32
  %v195 = vpop.permute.xlu0 %194
  %v197 = vadd.f32 %v185, %v195
  %v198 = vmul.f32 %v197, %v183
  %s199 = scalar_lea.vmem %s47, 28
  %v200 = vld [vmem:[%s199] sm:$0xf]
  %s201 = scalar_lea.vmem [#allocation2], 4
  %v202 = vld [vmem:[%s201] sm:$0xf]
  %v203 = vpack.c.bf16 %v202, %v202
  %v205 = vlaneseq
  %v206 = vshrl.u32 %v205, 7
  %v207 = vsub.s32 0, %v206
  %v208 = vrot.slane %v78, %v207
  %v214 = vunpack.c.l.b16 %v72
  %v215 = vunpack.c.l.b16 %v73
  %v216 = vunpack.c.l.b16 %v74
  %v217 = vunpack.c.l.b16 %v75
  %v218 = vpack.c.b16 %v215, %v214
  %v219 = vpack.c.b16 %v217, %v216
  %v223 = vsel %vm102, %v203, 0
  %225 = vmatprep.subr.bf16.mxu0 0
  %226 = vmatpush1.bf16.msra.mxu0 %v218
  %227 = vmatprep.subr.bf16.mxu0 0
  %228 = vmatpush1.bf16.msra.mxu0 %v219
  %229 = vmatprep.subr.bf16.mxu0 0
  %230 = vmatpush1.bf16.msra.mxu0 0
  %231 = vmatprep.subr.bf16.mxu0 0
  %232 = vmatpush1.bf16.msra.mxu0 0
  %233 = vmatprep.subr.bf16.mxu0 0
  %234 = vmatpush1.bf16.msra.mxu0 0
  %235 = vmatprep.subr.bf16.mxu0 0
  %236 = vmatpush1.bf16.msra.mxu0 0
  %237 = vmatprep.subr.bf16.mxu0 0
  %238 = vmatpush1.bf16.msra.mxu0 0
  %239 = vmatprep.subr.bf16.mxu0 0
  %240 = vmatpush1.bf16.msra.mxu0 0
  %241 = vmatprep.subr.bf16.mxu0 0
  %242 = vmatpush1.bf16.msra.mxu0 0
  %243 = vmatprep.subr.bf16.mxu0 0
  %244 = vmatpush1.bf16.msra.mxu0 0
  %245 = vmatprep.subr.bf16.mxu0 0
  %246 = vmatpush1.bf16.msra.mxu0 0
  %247 = vmatprep.subr.bf16.mxu0 0
  %248 = vmatpush1.bf16.msra.mxu0 0
  %249 = vmatprep.subr.bf16.mxu0 0
  %250 = vmatpush1.bf16.msra.mxu0 0
  %251 = vmatprep.subr.bf16.mxu0 0
  %252 = vmatpush1.bf16.msra.mxu0 0
  %253 = vmatprep.subr.bf16.mxu0 0
  %254 = vmatpush1.bf16.msra.mxu0 0
  %255 = vmatprep.subr.bf16.mxu0 0
  %256 = vmatpush1.bf16.msra.mxu0 0
  %257 = vmatprep.mubr.bf16.mxu0 0
  %258 = vmatmul.mubr.bf16.gmra.mrb[0].mxu0 %v223
  %v259 = vpop.f32.mrb[0].mxu0
  %v260 = vadd.f32 %v208, %v259
  %v261 = vpop.f32.mrb[0].mxu0
  %v262 = vpop.f32.mrb[0].mxu0
  %v263 = vpop.f32.mrb[0].mxu0
  %264 = vdwg.mxu0
  %v265 = vadd.f32 %v200, %v260
  %v266 = vxor.u32 %v265, 2147483648
  %v267 = vmul.f32 %v266, 1.442695
  %v268 = vpow.pop %v267
  %v269 = vadd.f32 %v268, 1.0
  %v270 = vrcp.pop %v269
  %v271 = vmul.f32 1.0, %v270
  %273 = vrot.lane.b32.xlu0 %v260, 64
  %v274 = vpop.permute.xlu0 %273
  %v276 = vmul.f32 %v271, %v274
  %278 = vrot.lane.b32.xlu0 %v276, 64
  %v279 = vpop.permute.xlu0 %278
  %v281 = vadd.f32 %v200, %v279
  %v282 = vtanh.pop %v281
  %v283 = vsub.f32 1.0, %v271
  %285 = vrot.lane.b32.xlu0 %v282, 96
  %v286 = vpop.permute.xlu0 %285
  %v288 = vmul.f32 %v283, %v286
  %290 = vrot.lane.b32.xlu0 %v202, 32
  %v291 = vpop.permute.xlu0 %290
  %v293 = vmul.f32 %v271, %v291
  %v294 = vadd.f32 %v288, %v293
  %v295 = vstv %s80
  %vm296 = vcmp.lt.s32.totalorder %v295, %v66
  %v297 = vsel %vm296, 1, 0
  %v298 = vcvt.s32.f32 %v297
  %300 = vset.pattern.permute.xlu0 0
  %301 = vperm.xlu0 %300, %v298
  %v302 = vpop.permute.xlu0 %301
  %v304 = vmul.f32 %v302, %v294
  %v305 = vsub.f32 1.0, %v298
  %307 = vset.pattern.permute.xlu0 0
  %308 = vperm.xlu0 %307, %v305
  %v309 = vpop.permute.xlu0 %308
  %v311 = vmul.f32 %v309, %v202
  %313 = vrot.lane.b32.xlu0 %v311, 32
  %v314 = vpop.permute.xlu0 %313
  %v316 = vadd.f32 %v304, %v314
  %v317 = vmul.f32 %v316, %v302
  %319 = vrot.lane.b32.xlu0 %v197, 96
  %v320 = vpop.permute.xlu0 %319
  %vm322 = vcmask 257024
  %323 = vst.msk [vmem:[#allocation2] sm:$0xf] %vm322, %v320
  %325 = vrot.lane.b32.xlu0 %v316, 96
  %v326 = vpop.permute.xlu0 %325
  %328 = vst.msk [vmem:[%s201] sm:$0xf] %vm322, %v326
  %330 = vrot.lane.b32.xlu0 %v198, 96
  %v331 = vpop.permute.xlu0 %330
  %333 = vst.msk [vmem:[%s5] sm:$0xf] %vm322, %v331
  %335 = vrot.lane.b32.xlu0 %v317, 96
  %v336 = vpop.permute.xlu0 %335
  %s338 = scalar_lea.vmem %s55, 28
  %339 = vst.msk [vmem:[%s338] sm:$0xf] %vm322, %v336
  %s340 = sadd.s32 %s79, 1
  %s341 = ssub.s32 6, %s79
  %s342 = scalar_lea.vmem %s1, 4
  %v343 = vld [vmem:[%s342] sm:$0xf]
  %v344 = vld [vmem:[#allocation2] sm:$0xf]
  %v345 = vpack.c.bf16 %v344, %v344
  %v347 = vsel %vm102, %v345, 0
  %349 = vmatprep.subr.bf16.mxu0 0
  %350 = vmatpush1.bf16.msra.mxu0 %v98
  %351 = vmatprep.subr.bf16.mxu0 0
  %352 = vmatpush1.bf16.msra.mxu0 %v99
  %353 = vmatprep.subr.bf16.mxu0 0
  %354 = vmatpush1.bf16.msra.mxu0 0
  %355 = vmatprep.subr.bf16.mxu0 0
  %356 = vmatpush1.bf16.msra.mxu0 0
  %357 = vmatprep.subr.bf16.mxu0 0
  %358 = vmatpush1.bf16.msra.mxu0 0
  %359 = vmatprep.subr.bf16.mxu0 0
  %360 = vmatpush1.bf16.msra.mxu0 0
  %361 = vmatprep.subr.bf16.mxu0 0
  %362 = vmatpush1.bf16.msra.mxu0 0
  %363 = vmatprep.subr.bf16.mxu0 0
  %364 = vmatpush1.bf16.msra.mxu0 0
  %365 = vmatprep.subr.bf16.mxu0 0
  %366 = vmatpush1.bf16.msra.mxu0 0
  %367 = vmatprep.subr.bf16.mxu0 0
  %368 = vmatpush1.bf16.msra.mxu0 0
  %369 = vmatprep.subr.bf16.mxu0 0
  %370 = vmatpush1.bf16.msra.mxu0 0
  %371 = vmatprep.subr.bf16.mxu0 0
  %372 = vmatpush1.bf16.msra.mxu0 0
  %373 = vmatprep.subr.bf16.mxu0 0
  %374 = vmatpush1.bf16.msra.mxu0 0
  %375 = vmatprep.subr.bf16.mxu0 0
  %376 = vmatpush1.bf16.msra.mxu0 0
  %377 = vmatprep.subr.bf16.mxu0 0
  %378 = vmatpush1.bf16.msra.mxu0 0
  %379 = vmatprep.subr.bf16.mxu0 0
  %380 = vmatpush1.bf16.msra.mxu0 0
  %381 = vmatprep.mubr.bf16.mxu0 0
  %382 = vmatmul.mubr.bf16.gmra.mrb[0].mxu0 %v347
  %v383 = vpop.f32.mrb[0].mxu0
  %v384 = vadd.f32 %v88, %v383
  %v385 = vpop.f32.mrb[0].mxu0
  %v386 = vpop.f32.mrb[0].mxu0
  %v387 = vpop.f32.mrb[0].mxu0
  %388 = vdwg.mxu0
  %v389 = vadd.f32 %v343, %v384
  %v390 = vxor.u32 %v389, 2147483648
  %v391 = vmul.f32 %v390, 1.442695
  %v392 = vpow.pop %v391
  %v393 = vadd.f32 %v392, 1.0
  %v394 = vrcp.pop %v393
  %v395 = vmul.f32 1.0, %v394
  %397 = vrot.lane.b32.xlu0 %v384, 64
  %v398 = vpop.permute.xlu0 %397
  %v400 = vmul.f32 %v395, %v398
  %402 = vrot.lane.b32.xlu0 %v400, 64
  %v403 = vpop.permute.xlu0 %402
  %v405 = vadd.f32 %v343, %v403
  %v406 = vtanh.pop %v405
  %v407 = vsub.f32 1.0, %v395
  %409 = vrot.lane.b32.xlu0 %v406, 96
  %v410 = vpop.permute.xlu0 %409
  %v412 = vmul.f32 %v407, %v410
  %414 = vrot.lane.b32.xlu0 %v344, 32
  %v415 = vpop.permute.xlu0 %414
  %v417 = vmul.f32 %v395, %v415
  %v418 = vadd.f32 %v412, %v417
  %v419 = vstv %s340
  %vm420 = vcmp.lt.s32.totalorder %v419, %v66
  %v421 = vsel %vm420, 1, 0
  %v422 = vcvt.s32.f32 %v421
  %424 = vset.pattern.permute.xlu0 0
  %425 = vperm.xlu0 %424, %v422
  %v426 = vpop.permute.xlu0 %425
  %v428 = vmul.f32 %v426, %v418
  %v429 = vsub.f32 1.0, %v422
  %431 = vset.pattern.permute.xlu0 0
  %432 = vperm.xlu0 %431, %v429
  %v433 = vpop.permute.xlu0 %432
  %v435 = vmul.f32 %v433, %v344
  %437 = vrot.lane.b32.xlu0 %v435, 32
  %v438 = vpop.permute.xlu0 %437
  %v440 = vadd.f32 %v428, %v438
  %v441 = vmul.f32 %v440, %v426
  %s442 = scalar_lea.vmem %s47, 24
  %v443 = vld [vmem:[%s442] sm:$0xf]
  %v444 = vld [vmem:[%s201] sm:$0xf]
  %v445 = vpack.c.bf16 %v444, %v444
  %v447 = vsel %vm102, %v445, 0
  %449 = vmatprep.subr.bf16.mxu0 0
  %450 = vmatpush1.bf16.msra.mxu0 %v218
  %451 = vmatprep.subr.bf16.mxu0 0
  %452 = vmatpush1.bf16.msra.mxu0 %v219
  %453 = vmatprep.subr.bf16.mxu0 0
  %454 = vmatpush1.bf16.msra.mxu0 0
  %455 = vmatprep.subr.bf16.mxu0 0
  %456 = vmatpush1.bf16.msra.mxu0 0
  %457 = vmatprep.subr.bf16.mxu0 0
  %458 = vmatpush1.bf16.msra.mxu0 0
  %459 = vmatprep.subr.bf16.mxu0 0
  %460 = vmatpush1.bf16.msra.mxu0 0
  %461 = vmatprep.subr.bf16.mxu0 0
  %462 = vmatpush1.bf16.msra.mxu0 0
  %463 = vmatprep.subr.bf16.mxu0 0
  %464 = vmatpush1.bf16.msra.mxu0 0
  %465 = vmatprep.subr.bf16.mxu0 0
  %466 = vmatpush1.bf16.msra.mxu0 0
  %467 = vmatprep.subr.bf16.mxu0 0
  %468 = vmatpush1.bf16.msra.mxu0 0
  %469 = vmatprep.subr.bf16.mxu0 0
  %470 = vmatpush1.bf16.msra.mxu0 0
  %471 = vmatprep.subr.bf16.mxu0 0
  %472 = vmatpush1.bf16.msra.mxu0 0
  %473 = vmatprep.subr.bf16.mxu0 0
  %474 = vmatpush1.bf16.msra.mxu0 0
  %475 = vmatprep.subr.bf16.mxu0 0
  %476 = vmatpush1.bf16.msra.mxu0 0
  %477 = vmatprep.subr.bf16.mxu0 0
  %478 = vmatpush1.bf16.msra.mxu0 0
  %479 = vmatprep.subr.bf16.mxu0 0
  %480 = vmatpush1.bf16.msra.mxu0 0
  %481 = vmatprep.mubr.bf16.mxu0 0
  %482 = vmatmul.mubr.bf16.gmra.mrb[0].mxu0 %v447
  %v483 = vpop.f32.mrb[0].mxu0
  %v484 = vadd.f32 %v208, %v483
  %v485 = vpop.f32.mrb[0].mxu0
  %v486 = vpop.f32.mrb[0].mxu0
  %v487 = vpop.f32.mrb[0].mxu0
  %488 = vdwg.mxu0
  %v489 = vadd.f32 %v443, %v484
  %v490 = vxor.u32 %v489, 2147483648
  %v491 = vmul.f32 %v490, 1.442695
  %v492 = vpow.pop %v491
  %v493 = vadd.f32 %v492, 1.0
  %v494 = vrcp.pop %v493
  %v495 = vmul.f32 1.0, %v494
  %497 = vrot.lane.b32.xlu0 %v484, 64
  %v498 = vpop.permute.xlu0 %497
  %v500 = vmul.f32 %v495, %v498
  %502 = vrot.lane.b32.xlu0 %v500, 64
  %v503 = vpop.permute.xlu0 %502
  %v505 = vadd.f32 %v443, %v503
  %v506 = vtanh.pop %v505
  %v507 = vsub.f32 1.0, %v495
  %509 = vrot.lane.b32.xlu0 %v506, 96
  %v510 = vpop.permute.xlu0 %509
  %v512 = vmul.f32 %v507, %v510
  %514 = vrot.lane.b32.xlu0 %v444, 32
  %v515 = vpop.permute.xlu0 %514
  %v517 = vmul.f32 %v495, %v515
  %v518 = vadd.f32 %v512, %v517
  %v519 = vstv %s341
  %vm520 = vcmp.lt.s32.totalorder %v519, %v66
  %v521 = vsel %vm520, 1, 0
  %v522 = vcvt.s32.f32 %v521
  %524 = vset.pattern.permute.xlu0 0
  %525 = vperm.xlu0 %524, %v522
  %v526 = vpop.permute.xlu0 %525
  %v528 = vmul.f32 %v526, %v518
  %v529 = vsub.f32 1.0, %v522
  %531 = vset.pattern.permute.xlu0 0
  %532 = vperm.xlu0 %531, %v529
  %v533 = vpop.permute.xlu0 %532
  %v535 = vmul.f32 %v533, %v444
  %537 = vrot.lane.b32.xlu0 %v535, 32
  %v538 = vpop.permute.xlu0 %537
  %v540 = vadd.f32 %v528, %v538
  %v541 = vmul.f32 %v540, %v526
  %543 = vrot.lane.b32.xlu0 %v440, 96
  %v544 = vpop.permute.xlu0 %543
  %546 = vst.msk [vmem:[#allocation2] sm:$0xf] %vm322, %v544
  %548 = vrot.lane.b32.xlu0 %v540, 96
  %v549 = vpop.permute.xlu0 %548
  %551 = vst.msk [vmem:[%s201] sm:$0xf] %vm322, %v549
  %553 = vrot.lane.b32.xlu0 %v441, 96
  %v554 = vpop.permute.xlu0 %553
  %s556 = scalar_lea.vmem %s5, 4
  %557 = vst.msk [vmem:[%s556] sm:$0xf] %vm322, %v554
  %559 = vrot.lane.b32.xlu0 %v541, 96
  %v560 = vpop.permute.xlu0 %559
  %s562 = scalar_lea.vmem %s55, 24
  %563 = vst.msk [vmem:[%s562] sm:$0xf] %vm322, %v560
  %s564 = sadd.s32 %s79, 2
  %s565 = ssub.s32 5, %s79
  %s566 = scalar_lea.vmem %s1, 8
  %v567 = vld [vmem:[%s566] sm:$0xf]
  %v568 = vld [vmem:[#allocation2] sm:$0xf]
  %v569 = vpack.c.bf16 %v568, %v568
  %v571 = vsel %vm102, %v569, 0
  %573 = vmatprep.subr.bf16.mxu0 0
  %574 = vmatpush1.bf16.msra.mxu0 %v98
  %575 = vmatprep.subr.bf16.mxu0 0
  %576 = vmatpush1.bf16.msra.mxu0 %v99
  %577 = vmatprep.subr.bf16.mxu0 0
  %578 = vmatpush1.bf16.msra.mxu0 0
  %579 = vmatprep.subr.bf16.mxu0 0
  %580 = vmatpush1.bf16.msra.mxu0 0
  %581 = vmatprep.subr.bf16.mxu0 0
  %582 = vmatpush1.bf16.msra.mxu0 0
  %583 = vmatprep.subr.bf16.mxu0 0
  %584 = vmatpush1.bf16.msra.mxu0 0
  %585 = vmatprep.subr.bf16.mxu0 0
  %586 = vmatpush1.bf16.msra.mxu0 0
  %587 = vmatprep.subr.bf16.mxu0 0
  %588 = vmatpush1.bf16.msra.mxu0 0
  %589 = vmatprep.subr.bf16.mxu0 0
  %590 = vmatpush1.bf16.msra.mxu0 0
  %591 = vmatprep.subr.bf16.mxu0 0
  %592 = vmatpush1.bf16.msra.mxu0 0
  %593 = vmatprep.subr.bf16.mxu0 0
  %594 = vmatpush1.bf16.msra.mxu0 0
  %595 = vmatprep.subr.bf16.mxu0 0
  %596 = vmatpush1.bf16.msra.mxu0 0
  %597 = vmatprep.subr.bf16.mxu0 0
  %598 = vmatpush1.bf16.msra.mxu0 0
  %599 = vmatprep.subr.bf16.mxu0 0
  %600 = vmatpush1.bf16.msra.mxu0 0
  %601 = vmatprep.subr.bf16.mxu0 0
  %602 = vmatpush1.bf16.msra.mxu0 0
  %603 = vmatprep.subr.bf16.mxu0 0
  %604 = vmatpush1.bf16.msra.mxu0 0
  %605 = vmatprep.mubr.bf16.mxu0 0
  %606 = vmatmul.mubr.bf16.gmra.mrb[0].mxu0 %v571
  %v607 = vpop.f32.mrb[0].mxu0
  %v608 = vadd.f32 %v88, %v607
  %v609 = vpop.f32.mrb[0].mxu0
  %v610 = vpop.f32.mrb[0].mxu0
  %v611 = vpop.f32.mrb[0].mxu0
  %612 = vdwg.mxu0
  %v613 = vadd.f32 %v567, %v608
  %v614 = vxor.u32 %v613, 2147483648
  %v615 = vmul.f32 %v614, 1.442695
  %v616 = vpow.pop %v615
  %v617 = vadd.f32 %v616, 1.0
  %v618 = vrcp.pop %v617
  %v619 = vmul.f32 1.0, %v618
  %621 = vrot.lane.b32.xlu0 %v608, 64
  %v622 = vpop.permute.xlu0 %621
  %v624 = vmul.f32 %v619, %v622
  %626 = vrot.lane.b32.xlu0 %v624, 64
  %v627 = vpop.permute.xlu0 %626
  %v629 = vadd.f32 %v567, %v627
  %v630 = vtanh.pop %v629
  %v631 = vsub.f32 1.0, %v619
  %633 = vrot.lane.b32.xlu0 %v630, 96
  %v634 = vpop.permute.xlu0 %633
  %v636 = vmul.f32 %v631, %v634
  %638 = vrot.lane.b32.xlu0 %v568, 32
  %v639 = vpop.permute.xlu0 %638
  %v641 = vmul.f32 %v619, %v639
  %v642 = vadd.f32 %v636, %v641
  %v643 = vstv %s564
  %vm644 = vcmp.lt.s32.totalorder %v643, %v66
  %v645 = vsel %vm644, 1, 0
  %v646 = vcvt.s32.f32 %v645
  %648 = vset.pattern.permute.xlu0 0
  %649 = vperm.xlu0 %648, %v646
  %v650 = vpop.permute.xlu0 %649
  %v652 = vmul.f32 %v650, %v642
  %v653 = vsub.f32 1.0, %v646
  %655 = vset.pattern.permute.xlu0 0
  %656 = vperm.xlu0 %655, %v653
  %v657 = vpop.permute.xlu0 %656
  %v659 = vmul.f32 %v657, %v568
  %661 = vrot.lane.b32.xlu0 %v659, 32
  %v662 = vpop.permute.xlu0 %661
  %v664 = vadd.f32 %v652, %v662
  %v665 = vmul.f32 %v664, %v650
  %s666 = scalar_lea.vmem %s47, 20
  %v667 = vld [vmem:[%s666] sm:$0xf]
  %v668 = vld [vmem:[%s201] sm:$0xf]
  %v669 = vpack.c.bf16 %v668, %v668
  %v671 = vsel %vm102, %v669, 0
  %673 = vmatprep.subr.bf16.mxu0 0
  %674 = vmatpush1.bf16.msra.mxu0 %v218
  %675 = vmatprep.subr.bf16.mxu0 0
  %676 = vmatpush1.bf16.msra.mxu0 %v219
  %677 = vmatprep.subr.bf16.mxu0 0
  %678 = vmatpush1.bf16.msra.mxu0 0
  %679 = vmatprep.subr.bf16.mxu0 0
  %680 = vmatpush1.bf16.msra.mxu0 0
  %681 = vmatprep.subr.bf16.mxu0 0
  %682 = vmatpush1.bf16.msra.mxu0 0
  %683 = vmatprep.subr.bf16.mxu0 0
  %684 = vmatpush1.bf16.msra.mxu0 0
  %685 = vmatprep.subr.bf16.mxu0 0
  %686 = vmatpush1.bf16.msra.mxu0 0
  %687 = vmatprep.subr.bf16.mxu0 0
  %688 = vmatpush1.bf16.msra.mxu0 0
  %689 = vmatprep.subr.bf16.mxu0 0
  %690 = vmatpush1.bf16.msra.mxu0 0
  %691 = vmatprep.subr.bf16.mxu0 0
  %692 = vmatpush1.bf16.msra.mxu0 0
  %693 = vmatprep.subr.bf16.mxu0 0
  %694 = vmatpush1.bf16.msra.mxu0 0
  %695 = vmatprep.subr.bf16.mxu0 0
  %696 = vmatpush1.bf16.msra.mxu0 0
  %697 = vmatprep.subr.bf16.mxu0 0
  %698 = vmatpush1.bf16.msra.mxu0 0
  %699 = vmatprep.subr.bf16.mxu0 0
  %700 = vmatpush1.bf16.msra.mxu0 0
  %701 = vmatprep.subr.bf16.mxu0 0
  %702 = vmatpush1.bf16.msra.mxu0 0
  %703 = vmatprep.subr.bf16.mxu0 0
  %704 = vmatpush1.bf16.msra.mxu0 0
  %705 = vmatprep.mubr.bf16.mxu0 0
  %706 = vmatmul.mubr.bf16.gmra.mrb[0].mxu0 %v671
  %v707 = vpop.f32.mrb[0].mxu0
  %v708 = vadd.f32 %v208, %v707
  %v709 = vpop.f32.mrb[0].mxu0
  %v710 = vpop.f32.mrb[0].mxu0
  %v711 = vpop.f32.mrb[0].mxu0
  %712 = vdwg.mxu0
  %v713 = vadd.f32 %v667, %v708
  %v714 = vxor.u32 %v713, 2147483648
  %v715 = vmul.f32 %v714, 1.442695
  %v716 = vpow.pop %v715
  %v717 = vadd.f32 %v716, 1.0
  %v718 = vrcp.pop %v717
  %v719 = vmul.f32 1.0, %v718
  %721 = vrot.lane.b32.xlu0 %v708, 64
  %v722 = vpop.permute.xlu0 %721
  %v724 = vmul.f32 %v719, %v722
  %726 = vrot.lane.b32.xlu0 %v724, 64
  %v727 = vpop.permute.xlu0 %726
  %v729 = vadd.f32 %v667, %v727
  %v730 = vtanh.pop %v729
  %v731 = vsub.f32 1.0, %v719
  %733 = vrot.lane.b32.xlu0 %v730, 96
  %v734 = vpop.permute.xlu0 %733
  %v736 = vmul.f32 %v731, %v734
  %738 = vrot.lane.b32.xlu0 %v668, 32
  %v739 = vpop.permute.xlu0 %738
  %v741 = vmul.f32 %v719, %v739
  %v742 = vadd.f32 %v736, %v741
  %v743 = vstv %s565
  %vm744 = vcmp.lt.s32.totalorder %v743, %v66
  %v745 = vsel %vm744, 1, 0
  %v746 = vcvt.s32.f32 %v745
  %748 = vset.pattern.permute.xlu0 0
  %749 = vperm.xlu0 %748, %v746
  %v750 = vpop.permute.xlu0 %749
  %v752 = vmul.f32 %v750, %v742
  %v753 = vsub.f32 1.0, %v746
  %755 = vset.pattern.permute.xlu0 0
  %756 = vperm.xlu0 %755, %v753
  %v757 = vpop.permute.xlu0 %756
  %v759 = vmul.f32 %v757, %v668
  %761 = vrot.lane.b32.xlu0 %v759, 32
  %v762 = vpop.permute.xlu0 %761
  %v764 = vadd.f32 %v752, %v762
  %v765 = vmul.f32 %v764, %v750
  %767 = vrot.lane.b32.xlu0 %v664, 96
  %v768 = vpop.permute.xlu0 %767
  %770 = vst.msk [vmem:[#allocation2] sm:$0xf] %vm322, %v768
  %772 = vrot.lane.b32.xlu0 %v764, 96
  %v773 = vpop.permute.xlu0 %772
  %775 = vst.msk [vmem:[%s201] sm:$0xf] %vm322, %v773
  %777 = vrot.lane.b32.xlu0 %v665, 96
  %v778 = vpop.permute.xlu0 %777
  %s780 = scalar_lea.vmem %s5, 8
  %781 = vst.msk [vmem:[%s780] sm:$0xf] %vm322, %v778
  %783 = vrot.lane.b32.xlu0 %v765, 96
  %v784 = vpop.permute.xlu0 %783
  %s786 = scalar_lea.vmem %s55, 20
  %787 = vst.msk [vmem:[%s786] sm:$0xf] %vm322, %v784
  %s788 = sadd.s32 %s79, 3
  %s789 = ssub.s32 4, %s79
  %s790 = scalar_lea.vmem %s1, 12
  %v791 = vld [vmem:[%s790] sm:$0xf]
  %v792 = vld [vmem:[#allocation2] sm:$0xf]
  %v793 = vpack.c.bf16 %v792, %v792
  %v795 = vsel %vm102, %v793, 0
  %797 = vmatprep.subr.bf16.mxu0 0
  %798 = vmatpush1.bf16.msra.mxu0 %v98
  %799 = vmatprep.subr.bf16.mxu0 0
  %800 = vmatpush1.bf16.msra.mxu0 %v99
  %801 = vmatprep.subr.bf16.mxu0 0
  %802 = vmatpush1.bf16.msra.mxu0 0
  %803 = vmatprep.subr.bf16.mxu0 0
  %804 = vmatpush1.bf16.msra.mxu0 0
  %805 = vmatprep.subr.bf16.mxu0 0
  %806 = vmatpush1.bf16.msra.mxu0 0
  %807 = vmatprep.subr.bf16.mxu0 0
  %808 = vmatpush1.bf16.msra.mxu0 0
  %809 = vmatprep.subr.bf16.mxu0 0
  %810 = vmatpush1.bf16.msra.mxu0 0
  %811 = vmatprep.subr.bf16.mxu0 0
  %812 = vmatpush1.bf16.msra.mxu0 0
  %813 = vmatprep.subr.bf16.mxu0 0
  %814 = vmatpush1.bf16.msra.mxu0 0
  %815 = vmatprep.subr.bf16.mxu0 0
  %816 = vmatpush1.bf16.msra.mxu0 0
  %817 = vmatprep.subr.bf16.mxu0 0
  %818 = vmatpush1.bf16.msra.mxu0 0
  %819 = vmatprep.subr.bf16.mxu0 0
  %820 = vmatpush1.bf16.msra.mxu0 0
  %821 = vmatprep.subr.bf16.mxu0 0
  %822 = vmatpush1.bf16.msra.mxu0 0
  %823 = vmatprep.subr.bf16.mxu0 0
  %824 = vmatpush1.bf16.msra.mxu0 0
  %825 = vmatprep.subr.bf16.mxu0 0
  %826 = vmatpush1.bf16.msra.mxu0 0
  %827 = vmatprep.subr.bf16.mxu0 0
  %828 = vmatpush1.bf16.msra.mxu0 0
  %829 = vmatprep.mubr.bf16.mxu0 0
  %830 = vmatmul.mubr.bf16.gmra.mrb[0].mxu0 %v795
  %v831 = vpop.f32.mrb[0].mxu0
  %v832 = vadd.f32 %v88, %v831
  %v833 = vpop.f32.mrb[0].mxu0
  %v834 = vpop.f32.mrb[0].mxu0
  %v835 = vpop.f32.mrb[0].mxu0
  %836 = vdwg.mxu0
  %v837 = vadd.f32 %v791, %v832
  %v838 = vxor.u32 %v837, 2147483648
  %v839 = vmul.f32 %v838, 1.442695
  %v840 = vpow.pop %v839
  %v841 = vadd.f32 %v840, 1.0
  %v842 = vrcp.pop %v841
  %v843 = vmul.f32 1.0, %v842
  %845 = vrot.lane.b32.xlu0 %v832, 64
  %v846 = vpop.permute.xlu0 %845
  %v848 = vmul.f32 %v843, %v846
  %850 = vrot.lane.b32.xlu0 %v848, 64
  %v851 = vpop.permute.xlu0 %850
  %v853 = vadd.f32 %v791, %v851
  %v854 = vtanh.pop %v853
  %v855 = vsub.f32 1.0, %v843
  %857 = vrot.lane.b32.xlu0 %v854, 96
  %v858 = vpop.permute.xlu0 %857
  %v860 = vmul.f32 %v855, %v858
  %862 = vrot.lane.b32.xlu0 %v792, 32
  %v863 = vpop.permute.xlu0 %862
  %v865 = vmul.f32 %v843, %v863
  %v866 = vadd.f32 %v860, %v865
  %v867 = vstv %s788
  %vm868 = vcmp.lt.s32.totalorder %v867, %v66
  %v869 = vsel %vm868, 1, 0
  %v870 = vcvt.s32.f32 %v869
  %872 = vset.pattern.permute.xlu0 0
  %873 = vperm.xlu0 %872, %v870
  %v874 = vpop.permute.xlu0 %873
  %v876 = vmul.f32 %v874, %v866
  %v877 = vsub.f32 1.0, %v870
  %879 = vset.pattern.permute.xlu0 0
  %880 = vperm.xlu0 %879, %v877
  %v881 = vpop.permute.xlu0 %880
  %v883 = vmul.f32 %v881, %v792
  %885 = vrot.lane.b32.xlu0 %v883, 32
  %v886 = vpop.permute.xlu0 %885
  %v888 = vadd.f32 %v876, %v886
  %v889 = vmul.f32 %v888, %v874
  %s890 = scalar_lea.vmem %s47, 16
  %v891 = vld [vmem:[%s890] sm:$0xf]
  %v892 = vld [vmem:[%s201] sm:$0xf]
  %v893 = vpack.c.bf16 %v892, %v892
  %v895 = vsel %vm102, %v893, 0
  %897 = vmatprep.subr.bf16.mxu0 0
  %898 = vmatpush1.bf16.msra.mxu0 %v218
  %899 = vmatprep.subr.bf16.mxu0 0
  %900 = vmatpush1.bf16.msra.mxu0 %v219
  %901 = vmatprep.subr.bf16.mxu0 0
  %902 = vmatpush1.bf16.msra.mxu0 0
  %903 = vmatprep.subr.bf16.mxu0 0
  %904 = vmatpush1.bf16.msra.mxu0 0
  %905 = vmatprep.subr.bf16.mxu0 0
  %906 = vmatpush1.bf16.msra.mxu0 0
  %907 = vmatprep.subr.bf16.mxu0 0
  %908 = vmatpush1.bf16.msra.mxu0 0
  %909 = vmatprep.subr.bf16.mxu0 0
  %910 = vmatpush1.bf16.msra.mxu0 0
  %911 = vmatprep.subr.bf16.mxu0 0
  %912 = vmatpush1.bf16.msra.mxu0 0
  %913 = vmatprep.subr.bf16.mxu0 0
  %914 = vmatpush1.bf16.msra.mxu0 0
  %915 = vmatprep.subr.bf16.mxu0 0
  %916 = vmatpush1.bf16.msra.mxu0 0
  %917 = vmatprep.subr.bf16.mxu0 0
  %918 = vmatpush1.bf16.msra.mxu0 0
  %919 = vmatprep.subr.bf16.mxu0 0
  %920 = vmatpush1.bf16.msra.mxu0 0
  %921 = vmatprep.subr.bf16.mxu0 0
  %922 = vmatpush1.bf16.msra.mxu0 0
  %923 = vmatprep.subr.bf16.mxu0 0
  %924 = vmatpush1.bf16.msra.mxu0 0
  %925 = vmatprep.subr.bf16.mxu0 0
  %926 = vmatpush1.bf16.msra.mxu0 0
  %927 = vmatprep.subr.bf16.mxu0 0
  %928 = vmatpush1.bf16.msra.mxu0 0
  %929 = vmatprep.mubr.bf16.mxu0 0
  %930 = vmatmul.mubr.bf16.gmra.mrb[0].mxu0 %v895
  %v931 = vpop.f32.mrb[0].mxu0
  %v932 = vadd.f32 %v208, %v931
  %v933 = vpop.f32.mrb[0].mxu0
  %v934 = vpop.f32.mrb[0].mxu0
  %v935 = vpop.f32.mrb[0].mxu0
  %936 = vdwg.mxu0
  %v937 = vadd.f32 %v891, %v932
  %v938 = vxor.u32 %v937, 2147483648
  %v939 = vmul.f32 %v938, 1.442695
  %v940 = vpow.pop %v939
  %v941 = vadd.f32 %v940, 1.0
  %v942 = vrcp.pop %v941
  %v943 = vmul.f32 1.0, %v942
  %945 = vrot.lane.b32.xlu0 %v932, 64
  %v946 = vpop.permute.xlu0 %945
  %v948 = vmul.f32 %v943, %v946
  %950 = vrot.lane.b32.xlu0 %v948, 64
  %v951 = vpop.permute.xlu0 %950
  %v953 = vadd.f32 %v891, %v951
  %v954 = vtanh.pop %v953
  %v955 = vsub.f32 1.0, %v943
  %957 = vrot.lane.b32.xlu0 %v954, 96
  %v958 = vpop.permute.xlu0 %957
  %v960 = vmul.f32 %v955, %v958
  %962 = vrot.lane.b32.xlu0 %v892, 32
  %v963 = vpop.permute.xlu0 %962
  %v965 = vmul.f32 %v943, %v963
  %v966 = vadd.f32 %v960, %v965
  %v967 = vstv %s789
  %vm968 = vcmp.lt.s32.totalorder %v967, %v66
  %v969 = vsel %vm968, 1, 0
  %v970 = vcvt.s32.f32 %v969
  %972 = vset.pattern.permute.xlu0 0
  %973 = vperm.xlu0 %972, %v970
  %v974 = vpop.permute.xlu0 %973
  %v976 = vmul.f32 %v974, %v966
  %v977 = vsub.f32 1.0, %v970
  %979 = vset.pattern.permute.xlu0 0
  %980 = vperm.xlu0 %979, %v977
  %v981 = vpop.permute.xlu0 %980
  %v983 = vmul.f32 %v981, %v892
  %985 = vrot.lane.b32.xlu0 %v983, 32
  %v986 = vpop.permute.xlu0 %985
  %v988 = vadd.f32 %v976, %v986
  %v989 = vmul.f32 %v988, %v974
  %991 = vrot.lane.b32.xlu0 %v888, 96
  %v992 = vpop.permute.xlu0 %991
  %994 = vst.msk [vmem:[#allocation2] sm:$0xf] %vm322, %v992
  %996 = vrot.lane.b32.xlu0 %v988, 96
  %v997 = vpop.permute.xlu0 %996
  %999 = vst.msk [vmem:[%s201] sm:$0xf] %vm322, %v997
  %1001 = vrot.lane.b32.xlu0 %v889, 96
  %v1002 = vpop.permute.xlu0 %1001
  %s1004 = scalar_lea.vmem %s5, 12
  %1005 = vst.msk [vmem:[%s1004] sm:$0xf] %vm322, %v1002
  %1007 = vrot.lane.b32.xlu0 %v989, 96
  %v1008 = vpop.permute.xlu0 %1007
  %s1010 = scalar_lea.vmem %s55, 16
  %1011 = vst.msk [vmem:[%s1010] sm:$0xf] %vm322, %v1008
  %s1012 = sadd.s32 %s79, 4
  %s1013 = ssub.s32 3, %s79
  %s1014 = scalar_lea.vmem %s1, 16
  %v1015 = vld [vmem:[%s1014] sm:$0xf]
  %v1016 = vld [vmem:[#allocation2] sm:$0xf]
  %v1017 = vpack.c.bf16 %v1016, %v1016
  %v1019 = vsel %vm102, %v1017, 0
  %1021 = vmatprep.subr.bf16.mxu0 0
  %1022 = vmatpush1.bf16.msra.mxu0 %v98
  %1023 = vmatprep.subr.bf16.mxu0 0
  %1024 = vmatpush1.bf16.msra.mxu0 %v99
  %1025 = vmatprep.subr.bf16.mxu0 0
  %1026 = vmatpush1.bf16.msra.mxu0 0
  %1027 = vmatprep.subr.bf16.mxu0 0
  %1028 = vmatpush1.bf16.msra.mxu0 0
  %1029 = vmatprep.subr.bf16.mxu0 0
  %1030 = vmatpush1.bf16.msra.mxu0 0
  %1031 = vmatprep.subr.bf16.mxu0 0
  %1032 = vmatpush1.bf16.msra.mxu0 0
  %1033 = vmatprep.subr.bf16.mxu0 0
  %1034 = vmatpush1.bf16.msra.mxu0 0
  %1035 = vmatprep.subr.bf16.mxu0 0
  %1036 = vmatpush1.bf16.msra.mxu0 0
  %1037 = vmatprep.subr.bf16.mxu0 0
  %1038 = vmatpush1.bf16.msra.mxu0 0
  %1039 = vmatprep.subr.bf16.mxu0 0
  %1040 = vmatpush1.bf16.msra.mxu0 0
  %1041 = vmatprep.subr.bf16.mxu0 0
  %1042 = vmatpush1.bf16.msra.mxu0 0
  %1043 = vmatprep.subr.bf16.mxu0 0
  %1044 = vmatpush1.bf16.msra.mxu0 0
  %1045 = vmatprep.subr.bf16.mxu0 0
  %1046 = vmatpush1.bf16.msra.mxu0 0
  %1047 = vmatprep.subr.bf16.mxu0 0
  %1048 = vmatpush1.bf16.msra.mxu0 0
  %1049 = vmatprep.subr.bf16.mxu0 0
  %1050 = vmatpush1.bf16.msra.mxu0 0
  %1051 = vmatprep.subr.bf16.mxu0 0
  %1052 = vmatpush1.bf16.msra.mxu0 0
  %1053 = vmatprep.mubr.bf16.mxu0 0
  %1054 = vmatmul.mubr.bf16.gmra.mrb[0].mxu0 %v1019
  %v1055 = vpop.f32.mrb[0].mxu0
  %v1056 = vadd.f32 %v88, %v1055
  %v1057 = vpop.f32.mrb[0].mxu0
  %v1058 = vpop.f32.mrb[0].mxu0
  %v1059 = vpop.f32.mrb[0].mxu0
  %1060 = vdwg.mxu0
  %v1061 = vadd.f32 %v1015, %v1056
  %v1062 = vxor.u32 %v1061, 2147483648
  %v1063 = vmul.f32 %v1062, 1.442695
  %v1064 = vpow.pop %v1063
  %v1065 = vadd.f32 %v1064, 1.0
  %v1066 = vrcp.pop %v1065
  %v1067 = vmul.f32 1.0, %v1066
  %1069 = vrot.lane.b32.xlu0 %v1056, 64
  %v1070 = vpop.permute.xlu0 %1069
  %v1072 = vmul.f32 %v1067, %v1070
  %1074 = vrot.lane.b32.xlu0 %v1072, 64
  %v1075 = vpop.permute.xlu0 %1074
  %v1077 = vadd.f32 %v1015, %v1075
  %v1078 = vtanh.pop %v1077
  %v1079 = vsub.f32 1.0, %v1067
  %1081 = vrot.lane.b32.xlu0 %v1078, 96
  %v1082 = vpop.permute.xlu0 %1081
  %v1084 = vmul.f32 %v1079, %v1082
  %1086 = vrot.lane.b32.xlu0 %v1016, 32
  %v1087 = vpop.permute.xlu0 %1086
  %v1089 = vmul.f32 %v1067, %v1087
  %v1090 = vadd.f32 %v1084, %v1089
  %v1091 = vstv %s1012
  %vm1092 = vcmp.lt.s32.totalorder %v1091, %v66
  %v1093 = vsel %vm1092, 1, 0
  %v1094 = vcvt.s32.f32 %v1093
  %1096 = vset.pattern.permute.xlu0 0
  %1097 = vperm.xlu0 %1096, %v1094
  %v1098 = vpop.permute.xlu0 %1097
  %v1100 = vmul.f32 %v1098, %v1090
  %v1101 = vsub.f32 1.0, %v1094
  %1103 = vset.pattern.permute.xlu0 0
  %1104 = vperm.xlu0 %1103, %v1101
  %v1105 = vpop.permute.xlu0 %1104
  %v1107 = vmul.f32 %v1105, %v1016
  %1109 = vrot.lane.b32.xlu0 %v1107, 32
  %v1110 = vpop.permute.xlu0 %1109
  %v1112 = vadd.f32 %v1100, %v1110
  %v1113 = vmul.f32 %v1112, %v1098
  %s1114 = scalar_lea.vmem %s47, 12
  %v1115 = vld [vmem:[%s1114] sm:$0xf]
  %v1116 = vld [vmem:[%s201] sm:$0xf]
  %v1117 = vpack.c.bf16 %v1116, %v1116
  %v1119 = vsel %vm102, %v1117, 0
  %1121 = vmatprep.subr.bf16.mxu0 0
  %1122 = vmatpush1.bf16.msra.mxu0 %v218
  %1123 = vmatprep.subr.bf16.mxu0 0
  %1124 = vmatpush1.bf16.msra.mxu0 %v219
  %1125 = vmatprep.subr.bf16.mxu0 0
  %1126 = vmatpush1.bf16.msra.mxu0 0
  %1127 = vmatprep.subr.bf16.mxu0 0
  %1128 = vmatpush1.bf16.msra.mxu0 0
  %1129 = vmatprep.subr.bf16.mxu0 0
  %1130 = vmatpush1.bf16.msra.mxu0 0
  %1131 = vmatprep.subr.bf16.mxu0 0
  %1132 = vmatpush1.bf16.msra.mxu0 0
  %1133 = vmatprep.subr.bf16.mxu0 0
  %1134 = vmatpush1.bf16.msra.mxu0 0
  %1135 = vmatprep.subr.bf16.mxu0 0
  %1136 = vmatpush1.bf16.msra.mxu0 0
  %1137 = vmatprep.subr.bf16.mxu0 0
  %1138 = vmatpush1.bf16.msra.mxu0 0
  %1139 = vmatprep.subr.bf16.mxu0 0
  %1140 = vmatpush1.bf16.msra.mxu0 0
  %1141 = vmatprep.subr.bf16.mxu0 0
  %1142 = vmatpush1.bf16.msra.mxu0 0
  %1143 = vmatprep.subr.bf16.mxu0 0
  %1144 = vmatpush1.bf16.msra.mxu0 0
  %1145 = vmatprep.subr.bf16.mxu0 0
  %1146 = vmatpush1.bf16.msra.mxu0 0
  %1147 = vmatprep.subr.bf16.mxu0 0
  %1148 = vmatpush1.bf16.msra.mxu0 0
  %1149 = vmatprep.subr.bf16.mxu0 0
  %1150 = vmatpush1.bf16.msra.mxu0 0
  %1151 = vmatprep.subr.bf16.mxu0 0
  %1152 = vmatpush1.bf16.msra.mxu0 0
  %1153 = vmatprep.mubr.bf16.mxu0 0
  %1154 = vmatmul.mubr.bf16.gmra.mrb[0].mxu0 %v1119
  %v1155 = vpop.f32.mrb[0].mxu0
  %v1156 = vadd.f32 %v208, %v1155
  %v1157 = vpop.f32.mrb[0].mxu0
  %v1158 = vpop.f32.mrb[0].mxu0
  %v1159 = vpop.f32.mrb[0].mxu0
  %1160 = vdwg.mxu0
  %v1161 = vadd.f32 %v1115, %v1156
  %v1162 = vxor.u32 %v1161, 2147483648
  %v1163 = vmul.f32 %v1162, 1.442695
  %v1164 = vpow.pop %v1163
  %v1165 = vadd.f32 %v1164, 1.0
  %v1166 = vrcp.pop %v1165
  %v1167 = vmul.f32 1.0, %v1166
  %1169 = vrot.lane.b32.xlu0 %v1156, 64
  %v1170 = vpop.permute.xlu0 %1169
  %v1172 = vmul.f32 %v1167, %v1170
  %1174 = vrot.lane.b32.xlu0 %v1172, 64
  %v1175 = vpop.permute.xlu0 %1174
  %v1177 = vadd.f32 %v1115, %v1175
  %v1178 = vtanh.pop %v1177
  %v1179 = vsub.f32 1.0, %v1167
  %1181 = vrot.lane.b32.xlu0 %v1178, 96
  %v1182 = vpop.permute.xlu0 %1181
  %v1184 = vmul.f32 %v1179, %v1182
  %1186 = vrot.lane.b32.xlu0 %v1116, 32
  %v1187 = vpop.permute.xlu0 %1186
  %v1189 = vmul.f32 %v1167, %v1187
  %v1190 = vadd.f32 %v1184, %v1189
  %v1191 = vstv %s1013
  %vm1192 = vcmp.lt.s32.totalorder %v1191, %v66
  %v1193 = vsel %vm1192, 1, 0
  %v1194 = vcvt.s32.f32 %v1193
  %1196 = vset.pattern.permute.xlu0 0
  %1197 = vperm.xlu0 %1196, %v1194
  %v1198 = vpop.permute.xlu0 %1197
  %v1200 = vmul.f32 %v1198, %v1190
  %v1201 = vsub.f32 1.0, %v1194
  %1203 = vset.pattern.permute.xlu0 0
  %1204 = vperm.xlu0 %1203, %v1201
  %v1205 = vpop.permute.xlu0 %1204
  %v1207 = vmul.f32 %v1205, %v1116
  %1209 = vrot.lane.b32.xlu0 %v1207, 32
  %v1210 = vpop.permute.xlu0 %1209
  %v1212 = vadd.f32 %v1200, %v1210
  %v1213 = vmul.f32 %v1212, %v1198
  %1215 = vrot.lane.b32.xlu0 %v1112, 96
  %v1216 = vpop.permute.xlu0 %1215
  %1218 = vst.msk [vmem:[#allocation2] sm:$0xf] %vm322, %v1216
  %1220 = vrot.lane.b32.xlu0 %v1212, 96
  %v1221 = vpop.permute.xlu0 %1220
  %1223 = vst.msk [vmem:[%s201] sm:$0xf] %vm322, %v1221
  %1225 = vrot.lane.b32.xlu0 %v1113, 96
  %v1226 = vpop.permute.xlu0 %1225
  %s1228 = scalar_lea.vmem %s5, 16
  %1229 = vst.msk [vmem:[%s1228] sm:$0xf] %vm322, %v1226
  %1231 = vrot.lane.b32.xlu0 %v1213, 96
  %v1232 = vpop.permute.xlu0 %1231
  %s1234 = scalar_lea.vmem %s55, 12
  %1235 = vst.msk [vmem:[%s1234] sm:$0xf] %vm322, %v1232
  %s1236 = sadd.s32 %s79, 5
  %s1237 = ssub.s32 2, %s79
  %s1238 = scalar_lea.vmem %s1, 20
  %v1239 = vld [vmem:[%s1238] sm:$0xf]
  %v1240 = vld [vmem:[#allocation2] sm:$0xf]
  %v1241 = vpack.c.bf16 %v1240, %v1240
  %v1243 = vsel %vm102, %v1241, 0
  %1245 = vmatprep.subr.bf16.mxu0 0
  %1246 = vmatpush1.bf16.msra.mxu0 %v98
  %1247 = vmatprep.subr.bf16.mxu0 0
  %1248 = vmatpush1.bf16.msra.mxu0 %v99
  %1249 = vmatprep.subr.bf16.mxu0 0
  %1250 = vmatpush1.bf16.msra.mxu0 0
  %1251 = vmatprep.subr.bf16.mxu0 0
  %1252 = vmatpush1.bf16.msra.mxu0 0
  %1253 = vmatprep.subr.bf16.mxu0 0
  %1254 = vmatpush1.bf16.msra.mxu0 0
  %1255 = vmatprep.subr.bf16.mxu0 0
  %1256 = vmatpush1.bf16.msra.mxu0 0
  %1257 = vmatprep.subr.bf16.mxu0 0
  %1258 = vmatpush1.bf16.msra.mxu0 0
  %1259 = vmatprep.subr.bf16.mxu0 0
  %1260 = vmatpush1.bf16.msra.mxu0 0
  %1261 = vmatprep.subr.bf16.mxu0 0
  %1262 = vmatpush1.bf16.msra.mxu0 0
  %1263 = vmatprep.subr.bf16.mxu0 0
  %1264 = vmatpush1.bf16.msra.mxu0 0
  %1265 = vmatprep.subr.bf16.mxu0 0
  %1266 = vmatpush1.bf16.msra.mxu0 0
  %1267 = vmatprep.subr.bf16.mxu0 0
  %1268 = vmatpush1.bf16.msra.mxu0 0
  %1269 = vmatprep.subr.bf16.mxu0 0
  %1270 = vmatpush1.bf16.msra.mxu0 0
  %1271 = vmatprep.subr.bf16.mxu0 0
  %1272 = vmatpush1.bf16.msra.mxu0 0
  %1273 = vmatprep.subr.bf16.mxu0 0
  %1274 = vmatpush1.bf16.msra.mxu0 0
  %1275 = vmatprep.subr.bf16.mxu0 0
  %1276 = vmatpush1.bf16.msra.mxu0 0
  %1277 = vmatprep.mubr.bf16.mxu0 0
  %1278 = vmatmul.mubr.bf16.gmra.mrb[0].mxu0 %v1243
  %v1279 = vpop.f32.mrb[0].mxu0
  %v1280 = vadd.f32 %v88, %v1279
  %v1281 = vpop.f32.mrb[0].mxu0
  %v1282 = vpop.f32.mrb[0].mxu0
  %v1283 = vpop.f32.mrb[0].mxu0
  %1284 = vdwg.mxu0
  %v1285 = vadd.f32 %v1239, %v1280
  %v1286 = vxor.u32 %v1285, 2147483648
  %v1287 = vmul.f32 %v1286, 1.442695
  %v1288 = vpow.pop %v1287
  %v1289 = vadd.f32 %v1288, 1.0
  %v1290 = vrcp.pop %v1289
  %v1291 = vmul.f32 1.0, %v1290
  %1293 = vrot.lane.b32.xlu0 %v1280, 64
  %v1294 = vpop.permute.xlu0 %1293
  %v1296 = vmul.f32 %v1291, %v1294
  %1298 = vrot.lane.b32.xlu0 %v1296, 64
  %v1299 = vpop.permute.xlu0 %1298
  %v1301 = vadd.f32 %v1239, %v1299
  %v1302 = vtanh.pop %v1301
  %v1303 = vsub.f32 1.0, %v1291
  %1305 = vrot.lane.b32.xlu0 %v1302, 96
  %v1306 = vpop.permute.xlu0 %1305
  %v1308 = vmul.f32 %v1303, %v1306
  %1310 = vrot.lane.b32.xlu0 %v1240, 32
  %v1311 = vpop.permute.xlu0 %1310
  %v1313 = vmul.f32 %v1291, %v1311
  %v1314 = vadd.f32 %v1308, %v1313
  %v1315 = vstv %s1236
  %vm1316 = vcmp.lt.s32.totalorder %v1315, %v66
  %v1317 = vsel %vm1316, 1, 0
  %v1318 = vcvt.s32.f32 %v1317
  %1320 = vset.pattern.permute.xlu0 0
  %1321 = vperm.xlu0 %1320, %v1318
  %v1322 = vpop.permute.xlu0 %1321
  %v1324 = vmul.f32 %v1322, %v1314
  %v1325 = vsub.f32 1.0, %v1318
  %1327 = vset.pattern.permute.xlu0 0
  %1328 = vperm.xlu0 %1327, %v1325
  %v1329 = vpop.permute.xlu0 %1328
  %v1331 = vmul.f32 %v1329, %v1240
  %1333 = vrot.lane.b32.xlu0 %v1331, 32
  %v1334 = vpop.permute.xlu0 %1333
  %v1336 = vadd.f32 %v1324, %v1334
  %v1337 = vmul.f32 %v1336, %v1322
  %s1338 = scalar_lea.vmem %s47, 8
  %v1339 = vld [vmem:[%s1338] sm:$0xf]
  %v1340 = vld [vmem:[%s201] sm:$0xf]
  %v1341 = vpack.c.bf16 %v1340, %v1340
  %v1343 = vsel %vm102, %v1341, 0
  %1345 = vmatprep.subr.bf16.mxu0 0
  %1346 = vmatpush1.bf16.msra.mxu0 %v218
  %1347 = vmatprep.subr.bf16.mxu0 0
  %1348 = vmatpush1.bf16.msra.mxu0 %v219
  %1349 = vmatprep.subr.bf16.mxu0 0
  %1350 = vmatpush1.bf16.msra.mxu0 0
  %1351 = vmatprep.subr.bf16.mxu0 0
  %1352 = vmatpush1.bf16.msra.mxu0 0
  %1353 = vmatprep.subr.bf16.mxu0 0
  %1354 = vmatpush1.bf16.msra.mxu0 0
  %1355 = vmatprep.subr.bf16.mxu0 0
  %1356 = vmatpush1.bf16.msra.mxu0 0
  %1357 = vmatprep.subr.bf16.mxu0 0
  %1358 = vmatpush1.bf16.msra.mxu0 0
  %1359 = vmatprep.subr.bf16.mxu0 0
  %1360 = vmatpush1.bf16.msra.mxu0 0
  %1361 = vmatprep.subr.bf16.mxu0 0
  %1362 = vmatpush1.bf16.msra.mxu0 0
  %1363 = vmatprep.subr.bf16.mxu0 0
  %1364 = vmatpush1.bf16.msra.mxu0 0
  %1365 = vmatprep.subr.bf16.mxu0 0
  %1366 = vmatpush1.bf16.msra.mxu0 0
  %1367 = vmatprep.subr.bf16.mxu0 0
  %1368 = vmatpush1.bf16.msra.mxu0 0
  %1369 = vmatprep.subr.bf16.mxu0 0
  %1370 = vmatpush1.bf16.msra.mxu0 0
  %1371 = vmatprep.subr.bf16.mxu0 0
  %1372 = vmatpush1.bf16.msra.mxu0 0
  %1373 = vmatprep.subr.bf16.mxu0 0
  %1374 = vmatpush1.bf16.msra.mxu0 0
  %1375 = vmatprep.subr.bf16.mxu0 0
  %1376 = vmatpush1.bf16.msra.mxu0 0
  %1377 = vmatprep.mubr.bf16.mxu0 0
  %1378 = vmatmul.mubr.bf16.gmra.mrb[0].mxu0 %v1343
  %v1379 = vpop.f32.mrb[0].mxu0
  %v1380 = vadd.f32 %v208, %v1379
  %v1381 = vpop.f32.mrb[0].mxu0
  %v1382 = vpop.f32.mrb[0].mxu0
  %v1383 = vpop.f32.mrb[0].mxu0
  %1384 = vdwg.mxu0
  %v1385 = vadd.f32 %v1339, %v1380
  %v1386 = vxor.u32 %v1385, 2147483648
  %v1387 = vmul.f32 %v1386, 1.442695
  %v1388 = vpow.pop %v1387
  %v1389 = vadd.f32 %v1388, 1.0
  %v1390 = vrcp.pop %v1389
  %v1391 = vmul.f32 1.0, %v1390
  %1393 = vrot.lane.b32.xlu0 %v1380, 64
  %v1394 = vpop.permute.xlu0 %1393
  %v1396 = vmul.f32 %v1391, %v1394
  %1398 = vrot.lane.b32.xlu0 %v1396, 64
  %v1399 = vpop.permute.xlu0 %1398
  %v1401 = vadd.f32 %v1339, %v1399
  %v1402 = vtanh.pop %v1401
  %v1403 = vsub.f32 1.0, %v1391
  %1405 = vrot.lane.b32.xlu0 %v1402, 96
  %v1406 = vpop.permute.xlu0 %1405
  %v1408 = vmul.f32 %v1403, %v1406
  %1410 = vrot.lane.b32.xlu0 %v1340, 32
  %v1411 = vpop.permute.xlu0 %1410
  %v1413 = vmul.f32 %v1391, %v1411
  %v1414 = vadd.f32 %v1408, %v1413
  %v1415 = vstv %s1237
  %vm1416 = vcmp.lt.s32.totalorder %v1415, %v66
  %v1417 = vsel %vm1416, 1, 0
  %v1418 = vcvt.s32.f32 %v1417
  %1420 = vset.pattern.permute.xlu0 0
  %1421 = vperm.xlu0 %1420, %v1418
  %v1422 = vpop.permute.xlu0 %1421
  %v1424 = vmul.f32 %v1422, %v1414
  %v1425 = vsub.f32 1.0, %v1418
  %1427 = vset.pattern.permute.xlu0 0
  %1428 = vperm.xlu0 %1427, %v1425
  %v1429 = vpop.permute.xlu0 %1428
  %v1431 = vmul.f32 %v1429, %v1340
  %1433 = vrot.lane.b32.xlu0 %v1431, 32
  %v1434 = vpop.permute.xlu0 %1433
  %v1436 = vadd.f32 %v1424, %v1434
  %v1437 = vmul.f32 %v1436, %v1422
  %1439 = vrot.lane.b32.xlu0 %v1336, 96
  %v1440 = vpop.permute.xlu0 %1439
  %1442 = vst.msk [vmem:[#allocation2] sm:$0xf] %vm322, %v1440
  %1444 = vrot.lane.b32.xlu0 %v1436, 96
  %v1445 = vpop.permute.xlu0 %1444
  %1447 = vst.msk [vmem:[%s201] sm:$0xf] %vm322, %v1445
  %1449 = vrot.lane.b32.xlu0 %v1337, 96
  %v1450 = vpop.permute.xlu0 %1449
  %s1452 = scalar_lea.vmem %s5, 20
  %1453 = vst.msk [vmem:[%s1452] sm:$0xf] %vm322, %v1450
  %1455 = vrot.lane.b32.xlu0 %v1437, 96
  %v1456 = vpop.permute.xlu0 %1455
  %s1458 = scalar_lea.vmem %s55, 8
  %1459 = vst.msk [vmem:[%s1458] sm:$0xf] %vm322, %v1456
  %s1460 = sadd.s32 %s79, 6
  %s1461 = ssub.s32 1, %s79
  %s1462 = scalar_lea.vmem %s1, 24
  %v1463 = vld [vmem:[%s1462] sm:$0xf]
  %v1464 = vld [vmem:[#allocation2] sm:$0xf]
  %v1465 = vpack.c.bf16 %v1464, %v1464
  %v1467 = vsel %vm102, %v1465, 0
  %1469 = vmatprep.subr.bf16.mxu0 0
  %1470 = vmatpush1.bf16.msra.mxu0 %v98
  %1471 = vmatprep.subr.bf16.mxu0 0
  %1472 = vmatpush1.bf16.msra.mxu0 %v99
  %1473 = vmatprep.subr.bf16.mxu0 0
  %1474 = vmatpush1.bf16.msra.mxu0 0
  %1475 = vmatprep.subr.bf16.mxu0 0
  %1476 = vmatpush1.bf16.msra.mxu0 0
  %1477 = vmatprep.subr.bf16.mxu0 0
  %1478 = vmatpush1.bf16.msra.mxu0 0
  %1479 = vmatprep.subr.bf16.mxu0 0
  %1480 = vmatpush1.bf16.msra.mxu0 0
  %1481 = vmatprep.subr.bf16.mxu0 0
  %1482 = vmatpush1.bf16.msra.mxu0 0
  %1483 = vmatprep.subr.bf16.mxu0 0
  %1484 = vmatpush1.bf16.msra.mxu0 0
  %1485 = vmatprep.subr.bf16.mxu0 0
  %1486 = vmatpush1.bf16.msra.mxu0 0
  %1487 = vmatprep.subr.bf16.mxu0 0
  %1488 = vmatpush1.bf16.msra.mxu0 0
  %1489 = vmatprep.subr.bf16.mxu0 0
  %1490 = vmatpush1.bf16.msra.mxu0 0
  %1491 = vmatprep.subr.bf16.mxu0 0
  %1492 = vmatpush1.bf16.msra.mxu0 0
  %1493 = vmatprep.subr.bf16.mxu0 0
  %1494 = vmatpush1.bf16.msra.mxu0 0
  %1495 = vmatprep.subr.bf16.mxu0 0
  %1496 = vmatpush1.bf16.msra.mxu0 0
  %1497 = vmatprep.subr.bf16.mxu0 0
  %1498 = vmatpush1.bf16.msra.mxu0 0
  %1499 = vmatprep.subr.bf16.mxu0 0
  %1500 = vmatpush1.bf16.msra.mxu0 0
  %1501 = vmatprep.mubr.bf16.mxu0 0
  %1502 = vmatmul.mubr.bf16.gmra.mrb[0].mxu0 %v1467
  %v1503 = vpop.f32.mrb[0].mxu0
  %v1504 = vadd.f32 %v88, %v1503
  %v1505 = vpop.f32.mrb[0].mxu0
  %v1506 = vpop.f32.mrb[0].mxu0
  %v1507 = vpop.f32.mrb[0].mxu0
  %1508 = vdwg.mxu0
  %v1509 = vadd.f32 %v1463, %v1504
  %v1510 = vxor.u32 %v1509, 2147483648
  %v1511 = vmul.f32 %v1510, 1.442695
  %v1512 = vpow.pop %v1511
  %v1513 = vadd.f32 %v1512, 1.0
  %v1514 = vrcp.pop %v1513
  %v1515 = vmul.f32 1.0, %v1514
  %1517 = vrot.lane.b32.xlu0 %v1504, 64
  %v1518 = vpop.permute.xlu0 %1517
  %v1520 = vmul.f32 %v1515, %v1518
  %1522 = vrot.lane.b32.xlu0 %v1520, 64
  %v1523 = vpop.permute.xlu0 %1522
  %v1525 = vadd.f32 %v1463, %v1523
  %v1526 = vtanh.pop %v1525
  %v1527 = vsub.f32 1.0, %v1515
  %1529 = vrot.lane.b32.xlu0 %v1526, 96
  %v1530 = vpop.permute.xlu0 %1529
  %v1532 = vmul.f32 %v1527, %v1530
  %1534 = vrot.lane.b32.xlu0 %v1464, 32
  %v1535 = vpop.permute.xlu0 %1534
  %v1537 = vmul.f32 %v1515, %v1535
  %v1538 = vadd.f32 %v1532, %v1537
  %v1539 = vstv %s1460
  %vm1540 = vcmp.lt.s32.totalorder %v1539, %v66
  %v1541 = vsel %vm1540, 1, 0
  %v1542 = vcvt.s32.f32 %v1541
  %1544 = vset.pattern.permute.xlu0 0
  %1545 = vperm.xlu0 %1544, %v1542
  %v1546 = vpop.permute.xlu0 %1545
  %v1548 = vmul.f32 %v1546, %v1538
  %v1549 = vsub.f32 1.0, %v1542
  %1551 = vset.pattern.permute.xlu0 0
  %1552 = vperm.xlu0 %1551, %v1549
  %v1553 = vpop.permute.xlu0 %1552
  %v1555 = vmul.f32 %v1553, %v1464
  %1557 = vrot.lane.b32.xlu0 %v1555, 32
  %v1558 = vpop.permute.xlu0 %1557
  %v1560 = vadd.f32 %v1548, %v1558
  %v1561 = vmul.f32 %v1560, %v1546
  %s1562 = scalar_lea.vmem %s47, 4
  %v1563 = vld [vmem:[%s1562] sm:$0xf]
  %v1564 = vld [vmem:[%s201] sm:$0xf]
  %v1565 = vpack.c.bf16 %v1564, %v1564
  %v1567 = vsel %vm102, %v1565, 0
  %1569 = vmatprep.subr.bf16.mxu0 0
  %1570 = vmatpush1.bf16.msra.mxu0 %v218
  %1571 = vmatprep.subr.bf16.mxu0 0
  %1572 = vmatpush1.bf16.msra.mxu0 %v219
  %1573 = vmatprep.subr.bf16.mxu0 0
  %1574 = vmatpush1.bf16.msra.mxu0 0
  %1575 = vmatprep.subr.bf16.mxu0 0
  %1576 = vmatpush1.bf16.msra.mxu0 0
  %1577 = vmatprep.subr.bf16.mxu0 0
  %1578 = vmatpush1.bf16.msra.mxu0 0
  %1579 = vmatprep.subr.bf16.mxu0 0
  %1580 = vmatpush1.bf16.msra.mxu0 0
  %1581 = vmatprep.subr.bf16.mxu0 0
  %1582 = vmatpush1.bf16.msra.mxu0 0
  %1583 = vmatprep.subr.bf16.mxu0 0
  %1584 = vmatpush1.bf16.msra.mxu0 0
  %1585 = vmatprep.subr.bf16.mxu0 0
  %1586 = vmatpush1.bf16.msra.mxu0 0
  %1587 = vmatprep.subr.bf16.mxu0 0
  %1588 = vmatpush1.bf16.msra.mxu0 0
  %1589 = vmatprep.subr.bf16.mxu0 0
  %1590 = vmatpush1.bf16.msra.mxu0 0
  %1591 = vmatprep.subr.bf16.mxu0 0
  %1592 = vmatpush1.bf16.msra.mxu0 0
  %1593 = vmatprep.subr.bf16.mxu0 0
  %1594 = vmatpush1.bf16.msra.mxu0 0
  %1595 = vmatprep.subr.bf16.mxu0 0
  %1596 = vmatpush1.bf16.msra.mxu0 0
  %1597 = vmatprep.subr.bf16.mxu0 0
  %1598 = vmatpush1.bf16.msra.mxu0 0
  %1599 = vmatprep.subr.bf16.mxu0 0
  %1600 = vmatpush1.bf16.msra.mxu0 0
  %1601 = vmatprep.mubr.bf16.mxu0 0
  %1602 = vmatmul.mubr.bf16.gmra.mrb[0].mxu0 %v1567
  %v1603 = vpop.f32.mrb[0].mxu0
  %v1604 = vadd.f32 %v208, %v1603
  %v1605 = vpop.f32.mrb[0].mxu0
  %v1606 = vpop.f32.mrb[0].mxu0
  %v1607 = vpop.f32.mrb[0].mxu0
  %1608 = vdwg.mxu0
  %v1609 = vadd.f32 %v1563, %v1604
  %v1610 = vxor.u32 %v1609, 2147483648
  %v1611 = vmul.f32 %v1610, 1.442695
  %v1612 = vpow.pop %v1611
  %v1613 = vadd.f32 %v1612, 1.0
  %v1614 = vrcp.pop %v1613
  %v1615 = vmul.f32 1.0, %v1614
  %1617 = vrot.lane.b32.xlu0 %v1604, 64
  %v1618 = vpop.permute.xlu0 %1617
  %v1620 = vmul.f32 %v1615, %v1618
  %1622 = vrot.lane.b32.xlu0 %v1620, 64
  %v1623 = vpop.permute.xlu0 %1622
  %v1625 = vadd.f32 %v1563, %v1623
  %v1626 = vtanh.pop %v1625
  %v1627 = vsub.f32 1.0, %v1615
  %1629 = vrot.lane.b32.xlu0 %v1626, 96
  %v1630 = vpop.permute.xlu0 %1629
  %v1632 = vmul.f32 %v1627, %v1630
  %1634 = vrot.lane.b32.xlu0 %v1564, 32
  %v1635 = vpop.permute.xlu0 %1634
  %v1637 = vmul.f32 %v1615, %v1635
  %v1638 = vadd.f32 %v1632, %v1637
  %v1639 = vstv %s1461
  %vm1640 = vcmp.lt.s32.totalorder %v1639, %v66
  %v1641 = vsel %vm1640, 1, 0
  %v1642 = vcvt.s32.f32 %v1641
  %1644 = vset.pattern.permute.xlu0 0
  %1645 = vperm.xlu0 %1644, %v1642
  %v1646 = vpop.permute.xlu0 %1645
  %v1648 = vmul.f32 %v1646, %v1638
  %v1649 = vsub.f32 1.0, %v1642
  %1651 = vset.pattern.permute.xlu0 0
  %1652 = vperm.xlu0 %1651, %v1649
  %v1653 = vpop.permute.xlu0 %1652
  %v1655 = vmul.f32 %v1653, %v1564
  %1657 = vrot.lane.b32.xlu0 %v1655, 32
  %v1658 = vpop.permute.xlu0 %1657
  %v1660 = vadd.f32 %v1648, %v1658
  %v1661 = vmul.f32 %v1660, %v1646
  %1663 = vrot.lane.b32.xlu0 %v1560, 96
  %v1664 = vpop.permute.xlu0 %1663
  %1666 = vst.msk [vmem:[#allocation2] sm:$0xf] %vm322, %v1664
  %1668 = vrot.lane.b32.xlu0 %v1660, 96
  %v1669 = vpop.permute.xlu0 %1668
  %1671 = vst.msk [vmem:[%s201] sm:$0xf] %vm322, %v1669
  %1673 = vrot.lane.b32.xlu0 %v1561, 96
  %v1674 = vpop.permute.xlu0 %1673
  %s1676 = scalar_lea.vmem %s5, 24
  %1677 = vst.msk [vmem:[%s1676] sm:$0xf] %vm322, %v1674
  %1679 = vrot.lane.b32.xlu0 %v1661, 96
  %v1680 = vpop.permute.xlu0 %1679
  %s1682 = scalar_lea.vmem %s55, 4
  %1683 = vst.msk [vmem:[%s1682] sm:$0xf] %vm322, %v1680
  %s1684 = sadd.s32 %s79, 7
  %s1685 = ssub.s32 0, %s79
  %s1686 = scalar_lea.vmem %s1, 28
  %v1687 = vld [vmem:[%s1686] sm:$0xf]
  %v1688 = vld [vmem:[#allocation2] sm:$0xf]
  %v1689 = vpack.c.bf16 %v1688, %v1688
  %v1691 = vsel %vm102, %v1689, 0
  %1693 = vmatprep.subr.bf16.mxu0 0
  %1694 = vmatpush1.bf16.msra.mxu0 %v98
  %1695 = vmatprep.subr.bf16.mxu0 0
  %1696 = vmatpush1.bf16.msra.mxu0 %v99
  %1697 = vmatprep.subr.bf16.mxu0 0
  %1698 = vmatpush1.bf16.msra.mxu0 0
  %1699 = vmatprep.subr.bf16.mxu0 0
  %1700 = vmatpush1.bf16.msra.mxu0 0
  %1701 = vmatprep.subr.bf16.mxu0 0
  %1702 = vmatpush1.bf16.msra.mxu0 0
  %1703 = vmatprep.subr.bf16.mxu0 0
  %1704 = vmatpush1.bf16.msra.mxu0 0
  %1705 = vmatprep.subr.bf16.mxu0 0
  %1706 = vmatpush1.bf16.msra.mxu0 0
  %1707 = vmatprep.subr.bf16.mxu0 0
  %1708 = vmatpush1.bf16.msra.mxu0 0
  %1709 = vmatprep.subr.bf16.mxu0 0
  %1710 = vmatpush1.bf16.msra.mxu0 0
  %1711 = vmatprep.subr.bf16.mxu0 0
  %1712 = vmatpush1.bf16.msra.mxu0 0
  %1713 = vmatprep.subr.bf16.mxu0 0
  %1714 = vmatpush1.bf16.msra.mxu0 0
  %1715 = vmatprep.subr.bf16.mxu0 0
  %1716 = vmatpush1.bf16.msra.mxu0 0
  %1717 = vmatprep.subr.bf16.mxu0 0
  %1718 = vmatpush1.bf16.msra.mxu0 0
  %1719 = vmatprep.subr.bf16.mxu0 0
  %1720 = vmatpush1.bf16.msra.mxu0 0
  %1721 = vmatprep.subr.bf16.mxu0 0
  %1722 = vmatpush1.bf16.msra.mxu0 0
  %1723 = vmatprep.subr.bf16.mxu0 0
  %1724 = vmatpush1.bf16.msra.mxu0 0
  %1725 = vmatprep.mubr.bf16.mxu0 0
  %1726 = vmatmul.mubr.bf16.gmra.mrb[0].mxu0 %v1691
  %v1727 = vpop.f32.mrb[0].mxu0
  %v1728 = vadd.f32 %v88, %v1727
  %v1729 = vpop.f32.mrb[0].mxu0
  %v1730 = vpop.f32.mrb[0].mxu0
  %v1731 = vpop.f32.mrb[0].mxu0
  %1732 = vdwg.mxu0
  %v1733 = vadd.f32 %v1687, %v1728
  %v1734 = vxor.u32 %v1733, 2147483648
  %v1735 = vmul.f32 %v1734, 1.442695
  %v1736 = vpow.pop %v1735
  %v1737 = vadd.f32 %v1736, 1.0
  %v1738 = vrcp.pop %v1737
  %v1739 = vmul.f32 1.0, %v1738
  %1741 = vrot.lane.b32.xlu0 %v1728, 64
  %v1742 = vpop.permute.xlu0 %1741
  %v1744 = vmul.f32 %v1739, %v1742
  %1746 = vrot.lane.b32.xlu0 %v1744, 64
  %v1747 = vpop.permute.xlu0 %1746
  %v1749 = vadd.f32 %v1687, %v1747
  %v1750 = vtanh.pop %v1749
  %v1751 = vsub.f32 1.0, %v1739
  %1753 = vrot.lane.b32.xlu0 %v1750, 96
  %v1754 = vpop.permute.xlu0 %1753
  %v1756 = vmul.f32 %v1751, %v1754
  %1758 = vrot.lane.b32.xlu0 %v1688, 32
  %v1759 = vpop.permute.xlu0 %1758
  %v1761 = vmul.f32 %v1739, %v1759
  %v1762 = vadd.f32 %v1756, %v1761
  %v1763 = vstv %s1684
  %vm1764 = vcmp.lt.s32.totalorder %v1763, %v66
  %v1765 = vsel %vm1764, 1, 0
  %v1766 = vcvt.s32.f32 %v1765
  %1768 = vset.pattern.permute.xlu0 0
  %1769 = vperm.xlu0 %1768, %v1766
  %v1770 = vpop.permute.xlu0 %1769
  %v1772 = vmul.f32 %v1770, %v1762
  %v1773 = vsub.f32 1.0, %v1766
  %1775 = vset.pattern.permute.xlu0 0
  %1776 = vperm.xlu0 %1775, %v1773
  %v1777 = vpop.permute.xlu0 %1776
  %v1779 = vmul.f32 %v1777, %v1688
  %1781 = vrot.lane.b32.xlu0 %v1779, 32
  %v1782 = vpop.permute.xlu0 %1781
  %v1784 = vadd.f32 %v1772, %v1782
  %v1785 = vmul.f32 %v1784, %v1770
  %v1786 = vld [vmem:[%s47] sm:$0xf]
  %v1787 = vld [vmem:[%s201] sm:$0xf]
  %v1788 = vpack.c.bf16 %v1787, %v1787
  %v1790 = vsel %vm102, %v1788, 0
  %1792 = vmatprep.subr.bf16.mxu0 0
  %1793 = vmatpush1.bf16.msra.mxu0 %v218
  %1794 = vmatprep.subr.bf16.mxu0 0
  %1795 = vmatpush1.bf16.msra.mxu0 %v219
  %1796 = vmatprep.subr.bf16.mxu0 0
  %1797 = vmatpush1.bf16.msra.mxu0 0
  %1798 = vmatprep.subr.bf16.mxu0 0
  %1799 = vmatpush1.bf16.msra.mxu0 0
  %1800 = vmatprep.subr.bf16.mxu0 0
  %1801 = vmatpush1.bf16.msra.mxu0 0
  %1802 = vmatprep.subr.bf16.mxu0 0
  %1803 = vmatpush1.bf16.msra.mxu0 0
  %1804 = vmatprep.subr.bf16.mxu0 0
  %1805 = vmatpush1.bf16.msra.mxu0 0
  %1806 = vmatprep.subr.bf16.mxu0 0
  %1807 = vmatpush1.bf16.msra.mxu0 0
  %1808 = vmatprep.subr.bf16.mxu0 0
  %1809 = vmatpush1.bf16.msra.mxu0 0
  %1810 = vmatprep.subr.bf16.mxu0 0
  %1811 = vmatpush1.bf16.msra.mxu0 0
  %1812 = vmatprep.subr.bf16.mxu0 0
  %1813 = vmatpush1.bf16.msra.mxu0 0
  %1814 = vmatprep.subr.bf16.mxu0 0
  %1815 = vmatpush1.bf16.msra.mxu0 0
  %1816 = vmatprep.subr.bf16.mxu0 0
  %1817 = vmatpush1.bf16.msra.mxu0 0
  %1818 = vmatprep.subr.bf16.mxu0 0
  %1819 = vmatpush1.bf16.msra.mxu0 0
  %1820 = vmatprep.subr.bf16.mxu0 0
  %1821 = vmatpush1.bf16.msra.mxu0 0
  %1822 = vmatprep.subr.bf16.mxu0 0
  %1823 = vmatpush1.bf16.msra.mxu0 0
  %1824 = vmatprep.mubr.bf16.mxu0 0
  %1825 = vmatmul.mubr.bf16.gmra.mrb[0].mxu0 %v1790
  %v1826 = vpop.f32.mrb[0].mxu0
  %v1827 = vadd.f32 %v208, %v1826
  %v1828 = vpop.f32.mrb[0].mxu0
  %v1829 = vpop.f32.mrb[0].mxu0
  %v1830 = vpop.f32.mrb[0].mxu0
  %1831 = vdwg.mxu0
  %v1832 = vadd.f32 %v1786, %v1827
  %v1833 = vxor.u32 %v1832, 2147483648
  %v1834 = vmul.f32 %v1833, 1.442695
  %v1835 = vpow.pop %v1834
  %v1836 = vadd.f32 %v1835, 1.0
  %v1837 = vrcp.pop %v1836
  %v1838 = vmul.f32 1.0, %v1837
  %1840 = vrot.lane.b32.xlu0 %v1827, 64
  %v1841 = vpop.permute.xlu0 %1840
  %v1843 = vmul.f32 %v1838, %v1841
  %1845 = vrot.lane.b32.xlu0 %v1843, 64
  %v1846 = vpop.permute.xlu0 %1845
  %v1848 = vadd.f32 %v1786, %v1846
  %v1849 = vtanh.pop %v1848
  %v1850 = vsub.f32 1.0, %v1838
  %1852 = vrot.lane.b32.xlu0 %v1849, 96
  %v1853 = vpop.permute.xlu0 %1852
  %v1855 = vmul.f32 %v1850, %v1853
  %1857 = vrot.lane.b32.xlu0 %v1787, 32
  %v1858 = vpop.permute.xlu0 %1857
  %v1860 = vmul.f32 %v1838, %v1858
  %v1861 = vadd.f32 %v1855, %v1860
  %v1862 = vstv %s1685
  %vm1863 = vcmp.lt.s32.totalorder %v1862, %v66
  %v1864 = vsel %vm1863, 1, 0
  %v1865 = vcvt.s32.f32 %v1864
  %1867 = vset.pattern.permute.xlu0 0
  %1868 = vperm.xlu0 %1867, %v1865
  %v1869 = vpop.permute.xlu0 %1868
  %v1871 = vmul.f32 %v1869, %v1861
  %v1872 = vsub.f32 1.0, %v1865
  %1874 = vset.pattern.permute.xlu0 0
  %1875 = vperm.xlu0 %1874, %v1872
  %v1876 = vpop.permute.xlu0 %1875
  %v1878 = vmul.f32 %v1876, %v1787
  %1880 = vrot.lane.b32.xlu0 %v1878, 32
  %v1881 = vpop.permute.xlu0 %1880
  %v1883 = vadd.f32 %v1871, %v1881
  %v1884 = vmul.f32 %v1883, %v1869
  %1886 = vrot.lane.b32.xlu0 %v1784, 96
  %v1887 = vpop.permute.xlu0 %1886
  %1889 = vst.msk [vmem:[#allocation2] sm:$0xf] %vm322, %v1887
  %1891 = vrot.lane.b32.xlu0 %v1883, 96
  %v1892 = vpop.permute.xlu0 %1891
  %1894 = vst.msk [vmem:[%s201] sm:$0xf] %vm322, %v1892
  %1896 = vrot.lane.b32.xlu0 %v1785, 96
  %v1897 = vpop.permute.xlu0 %1896
  %s1899 = scalar_lea.vmem %s5, 28
  %1900 = vst.msk [vmem:[%s1899] sm:$0xf] %vm322, %v1897
  %1902 = vrot.lane.b32.xlu0 %v1884, 96
  %v1903 = vpop.permute.xlu0 %1902
  %1905 = vst.msk [vmem:[%s55] sm:$0xf] %vm322, %v1903
  %s1906 = ssub.s32 0, 0
  %s1907 = smul.u32 8, %s1906
  %p1908 = scmp.lt.s32.totalorder %s1907, 7
  %s1909 = scalar_select %p1908, %s1907, 7
  %s1910 = smul.addr %s1909, 4
  %s1911 = scalar_lea.vmem %s6, %s1910
  // Predicated region
  $region26: #{encoder_forward.2} parent=0 // pred_check
    _
  $region27: #{encoder_forward.2} parent=0 // pred_check_branch
    %1913 = sbr.rel (0) target = $region29
  $region28: #{encoder_forward.2} parent=0 // pred_region
    _
  $region29: #{encoder_forward.2} parent=0 // pred_fallthru
    _
  // Predicated region
  $region30: #{encoder_forward.2} parent=0 // pred_check
    _
  $region31: #{encoder_forward.2} parent=0 // pred_check_branch
    %1915 = sbr.rel (0) target = $region33
  $region32: #{encoder_forward.2} parent=0 // pred_region
    %s1916 = ssub.s32 0, 0
    %s1917 = smul.u32 8, %s1916
  $region33: #{encoder_forward.2} parent=0 // pred_fallthru
    _
  // Predicated region
  $region34: #{encoder_forward.2} parent=0 // pred_check
    _
  $region35: #{encoder_forward.2} parent=0 // pred_check_branch
    %1919 = sbr.rel (0) target = $region37
  $region36: #{encoder_forward.2} parent=0 // pred_region
    _
  $region37: #{encoder_forward.2} parent=0 // pred_fallthru
    _
  // Predicated region
  $region38: #{encoder_forward.2} parent=0 // pred_check
    _
  $region39: #{encoder_forward.2} parent=0 // pred_check_branch
    %1921 = sbr.rel (0) target = $region41
  $region40: #{encoder_forward.2} parent=0 // pred_region
    %s1922 = ssub.s32 0, 0
    %s1923 = smul.u32 8, %s1922
    %p1924 = scmp.lt.s32.totalorder %s1923, 7
    %s1925 = scalar_select %p1924, %s1923, 7
    %s1926 = smul.addr %s1925, 4
    %s1927 = scalar_lea.vmem %s6, %s1926
  $region41: #{encoder_forward.2} parent=0 // pred_fallthru
    _

</llo_original>
